<compile_context>
chip_gen: v5e
topology: v5e:2x2
jax: 0.10.0
libtpu: 0.0.40
codegen_flags: <defaults>
</compile_context>

<pallas_src>
import math

import jax
import jax.numpy as jnp
from jax.experimental import pallas as pl
from jax.experimental.pallas import tpu as pltpu

NUM_LAYERS = 3
NHEAD = 4
LN_EPS = 1e-5


def _layer_norm(x, gamma, beta):
    mu = jnp.mean(x, axis=-1, keepdims=True)
    var = jnp.mean((x - mu) ** 2, axis=-1, keepdims=True)
    return (x - mu) * jax.lax.rsqrt(var + LN_EPS) * gamma + beta


def transformer_kernel(x_ref, misc_ref, w_qkv_ref, w_o_ref, w_ff1_ref,
                       w_ff2_ref, vecs_ref, out_ref):
    f32 = jnp.float32
    x = x_ref[...]                                    # (B, S, I)
    B, S, I = x.shape
    D = w_qkv_ref.shape[1]
    FF = w_ff1_ref.shape[2]
    H = NHEAD
    Dh = D // H
    N = B * S
    O = out_ref.shape[1]

    # ---- unpack the packed 'misc' buffer (static, 8-aligned sublane slices) ----
    o_pe = 8
    o_fc1 = o_pe + S
    o_fc2 = o_fc1 + S * D
    o_gb = o_fc2 + D
    w_in = misc_ref[pl.ds(0, I), :]                   # (I, D)
    pe = misc_ref[pl.ds(o_pe, S), :]                  # (S, D)
    w_fc1 = misc_ref[pl.ds(o_fc1, S * D), :]          # (S*D, D)
    w_fc2 = misc_ref[pl.ds(o_fc2, D), :]              # (D, D); cols >= O are zero
    gb = misc_ref[pl.ds(o_gb, 8), :]                  # (8, D) global biases
    b_in, b_fc1, b_fc2 = gb[0:1, :], gb[1:2, :], gb[2:3, :]

    # ---- input_fc + positional encoding (broadcast over batch in-kernel) ----
    h2d = jnp.dot(x.reshape(N, I), w_in, preferred_element_type=f32) + b_in
    h2d = (h2d.reshape(B, S, D) + pe).reshape(N, D)   # (N, D)

    # ---- 3 post-norm TransformerEncoder layers ----
    # NOTE(scaling): at D=32 full Python unrolling is fine (vreg pressure is
    # negligible); convert to lax.fori_loop(..., unroll=True) before growing D/S.
    for l in range(NUM_LAYERS):
        vl = vecs_ref[l]                              # (10, D) per-layer vectors
        b_o, ln1_g, ln1_b = vl[0:1, :], vl[1:2, :], vl[2:3, :]
        b_ff1 = vl[3:4, :FF]
        b_ff2, ln2_g, ln2_b = vl[4:5, :], vl[5:6, :], vl[6:7, :]
        b_qkv = jnp.concatenate([vl[7:8, :], vl[8:9, :], vl[9:10, :]], axis=-1)

        # Fused QKV: ONE (N, D) @ (D, 3D) MXU dot (softmax scale folded in W_q/b_q).
        qkv = jnp.dot(h2d, w_qkv_ref[l], preferred_element_type=f32) + b_qkv

        # Heads -> batch dim: static lane slices + leading-dim concat -> (H*B, S, Dh).
        def to_heads(base):
            parts = [qkv[:, base + h * Dh:base + (h + 1) * Dh].reshape(B, S, Dh)
                     for h in range(H)]
            return jnp.concatenate(parts, axis=0)     # leading index = h*B + b
        qb, kb, vb = to_heads(0), to_heads(D), to_heads(2 * D)

        # Attention core batched over (head, batch): 2 dots + 1 softmax group.
        s_ = jnp.einsum('nqd,nkd->nqk', qb, kb, preferred_element_type=f32)
        s_ = s_ - jnp.max(s_, axis=-1, keepdims=True)
        p = jnp.exp(s_)
        p = p / jnp.sum(p, axis=-1, keepdims=True)    # exact divide (bit-closer to ref)
        ctx = jnp.einsum('nqk,nkd->nqd', p, vb, preferred_element_type=f32)

        # Head merge: lane concat back to (N, D), then ONE output-projection dot.
        merged = jnp.concatenate(
            [ctx[h * B:(h + 1) * B].reshape(N, Dh) for h in range(H)], axis=-1)
        attn = jnp.dot(merged, w_o_ref[l], preferred_element_type=f32) + b_o

        h2d = _layer_norm(h2d + attn, ln1_g, ln1_b)

        # Feed-forward (ReLU), plain 2-D dots with (in, out) weights.
        ff = jnp.dot(h2d, w_ff1_ref[l], preferred_element_type=f32) + b_ff1
        ff = jnp.maximum(ff, 0.0)
        ff = jnp.dot(ff, w_ff2_ref[l], preferred_element_type=f32) + b_ff2
        h2d = _layer_norm(h2d + ff, ln2_g, ln2_b)

    # ---- flatten(start_dim=1) as a lane concat (no vector relayout), then fc1
    #      as ONE (B, S*D) @ (S*D, D) K=256 dot ----
    h3 = h2d.reshape(B, S, D)
    flat = jnp.concatenate([h3[:, s, :] for s in range(S)], axis=-1)   # (B, S*D)
    z = jnp.dot(flat, w_fc1, preferred_element_type=f32) + b_fc1       # (B, D)

    # ---- fc2: weight zero-padded to (D, D); valid lanes are [:O] ----
    out = jnp.dot(z, w_fc2, preferred_element_type=f32) + b_fc2        # (B, D)
    out_ref[...] = out[:, :O]


def transformer_forward(x, params):
    B = x.shape[0]
    O = params['output_size']
    inputs = (x, params['misc'], params['w_qkv'], params['w_o'],
              params['w_ff1'], params['w_ff2'], params['vecs'])
    vmem = pl.BlockSpec(memory_space=pltpu.MemorySpace.VMEM)
    # NOTE(v7x scaling): at larger B/S/D, add a batch/sequence grid with
    # dimension_semantics=("parallel",...) so work is sharded across the two
    # TensorCores, and size tiles against 64 MiB physical VMEM.  At B=2 and
    # <1 MiB resident, grid-less on one core wins (per-step overhead ~0.35 us).
    return pl.pallas_call(
        transformer_kernel,
        out_shape=jax.ShapeDtypeStruct((B, O), jnp.float32),
        in_specs=[vmem] * len(inputs),
        out_specs=vmem,
    )(*inputs)


def make_positional_encoding(seq_len, d_model):
    position = jnp.arange(seq_len, dtype=jnp.float32)[:, None]
    div_term = jnp.exp(jnp.arange(0, d_model, 2, dtype=jnp.float32)
                       * (-math.log(10000.0) / d_model))
    pe = jnp.zeros((seq_len, d_model), jnp.float32)
    pe = pe.at[:, 0::2].set(jnp.sin(position * div_term))
    pe = pe.at[:, 1::2].set(jnp.cos(position * div_term))
    return pe


def init_params(key, *, input_size, d_model, seq_len, output_size):
    """Weights stored in kernel-friendly packed layouts:
       dense weights as (in, out); per-layer QKV fused to (D, 3D) with the
       1/sqrt(Dh) scale folded into the Q block; fc1 as (seq*d_model, d_model);
       all per-layer vectors in one (L, 10, D) buffer; w_in / pe / fc1 / fc2 /
       global biases in one 'misc' buffer with 8-aligned row segments.
       (Porting torch weights = transpose / concat / pad at load time.)"""
    I, D, S, O = input_size, d_model, seq_len, output_size
    FF = 4 * input_size
    L, H = NUM_LAYERS, NHEAD
    Dh = D // H
    scale = 1.0 / math.sqrt(Dh)
    keys = jax.random.split(key, 9)

    def w(k, shape, fan_in):
        return jax.random.normal(k, shape, jnp.float32) / math.sqrt(fan_in)

    # ---- per-layer attention / FFN weights (kernel layouts: (in, out)) ----
    w_q = w(keys[1], (L, D, D), D) * scale            # softmax scale folded in
    w_k = w(keys[2], (L, D, D), D)
    w_v = w(keys[3], (L, D, D), D)
    w_qkv = jnp.concatenate([w_q, w_k, w_v], axis=-1)          # (L, D, 3D)
    w_o = w(keys[4], (L, D, D), D)                             # (L, D, D)
    w_ff1 = w(keys[5], (L, D, FF), D)                          # (L, D, FF)
    w_ff2 = w(keys[6], (L, FF, D), FF)                         # (L, FF, D)

    b_q = 0.01 * jnp.ones((L, D), jnp.float32) * scale
    b_k = 0.01 * jnp.ones((L, D), jnp.float32)
    b_v = 0.01 * jnp.ones((L, D), jnp.float32)

    # ---- packed per-layer vectors: (L, 10, D) ----
    zero = jnp.zeros((L, D), jnp.float32)
    one = jnp.ones((L, D), jnp.float32)
    vecs = jnp.stack(
        [zero,   # 0: b_o
         one,    # 1: ln1_gamma
         zero,   # 2: ln1_beta
         zero,   # 3: b_ff1 (first FF lanes used)
         zero,   # 4: b_ff2
         one,    # 5: ln2_gamma
         zero,   # 6: ln2_beta
         b_q,    # 7: qkv bias, q part
         b_k,    # 8: qkv bias, k part
         b_v],   # 9: qkv bias, v part
        axis=1)                                                # (L, 10, D)

    # ---- packed 'misc' buffer: rows [0:8)=w_in, [8:8+S)=pe,
    #      [8+S : 8+S+S*D)=w_fc1, next D rows = w_fc2 (col-padded),
    #      last 8 rows = global biases (b_in, b_fc1, b_fc2) ----
    w_in = jnp.zeros((8, D), jnp.float32).at[:I, :].set(w(keys[0], (I, D), I))
    pe = make_positional_encoding(S, D)                        # (S, D)
    w_fc1 = w(keys[7], (S * D, D), S * D)                      # flatten idx = s*D + d
    w_fc2 = jnp.zeros((D, D), jnp.float32).at[:, :O].set(w(keys[8], (D, O), D))
    gbias = jnp.zeros((8, D), jnp.float32)                     # b_in, b_fc1, b_fc2 = 0
    misc = jnp.concatenate([w_in, pe, w_fc1, w_fc2, gbias], axis=0)

    return {'misc': misc, 'w_qkv': w_qkv, 'w_o': w_o,
            'w_ff1': w_ff1, 'w_ff2': w_ff2, 'vecs': vecs,
            'output_size': O}


if __name__ == "__main__":
    # args: input_size=4, d_model=32, seq_len=8, output_size=4 ; batch=2
    B, S, I, D, O = 2, 8, 4, 32, 4

    key = jax.random.PRNGKey(0)
    k_x, k_p = jax.random.split(key)
    x = jax.random.normal(k_x, (B, S, I), jnp.float32)
    params = init_params(k_p, input_size=I, d_model=D, seq_len=S, output_size=O)

    out = transformer_forward(x, params)
    out = jax.block_until_ready(out)
    assert out.shape == (B, O) and out.dtype == jnp.float32
    assert bool(jnp.all(jnp.isfinite(out)))
    print("KERNEL_OK")
</pallas_src>

<mosaic_0001>
module attributes {stable_mosaic.version = 11 : i64} {
  func.func @transformer_kernel(%arg0: memref<2x8x4xf32, #tpu.memory_space<vmem>>, %arg1: memref<312x32xf32, #tpu.memory_space<vmem>>, %arg2: memref<3x32x96xf32, #tpu.memory_space<vmem>>, %arg3: memref<3x32x32xf32, #tpu.memory_space<vmem>>, %arg4: memref<3x32x16xf32, #tpu.memory_space<vmem>>, %arg5: memref<3x16x32xf32, #tpu.memory_space<vmem>>, %arg6: memref<3x10x32xf32, #tpu.memory_space<vmem>>, %arg7: memref<2x4xf32, #tpu.memory_space<vmem>>) attributes {dimension_semantics = [], scalar_prefetch = 0 : i64, scratch_operands = 0 : i64, tpu.core_type = #tpu.core_type<tc>} {
    %c0 = arith.constant 0 : index
    %c0_0 = arith.constant 0 : index
    %c0_1 = arith.constant 0 : index
    %0 = vector.load %arg0[%c0, %c0_0, %c0_1] : memref<2x8x4xf32, #tpu.memory_space<vmem>>, vector<2x8x4xf32>
    %c0_2 = arith.constant 0 : index
    %c0_3 = arith.constant 0 : index
    %1 = vector.load %arg1[%c0_2, %c0_3] : memref<312x32xf32, #tpu.memory_space<vmem>>, vector<4x32xf32>
    %c8 = arith.constant 8 : index
    %c0_4 = arith.constant 0 : index
    %2 = vector.load %arg1[%c8, %c0_4] : memref<312x32xf32, #tpu.memory_space<vmem>>, vector<8x32xf32>
    %c16 = arith.constant 16 : index
    %c0_5 = arith.constant 0 : index
    %3 = vector.load %arg1[%c16, %c0_5] : memref<312x32xf32, #tpu.memory_space<vmem>>, vector<256x32xf32>
    %c272 = arith.constant 272 : index
    %c0_6 = arith.constant 0 : index
    %4 = vector.load %arg1[%c272, %c0_6] : memref<312x32xf32, #tpu.memory_space<vmem>>, vector<32x32xf32>
    %c304 = arith.constant 304 : index
    %c0_7 = arith.constant 0 : index
    %5 = vector.load %arg1[%c304, %c0_7] : memref<312x32xf32, #tpu.memory_space<vmem>>, vector<8x32xf32>
    %6 = vector.extract_strided_slice %5 {offsets = [0, 0], sizes = [1, 32], strides = [1, 1]} : vector<8x32xf32> to vector<1x32xf32>
    %7 = vector.extract_strided_slice %5 {offsets = [1, 0], sizes = [1, 32], strides = [1, 1]} : vector<8x32xf32> to vector<1x32xf32>
    %8 = vector.extract_strided_slice %5 {offsets = [2, 0], sizes = [1, 32], strides = [1, 1]} : vector<8x32xf32> to vector<1x32xf32>
    %9 = vector.shape_cast %0 : vector<2x8x4xf32> to vector<16x4xf32>
    %cst = arith.constant dense<0.000000e+00> : vector<16x32xf32>
    %10 = tpu.matmul %9, %1, %cst {dimension_numbers = #tpu.dot_dimension_numbers<[1], [0], [0], [1], [0, 0, 1, 1], [], []>} : vector<16x4xf32>, vector<4x32xf32>, vector<16x32xf32> -> vector<16x32xf32>
    %11 = vector.broadcast %6 : vector<1x32xf32> to vector<16x32xf32>
    %12 = arith.addf %10, %11 : vector<16x32xf32>
    %13 = vector.shape_cast %12 : vector<16x32xf32> to vector<2x8x32xf32>
    %14 = vector.shape_cast %2 : vector<8x32xf32> to vector<1x8x32xf32>
    %15 = vector.broadcast %14 : vector<1x8x32xf32> to vector<2x8x32xf32>
    %16 = arith.addf %13, %15 : vector<2x8x32xf32>
    %17 = vector.shape_cast %16 : vector<2x8x32xf32> to vector<16x32xf32>
    %c0_8 = arith.constant 0 : index
    %c0_9 = arith.constant 0 : index
    %c0_10 = arith.constant 0 : index
    %18 = vector.load %arg6[%c0_8, %c0_9, %c0_10] : memref<3x10x32xf32, #tpu.memory_space<vmem>>, vector<1x10x32xf32>
    %19 = vector.shape_cast %18 : vector<1x10x32xf32> to vector<10x32xf32>
    %20 = vector.extract_strided_slice %19 {offsets = [0, 0], sizes = [1, 32], strides = [1, 1]} : vector<10x32xf32> to vector<1x32xf32>
    %21 = vector.extract_strided_slice %19 {offsets = [1, 0], sizes = [1, 32], strides = [1, 1]} : vector<10x32xf32> to vector<1x32xf32>
    %22 = vector.extract_strided_slice %19 {offsets = [2, 0], sizes = [1, 32], strides = [1, 1]} : vector<10x32xf32> to vector<1x32xf32>
    %23 = vector.extract_strided_slice %19 {offsets = [3, 0], sizes = [1, 16], strides = [1, 1]} : vector<10x32xf32> to vector<1x16xf32>
    %24 = vector.extract_strided_slice %19 {offsets = [4, 0], sizes = [1, 32], strides = [1, 1]} : vector<10x32xf32> to vector<1x32xf32>
    %25 = vector.extract_strided_slice %19 {offsets = [5, 0], sizes = [1, 32], strides = [1, 1]} : vector<10x32xf32> to vector<1x32xf32>
    %26 = vector.extract_strided_slice %19 {offsets = [6, 0], sizes = [1, 32], strides = [1, 1]} : vector<10x32xf32> to vector<1x32xf32>
    %27 = vector.extract_strided_slice %19 {offsets = [7, 0], sizes = [1, 32], strides = [1, 1]} : vector<10x32xf32> to vector<1x32xf32>
    %28 = vector.extract_strided_slice %19 {offsets = [8, 0], sizes = [1, 32], strides = [1, 1]} : vector<10x32xf32> to vector<1x32xf32>
    %29 = vector.extract_strided_slice %19 {offsets = [9, 0], sizes = [1, 32], strides = [1, 1]} : vector<10x32xf32> to vector<1x32xf32>
    %30 = tpu.concatenate %27, %28, %29 in 1 : vector<1x32xf32>, vector<1x32xf32>, vector<1x32xf32> -> vector<1x96xf32>
    %c0_11 = arith.constant 0 : index
    %c0_12 = arith.constant 0 : index
    %c0_13 = arith.constant 0 : index
    %31 = vector.load %arg2[%c0_11, %c0_12, %c0_13] : memref<3x32x96xf32, #tpu.memory_space<vmem>>, vector<1x32x96xf32>
    %32 = vector.shape_cast %31 : vector<1x32x96xf32> to vector<32x96xf32>
    %cst_14 = arith.constant dense<0.000000e+00> : vector<16x96xf32>
    %33 = tpu.matmul %17, %32, %cst_14 {dimension_numbers = #tpu.dot_dimension_numbers<[1], [0], [0], [1], [0, 0, 1, 1], [], []>} : vector<16x32xf32>, vector<32x96xf32>, vector<16x96xf32> -> vector<16x96xf32>
    %34 = vector.broadcast %30 : vector<1x96xf32> to vector<16x96xf32>
    %35 = arith.addf %33, %34 : vector<16x96xf32>
    %36 = vector.extract_strided_slice %35 {offsets = [0, 0], sizes = [16, 8], strides = [1, 1]} : vector<16x96xf32> to vector<16x8xf32>
    %37 = vector.shape_cast %36 : vector<16x8xf32> to vector<2x8x8xf32>
    %38 = vector.extract_strided_slice %35 {offsets = [0, 8], sizes = [16, 8], strides = [1, 1]} : vector<16x96xf32> to vector<16x8xf32>
    %39 = vector.shape_cast %38 : vector<16x8xf32> to vector<2x8x8xf32>
    %40 = vector.extract_strided_slice %35 {offsets = [0, 16], sizes = [16, 8], strides = [1, 1]} : vector<16x96xf32> to vector<16x8xf32>
    %41 = vector.shape_cast %40 : vector<16x8xf32> to vector<2x8x8xf32>
    %42 = vector.extract_strided_slice %35 {offsets = [0, 24], sizes = [16, 8], strides = [1, 1]} : vector<16x96xf32> to vector<16x8xf32>
    %43 = vector.shape_cast %42 : vector<16x8xf32> to vector<2x8x8xf32>
    %44 = tpu.concatenate %37, %39, %41, %43 in 0 : vector<2x8x8xf32>, vector<2x8x8xf32>, vector<2x8x8xf32>, vector<2x8x8xf32> -> vector<8x8x8xf32>
    %45 = vector.extract_strided_slice %35 {offsets = [0, 32], sizes = [16, 8], strides = [1, 1]} : vector<16x96xf32> to vector<16x8xf32>
    %46 = vector.shape_cast %45 : vector<16x8xf32> to vector<2x8x8xf32>
    %47 = vector.extract_strided_slice %35 {offsets = [0, 40], sizes = [16, 8], strides = [1, 1]} : vector<16x96xf32> to vector<16x8xf32>
    %48 = vector.shape_cast %47 : vector<16x8xf32> to vector<2x8x8xf32>
    %49 = vector.extract_strided_slice %35 {offsets = [0, 48], sizes = [16, 8], strides = [1, 1]} : vector<16x96xf32> to vector<16x8xf32>
    %50 = vector.shape_cast %49 : vector<16x8xf32> to vector<2x8x8xf32>
    %51 = vector.extract_strided_slice %35 {offsets = [0, 56], sizes = [16, 8], strides = [1, 1]} : vector<16x96xf32> to vector<16x8xf32>
    %52 = vector.shape_cast %51 : vector<16x8xf32> to vector<2x8x8xf32>
    %53 = tpu.concatenate %46, %48, %50, %52 in 0 : vector<2x8x8xf32>, vector<2x8x8xf32>, vector<2x8x8xf32>, vector<2x8x8xf32> -> vector<8x8x8xf32>
    %54 = vector.extract_strided_slice %35 {offsets = [0, 64], sizes = [16, 8], strides = [1, 1]} : vector<16x96xf32> to vector<16x8xf32>
    %55 = vector.shape_cast %54 : vector<16x8xf32> to vector<2x8x8xf32>
    %56 = vector.extract_strided_slice %35 {offsets = [0, 72], sizes = [16, 8], strides = [1, 1]} : vector<16x96xf32> to vector<16x8xf32>
    %57 = vector.shape_cast %56 : vector<16x8xf32> to vector<2x8x8xf32>
    %58 = vector.extract_strided_slice %35 {offsets = [0, 80], sizes = [16, 8], strides = [1, 1]} : vector<16x96xf32> to vector<16x8xf32>
    %59 = vector.shape_cast %58 : vector<16x8xf32> to vector<2x8x8xf32>
    %60 = vector.extract_strided_slice %35 {offsets = [0, 88], sizes = [16, 8], strides = [1, 1]} : vector<16x96xf32> to vector<16x8xf32>
    %61 = vector.shape_cast %60 : vector<16x8xf32> to vector<2x8x8xf32>
    %62 = tpu.concatenate %55, %57, %59, %61 in 0 : vector<2x8x8xf32>, vector<2x8x8xf32>, vector<2x8x8xf32>, vector<2x8x8xf32> -> vector<8x8x8xf32>
    "tpu.trace_start"() <{level = 10 : i32, message = "nqd,nkd->nqk"}> : () -> ()
    %cst_15 = arith.constant dense<0.000000e+00> : vector<8x8x8xf32>
    %63 = tpu.matmul %44, %53, %cst_15 {dimension_numbers = #tpu.dot_dimension_numbers<[2], [2], [1], [1], [0, 0, 0, 1, 1, 1], [0], [0]>} : vector<8x8x8xf32>, vector<8x8x8xf32>, vector<8x8x8xf32> -> vector<8x8x8xf32>
    "tpu.trace_stop"() : () -> ()
    %cst_16 = arith.constant dense<0xFF800000> : vector<8x8xf32>
    %64 = vector.multi_reduction <maximumf>, %63, %cst_16 [2] : vector<8x8x8xf32> to vector<8x8xf32>
    %65 = vector.shape_cast %64 : vector<8x8xf32> to vector<8x8x1xf32>
    %66 = vector.broadcast %65 : vector<8x8x1xf32> to vector<8x8x8xf32>
    %67 = arith.subf %63, %66 : vector<8x8x8xf32>
    %68 = math.exp %67 : vector<8x8x8xf32>
    %cst_17 = arith.constant dense<0.000000e+00> : vector<8x8xf32>
    %69 = vector.multi_reduction <add>, %68, %cst_17 [2] : vector<8x8x8xf32> to vector<8x8xf32>
    %70 = vector.shape_cast %69 : vector<8x8xf32> to vector<8x8x1xf32>
    %71 = vector.broadcast %70 : vector<8x8x1xf32> to vector<8x8x8xf32>
    %72 = arith.divf %68, %71 : vector<8x8x8xf32>
    "tpu.trace_start"() <{level = 10 : i32, message = "nqk,nkd->nqd"}> : () -> ()
    %cst_18 = arith.constant dense<0.000000e+00> : vector<8x8x8xf32>
    %73 = tpu.matmul %72, %62, %cst_18 {dimension_numbers = #tpu.dot_dimension_numbers<[2], [1], [1], [2], [0, 0, 0, 1, 1, 2], [0], [0]>} : vector<8x8x8xf32>, vector<8x8x8xf32>, vector<8x8x8xf32> -> vector<8x8x8xf32>
    "tpu.trace_stop"() : () -> ()
    %74 = vector.extract_strided_slice %73 {offsets = [0, 0, 0], sizes = [2, 8, 8], strides = [1, 1, 1]} : vector<8x8x8xf32> to vector<2x8x8xf32>
    %75 = vector.shape_cast %74 : vector<2x8x8xf32> to vector<16x8xf32>
    %76 = vector.extract_strided_slice %73 {offsets = [2, 0, 0], sizes = [2, 8, 8], strides = [1, 1, 1]} : vector<8x8x8xf32> to vector<2x8x8xf32>
    %77 = vector.shape_cast %76 : vector<2x8x8xf32> to vector<16x8xf32>
    %78 = vector.extract_strided_slice %73 {offsets = [4, 0, 0], sizes = [2, 8, 8], strides = [1, 1, 1]} : vector<8x8x8xf32> to vector<2x8x8xf32>
    %79 = vector.shape_cast %78 : vector<2x8x8xf32> to vector<16x8xf32>
    %80 = vector.extract_strided_slice %73 {offsets = [6, 0, 0], sizes = [2, 8, 8], strides = [1, 1, 1]} : vector<8x8x8xf32> to vector<2x8x8xf32>
    %81 = vector.shape_cast %80 : vector<2x8x8xf32> to vector<16x8xf32>
    %82 = tpu.concatenate %75, %77, %79, %81 in 1 : vector<16x8xf32>, vector<16x8xf32>, vector<16x8xf32>, vector<16x8xf32> -> vector<16x32xf32>
    %c0_19 = arith.constant 0 : index
    %c0_20 = arith.constant 0 : index
    %c0_21 = arith.constant 0 : index
    %83 = vector.load %arg3[%c0_19, %c0_20, %c0_21] : memref<3x32x32xf32, #tpu.memory_space<vmem>>, vector<1x32x32xf32>
    %84 = vector.shape_cast %83 : vector<1x32x32xf32> to vector<32x32xf32>
    %cst_22 = arith.constant dense<0.000000e+00> : vector<16x32xf32>
    %85 = tpu.matmul %82, %84, %cst_22 {dimension_numbers = #tpu.dot_dimension_numbers<[1], [0], [0], [1], [0, 0, 1, 1], [], []>} : vector<16x32xf32>, vector<32x32xf32>, vector<16x32xf32> -> vector<16x32xf32>
    %86 = vector.broadcast %20 : vector<1x32xf32> to vector<16x32xf32>
    %87 = arith.addf %85, %86 : vector<16x32xf32>
    %88 = arith.addf %17, %87 : vector<16x32xf32>
    %cst_23 = arith.constant dense<0.000000e+00> : vector<16xf32>
    %89 = vector.multi_reduction <add>, %88, %cst_23 [1] : vector<16x32xf32> to vector<16xf32>
    %90 = vector.shape_cast %89 : vector<16xf32> to vector<16x1xf32>
    %cst_24 = arith.constant 3.200000e+01 : f32
    %91 = vector.broadcast %cst_24 : f32 to vector<16x1xf32>
    %92 = arith.divf %90, %91 : vector<16x1xf32>
    %93 = vector.broadcast %92 : vector<16x1xf32> to vector<16x32xf32>
    %94 = arith.subf %88, %93 : vector<16x32xf32>
    %95 = arith.mulf %94, %94 : vector<16x32xf32>
    %cst_25 = arith.constant dense<0.000000e+00> : vector<16xf32>
    %96 = vector.multi_reduction <add>, %95, %cst_25 [1] : vector<16x32xf32> to vector<16xf32>
    %97 = vector.shape_cast %96 : vector<16xf32> to vector<16x1xf32>
    %cst_26 = arith.constant 3.200000e+01 : f32
    %98 = vector.broadcast %cst_26 : f32 to vector<16x1xf32>
    %99 = arith.divf %97, %98 : vector<16x1xf32>
    %100 = vector.broadcast %92 : vector<16x1xf32> to vector<16x32xf32>
    %101 = arith.subf %88, %100 : vector<16x32xf32>
    %cst_27 = arith.constant 9.99999974E-6 : f32
    %102 = vector.broadcast %cst_27 : f32 to vector<16x1xf32>
    %103 = arith.addf %99, %102 : vector<16x1xf32>
    %104 = math.rsqrt %103 : vector<16x1xf32>
    %105 = vector.broadcast %104 : vector<16x1xf32> to vector<16x32xf32>
    %106 = arith.mulf %101, %105 : vector<16x32xf32>
    %107 = vector.broadcast %21 : vector<1x32xf32> to vector<16x32xf32>
    %108 = arith.mulf %106, %107 : vector<16x32xf32>
    %109 = vector.broadcast %22 : vector<1x32xf32> to vector<16x32xf32>
    %110 = arith.addf %108, %109 : vector<16x32xf32>
    %c0_28 = arith.constant 0 : index
    %c0_29 = arith.constant 0 : index
    %c0_30 = arith.constant 0 : index
    %111 = vector.load %arg4[%c0_28, %c0_29, %c0_30] : memref<3x32x16xf32, #tpu.memory_space<vmem>>, vector<1x32x16xf32>
    %112 = vector.shape_cast %111 : vector<1x32x16xf32> to vector<32x16xf32>
    %cst_31 = arith.constant dense<0.000000e+00> : vector<16x16xf32>
    %113 = tpu.matmul %110, %112, %cst_31 {dimension_numbers = #tpu.dot_dimension_numbers<[1], [0], [0], [1], [0, 0, 1, 1], [], []>} : vector<16x32xf32>, vector<32x16xf32>, vector<16x16xf32> -> vector<16x16xf32>
    %114 = vector.broadcast %23 : vector<1x16xf32> to vector<16x16xf32>
    %115 = arith.addf %113, %114 : vector<16x16xf32>
    %cst_32 = arith.constant 0.000000e+00 : f32
    %116 = vector.broadcast %cst_32 : f32 to vector<16x16xf32>
    %117 = arith.maximumf %115, %116 : vector<16x16xf32>
    %c0_33 = arith.constant 0 : index
    %c0_34 = arith.constant 0 : index
    %c0_35 = arith.constant 0 : index
    %118 = vector.load %arg5[%c0_33, %c0_34, %c0_35] : memref<3x16x32xf32, #tpu.memory_space<vmem>>, vector<1x16x32xf32>
    %119 = vector.shape_cast %118 : vector<1x16x32xf32> to vector<16x32xf32>
    %cst_36 = arith.constant dense<0.000000e+00> : vector<16x32xf32>
    %120 = tpu.matmul %117, %119, %cst_36 {dimension_numbers = #tpu.dot_dimension_numbers<[1], [0], [0], [1], [0, 0, 1, 1], [], []>} : vector<16x16xf32>, vector<16x32xf32>, vector<16x32xf32> -> vector<16x32xf32>
    %121 = vector.broadcast %24 : vector<1x32xf32> to vector<16x32xf32>
    %122 = arith.addf %120, %121 : vector<16x32xf32>
    %123 = arith.addf %110, %122 : vector<16x32xf32>
    %cst_37 = arith.constant dense<0.000000e+00> : vector<16xf32>
    %124 = vector.multi_reduction <add>, %123, %cst_37 [1] : vector<16x32xf32> to vector<16xf32>
    %125 = vector.shape_cast %124 : vector<16xf32> to vector<16x1xf32>
    %cst_38 = arith.constant 3.200000e+01 : f32
    %126 = vector.broadcast %cst_38 : f32 to vector<16x1xf32>
    %127 = arith.divf %125, %126 : vector<16x1xf32>
    %128 = vector.broadcast %127 : vector<16x1xf32> to vector<16x32xf32>
    %129 = arith.subf %123, %128 : vector<16x32xf32>
    %130 = arith.mulf %129, %129 : vector<16x32xf32>
    %cst_39 = arith.constant dense<0.000000e+00> : vector<16xf32>
    %131 = vector.multi_reduction <add>, %130, %cst_39 [1] : vector<16x32xf32> to vector<16xf32>
    %132 = vector.shape_cast %131 : vector<16xf32> to vector<16x1xf32>
    %cst_40 = arith.constant 3.200000e+01 : f32
    %133 = vector.broadcast %cst_40 : f32 to vector<16x1xf32>
    %134 = arith.divf %132, %133 : vector<16x1xf32>
    %135 = vector.broadcast %127 : vector<16x1xf32> to vector<16x32xf32>
    %136 = arith.subf %123, %135 : vector<16x32xf32>
    %cst_41 = arith.constant 9.99999974E-6 : f32
    %137 = vector.broadcast %cst_41 : f32 to vector<16x1xf32>
    %138 = arith.addf %134, %137 : vector<16x1xf32>
    %139 = math.rsqrt %138 : vector<16x1xf32>
    %140 = vector.broadcast %139 : vector<16x1xf32> to vector<16x32xf32>
    %141 = arith.mulf %136, %140 : vector<16x32xf32>
    %142 = vector.broadcast %25 : vector<1x32xf32> to vector<16x32xf32>
    %143 = arith.mulf %141, %142 : vector<16x32xf32>
    %144 = vector.broadcast %26 : vector<1x32xf32> to vector<16x32xf32>
    %145 = arith.addf %143, %144 : vector<16x32xf32>
    %c1 = arith.constant 1 : index
    %c0_42 = arith.constant 0 : index
    %c0_43 = arith.constant 0 : index
    %146 = vector.load %arg6[%c1, %c0_42, %c0_43] : memref<3x10x32xf32, #tpu.memory_space<vmem>>, vector<1x10x32xf32>
    %147 = vector.shape_cast %146 : vector<1x10x32xf32> to vector<10x32xf32>
    %148 = vector.extract_strided_slice %147 {offsets = [0, 0], sizes = [1, 32], strides = [1, 1]} : vector<10x32xf32> to vector<1x32xf32>
    %149 = vector.extract_strided_slice %147 {offsets = [1, 0], sizes = [1, 32], strides = [1, 1]} : vector<10x32xf32> to vector<1x32xf32>
    %150 = vector.extract_strided_slice %147 {offsets = [2, 0], sizes = [1, 32], strides = [1, 1]} : vector<10x32xf32> to vector<1x32xf32>
    %151 = vector.extract_strided_slice %147 {offsets = [3, 0], sizes = [1, 16], strides = [1, 1]} : vector<10x32xf32> to vector<1x16xf32>
    %152 = vector.extract_strided_slice %147 {offsets = [4, 0], sizes = [1, 32], strides = [1, 1]} : vector<10x32xf32> to vector<1x32xf32>
    %153 = vector.extract_strided_slice %147 {offsets = [5, 0], sizes = [1, 32], strides = [1, 1]} : vector<10x32xf32> to vector<1x32xf32>
    %154 = vector.extract_strided_slice %147 {offsets = [6, 0], sizes = [1, 32], strides = [1, 1]} : vector<10x32xf32> to vector<1x32xf32>
    %155 = vector.extract_strided_slice %147 {offsets = [7, 0], sizes = [1, 32], strides = [1, 1]} : vector<10x32xf32> to vector<1x32xf32>
    %156 = vector.extract_strided_slice %147 {offsets = [8, 0], sizes = [1, 32], strides = [1, 1]} : vector<10x32xf32> to vector<1x32xf32>
    %157 = vector.extract_strided_slice %147 {offsets = [9, 0], sizes = [1, 32], strides = [1, 1]} : vector<10x32xf32> to vector<1x32xf32>
    %158 = tpu.concatenate %155, %156, %157 in 1 : vector<1x32xf32>, vector<1x32xf32>, vector<1x32xf32> -> vector<1x96xf32>
    %c1_44 = arith.constant 1 : index
    %c0_45 = arith.constant 0 : index
    %c0_46 = arith.constant 0 : index
    %159 = vector.load %arg2[%c1_44, %c0_45, %c0_46] : memref<3x32x96xf32, #tpu.memory_space<vmem>>, vector<1x32x96xf32>
    %160 = vector.shape_cast %159 : vector<1x32x96xf32> to vector<32x96xf32>
    %cst_47 = arith.constant dense<0.000000e+00> : vector<16x96xf32>
    %161 = tpu.matmul %145, %160, %cst_47 {dimension_numbers = #tpu.dot_dimension_numbers<[1], [0], [0], [1], [0, 0, 1, 1], [], []>} : vector<16x32xf32>, vector<32x96xf32>, vector<16x96xf32> -> vector<16x96xf32>
    %162 = vector.broadcast %158 : vector<1x96xf32> to vector<16x96xf32>
    %163 = arith.addf %161, %162 : vector<16x96xf32>
    %164 = vector.extract_strided_slice %163 {offsets = [0, 0], sizes = [16, 8], strides = [1, 1]} : vector<16x96xf32> to vector<16x8xf32>
    %165 = vector.shape_cast %164 : vector<16x8xf32> to vector<2x8x8xf32>
    %166 = vector.extract_strided_slice %163 {offsets = [0, 8], sizes = [16, 8], strides = [1, 1]} : vector<16x96xf32> to vector<16x8xf32>
    %167 = vector.shape_cast %166 : vector<16x8xf32> to vector<2x8x8xf32>
    %168 = vector.extract_strided_slice %163 {offsets = [0, 16], sizes = [16, 8], strides = [1, 1]} : vector<16x96xf32> to vector<16x8xf32>
    %169 = vector.shape_cast %168 : vector<16x8xf32> to vector<2x8x8xf32>
    %170 = vector.extract_strided_slice %163 {offsets = [0, 24], sizes = [16, 8], strides = [1, 1]} : vector<16x96xf32> to vector<16x8xf32>
    %171 = vector.shape_cast %170 : vector<16x8xf32> to vector<2x8x8xf32>
    %172 = tpu.concatenate %165, %167, %169, %171 in 0 : vector<2x8x8xf32>, vector<2x8x8xf32>, vector<2x8x8xf32>, vector<2x8x8xf32> -> vector<8x8x8xf32>
    %173 = vector.extract_strided_slice %163 {offsets = [0, 32], sizes = [16, 8], strides = [1, 1]} : vector<16x96xf32> to vector<16x8xf32>
    %174 = vector.shape_cast %173 : vector<16x8xf32> to vector<2x8x8xf32>
    %175 = vector.extract_strided_slice %163 {offsets = [0, 40], sizes = [16, 8], strides = [1, 1]} : vector<16x96xf32> to vector<16x8xf32>
    %176 = vector.shape_cast %175 : vector<16x8xf32> to vector<2x8x8xf32>
    %177 = vector.extract_strided_slice %163 {offsets = [0, 48], sizes = [16, 8], strides = [1, 1]} : vector<16x96xf32> to vector<16x8xf32>
    %178 = vector.shape_cast %177 : vector<16x8xf32> to vector<2x8x8xf32>
    %179 = vector.extract_strided_slice %163 {offsets = [0, 56], sizes = [16, 8], strides = [1, 1]} : vector<16x96xf32> to vector<16x8xf32>
    %180 = vector.shape_cast %179 : vector<16x8xf32> to vector<2x8x8xf32>
    %181 = tpu.concatenate %174, %176, %178, %180 in 0 : vector<2x8x8xf32>, vector<2x8x8xf32>, vector<2x8x8xf32>, vector<2x8x8xf32> -> vector<8x8x8xf32>
    %182 = vector.extract_strided_slice %163 {offsets = [0, 64], sizes = [16, 8], strides = [1, 1]} : vector<16x96xf32> to vector<16x8xf32>
    %183 = vector.shape_cast %182 : vector<16x8xf32> to vector<2x8x8xf32>
    %184 = vector.extract_strided_slice %163 {offsets = [0, 72], sizes = [16, 8], strides = [1, 1]} : vector<16x96xf32> to vector<16x8xf32>
    %185 = vector.shape_cast %184 : vector<16x8xf32> to vector<2x8x8xf32>
    %186 = vector.extract_strided_slice %163 {offsets = [0, 80], sizes = [16, 8], strides = [1, 1]} : vector<16x96xf32> to vector<16x8xf32>
    %187 = vector.shape_cast %186 : vector<16x8xf32> to vector<2x8x8xf32>
    %188 = vector.extract_strided_slice %163 {offsets = [0, 88], sizes = [16, 8], strides = [1, 1]} : vector<16x96xf32> to vector<16x8xf32>
    %189 = vector.shape_cast %188 : vector<16x8xf32> to vector<2x8x8xf32>
    %190 = tpu.concatenate %183, %185, %187, %189 in 0 : vector<2x8x8xf32>, vector<2x8x8xf32>, vector<2x8x8xf32>, vector<2x8x8xf32> -> vector<8x8x8xf32>
    "tpu.trace_start"() <{level = 10 : i32, message = "nqd,nkd->nqk"}> : () -> ()
    %cst_48 = arith.constant dense<0.000000e+00> : vector<8x8x8xf32>
    %191 = tpu.matmul %172, %181, %cst_48 {dimension_numbers = #tpu.dot_dimension_numbers<[2], [2], [1], [1], [0, 0, 0, 1, 1, 1], [0], [0]>} : vector<8x8x8xf32>, vector<8x8x8xf32>, vector<8x8x8xf32> -> vector<8x8x8xf32>
    "tpu.trace_stop"() : () -> ()
    %cst_49 = arith.constant dense<0xFF800000> : vector<8x8xf32>
    %192 = vector.multi_reduction <maximumf>, %191, %cst_49 [2] : vector<8x8x8xf32> to vector<8x8xf32>
    %193 = vector.shape_cast %192 : vector<8x8xf32> to vector<8x8x1xf32>
    %194 = vector.broadcast %193 : vector<8x8x1xf32> to vector<8x8x8xf32>
    %195 = arith.subf %191, %194 : vector<8x8x8xf32>
    %196 = math.exp %195 : vector<8x8x8xf32>
    %cst_50 = arith.constant dense<0.000000e+00> : vector<8x8xf32>
    %197 = vector.multi_reduction <add>, %196, %cst_50 [2] : vector<8x8x8xf32> to vector<8x8xf32>
    %198 = vector.shape_cast %197 : vector<8x8xf32> to vector<8x8x1xf32>
    %199 = vector.broadcast %198 : vector<8x8x1xf32> to vector<8x8x8xf32>
    %200 = arith.divf %196, %199 : vector<8x8x8xf32>
    "tpu.trace_start"() <{level = 10 : i32, message = "nqk,nkd->nqd"}> : () -> ()
    %cst_51 = arith.constant dense<0.000000e+00> : vector<8x8x8xf32>
    %201 = tpu.matmul %200, %190, %cst_51 {dimension_numbers = #tpu.dot_dimension_numbers<[2], [1], [1], [2], [0, 0, 0, 1, 1, 2], [0], [0]>} : vector<8x8x8xf32>, vector<8x8x8xf32>, vector<8x8x8xf32> -> vector<8x8x8xf32>
    "tpu.trace_stop"() : () -> ()
    %202 = vector.extract_strided_slice %201 {offsets = [0, 0, 0], sizes = [2, 8, 8], strides = [1, 1, 1]} : vector<8x8x8xf32> to vector<2x8x8xf32>
    %203 = vector.shape_cast %202 : vector<2x8x8xf32> to vector<16x8xf32>
    %204 = vector.extract_strided_slice %201 {offsets = [2, 0, 0], sizes = [2, 8, 8], strides = [1, 1, 1]} : vector<8x8x8xf32> to vector<2x8x8xf32>
    %205 = vector.shape_cast %204 : vector<2x8x8xf32> to vector<16x8xf32>
    %206 = vector.extract_strided_slice %201 {offsets = [4, 0, 0], sizes = [2, 8, 8], strides = [1, 1, 1]} : vector<8x8x8xf32> to vector<2x8x8xf32>
    %207 = vector.shape_cast %206 : vector<2x8x8xf32> to vector<16x8xf32>
    %208 = vector.extract_strided_slice %201 {offsets = [6, 0, 0], sizes = [2, 8, 8], strides = [1, 1, 1]} : vector<8x8x8xf32> to vector<2x8x8xf32>
    %209 = vector.shape_cast %208 : vector<2x8x8xf32> to vector<16x8xf32>
    %210 = tpu.concatenate %203, %205, %207, %209 in 1 : vector<16x8xf32>, vector<16x8xf32>, vector<16x8xf32>, vector<16x8xf32> -> vector<16x32xf32>
    %c1_52 = arith.constant 1 : index
    %c0_53 = arith.constant 0 : index
    %c0_54 = arith.constant 0 : index
    %211 = vector.load %arg3[%c1_52, %c0_53, %c0_54] : memref<3x32x32xf32, #tpu.memory_space<vmem>>, vector<1x32x32xf32>
    %212 = vector.shape_cast %211 : vector<1x32x32xf32> to vector<32x32xf32>
    %cst_55 = arith.constant dense<0.000000e+00> : vector<16x32xf32>
    %213 = tpu.matmul %210, %212, %cst_55 {dimension_numbers = #tpu.dot_dimension_numbers<[1], [0], [0], [1], [0, 0, 1, 1], [], []>} : vector<16x32xf32>, vector<32x32xf32>, vector<16x32xf32> -> vector<16x32xf32>
    %214 = vector.broadcast %148 : vector<1x32xf32> to vector<16x32xf32>
    %215 = arith.addf %213, %214 : vector<16x32xf32>
    %216 = arith.addf %145, %215 : vector<16x32xf32>
    %cst_56 = arith.constant dense<0.000000e+00> : vector<16xf32>
    %217 = vector.multi_reduction <add>, %216, %cst_56 [1] : vector<16x32xf32> to vector<16xf32>
    %218 = vector.shape_cast %217 : vector<16xf32> to vector<16x1xf32>
    %cst_57 = arith.constant 3.200000e+01 : f32
    %219 = vector.broadcast %cst_57 : f32 to vector<16x1xf32>
    %220 = arith.divf %218, %219 : vector<16x1xf32>
    %221 = vector.broadcast %220 : vector<16x1xf32> to vector<16x32xf32>
    %222 = arith.subf %216, %221 : vector<16x32xf32>
    %223 = arith.mulf %222, %222 : vector<16x32xf32>
    %cst_58 = arith.constant dense<0.000000e+00> : vector<16xf32>
    %224 = vector.multi_reduction <add>, %223, %cst_58 [1] : vector<16x32xf32> to vector<16xf32>
    %225 = vector.shape_cast %224 : vector<16xf32> to vector<16x1xf32>
    %cst_59 = arith.constant 3.200000e+01 : f32
    %226 = vector.broadcast %cst_59 : f32 to vector<16x1xf32>
    %227 = arith.divf %225, %226 : vector<16x1xf32>
    %228 = vector.broadcast %220 : vector<16x1xf32> to vector<16x32xf32>
    %229 = arith.subf %216, %228 : vector<16x32xf32>
    %cst_60 = arith.constant 9.99999974E-6 : f32
    %230 = vector.broadcast %cst_60 : f32 to vector<16x1xf32>
    %231 = arith.addf %227, %230 : vector<16x1xf32>
    %232 = math.rsqrt %231 : vector<16x1xf32>
    %233 = vector.broadcast %232 : vector<16x1xf32> to vector<16x32xf32>
    %234 = arith.mulf %229, %233 : vector<16x32xf32>
    %235 = vector.broadcast %149 : vector<1x32xf32> to vector<16x32xf32>
    %236 = arith.mulf %234, %235 : vector<16x32xf32>
    %237 = vector.broadcast %150 : vector<1x32xf32> to vector<16x32xf32>
    %238 = arith.addf %236, %237 : vector<16x32xf32>
    %c1_61 = arith.constant 1 : index
    %c0_62 = arith.constant 0 : index
    %c0_63 = arith.constant 0 : index
    %239 = vector.load %arg4[%c1_61, %c0_62, %c0_63] : memref<3x32x16xf32, #tpu.memory_space<vmem>>, vector<1x32x16xf32>
    %240 = vector.shape_cast %239 : vector<1x32x16xf32> to vector<32x16xf32>
    %cst_64 = arith.constant dense<0.000000e+00> : vector<16x16xf32>
    %241 = tpu.matmul %238, %240, %cst_64 {dimension_numbers = #tpu.dot_dimension_numbers<[1], [0], [0], [1], [0, 0, 1, 1], [], []>} : vector<16x32xf32>, vector<32x16xf32>, vector<16x16xf32> -> vector<16x16xf32>
    %242 = vector.broadcast %151 : vector<1x16xf32> to vector<16x16xf32>
    %243 = arith.addf %241, %242 : vector<16x16xf32>
    %cst_65 = arith.constant 0.000000e+00 : f32
    %244 = vector.broadcast %cst_65 : f32 to vector<16x16xf32>
    %245 = arith.maximumf %243, %244 : vector<16x16xf32>
    %c1_66 = arith.constant 1 : index
    %c0_67 = arith.constant 0 : index
    %c0_68 = arith.constant 0 : index
    %246 = vector.load %arg5[%c1_66, %c0_67, %c0_68] : memref<3x16x32xf32, #tpu.memory_space<vmem>>, vector<1x16x32xf32>
    %247 = vector.shape_cast %246 : vector<1x16x32xf32> to vector<16x32xf32>
    %cst_69 = arith.constant dense<0.000000e+00> : vector<16x32xf32>
    %248 = tpu.matmul %245, %247, %cst_69 {dimension_numbers = #tpu.dot_dimension_numbers<[1], [0], [0], [1], [0, 0, 1, 1], [], []>} : vector<16x16xf32>, vector<16x32xf32>, vector<16x32xf32> -> vector<16x32xf32>
    %249 = vector.broadcast %152 : vector<1x32xf32> to vector<16x32xf32>
    %250 = arith.addf %248, %249 : vector<16x32xf32>
    %251 = arith.addf %238, %250 : vector<16x32xf32>
    %cst_70 = arith.constant dense<0.000000e+00> : vector<16xf32>
    %252 = vector.multi_reduction <add>, %251, %cst_70 [1] : vector<16x32xf32> to vector<16xf32>
    %253 = vector.shape_cast %252 : vector<16xf32> to vector<16x1xf32>
    %cst_71 = arith.constant 3.200000e+01 : f32
    %254 = vector.broadcast %cst_71 : f32 to vector<16x1xf32>
    %255 = arith.divf %253, %254 : vector<16x1xf32>
    %256 = vector.broadcast %255 : vector<16x1xf32> to vector<16x32xf32>
    %257 = arith.subf %251, %256 : vector<16x32xf32>
    %258 = arith.mulf %257, %257 : vector<16x32xf32>
    %cst_72 = arith.constant dense<0.000000e+00> : vector<16xf32>
    %259 = vector.multi_reduction <add>, %258, %cst_72 [1] : vector<16x32xf32> to vector<16xf32>
    %260 = vector.shape_cast %259 : vector<16xf32> to vector<16x1xf32>
    %cst_73 = arith.constant 3.200000e+01 : f32
    %261 = vector.broadcast %cst_73 : f32 to vector<16x1xf32>
    %262 = arith.divf %260, %261 : vector<16x1xf32>
    %263 = vector.broadcast %255 : vector<16x1xf32> to vector<16x32xf32>
    %264 = arith.subf %251, %263 : vector<16x32xf32>
    %cst_74 = arith.constant 9.99999974E-6 : f32
    %265 = vector.broadcast %cst_74 : f32 to vector<16x1xf32>
    %266 = arith.addf %262, %265 : vector<16x1xf32>
    %267 = math.rsqrt %266 : vector<16x1xf32>
    %268 = vector.broadcast %267 : vector<16x1xf32> to vector<16x32xf32>
    %269 = arith.mulf %264, %268 : vector<16x32xf32>
    %270 = vector.broadcast %153 : vector<1x32xf32> to vector<16x32xf32>
    %271 = arith.mulf %269, %270 : vector<16x32xf32>
    %272 = vector.broadcast %154 : vector<1x32xf32> to vector<16x32xf32>
    %273 = arith.addf %271, %272 : vector<16x32xf32>
    %c2 = arith.constant 2 : index
    %c0_75 = arith.constant 0 : index
    %c0_76 = arith.constant 0 : index
    %274 = vector.load %arg6[%c2, %c0_75, %c0_76] : memref<3x10x32xf32, #tpu.memory_space<vmem>>, vector<1x10x32xf32>
    %275 = vector.shape_cast %274 : vector<1x10x32xf32> to vector<10x32xf32>
    %276 = vector.extract_strided_slice %275 {offsets = [0, 0], sizes = [1, 32], strides = [1, 1]} : vector<10x32xf32> to vector<1x32xf32>
    %277 = vector.extract_strided_slice %275 {offsets = [1, 0], sizes = [1, 32], strides = [1, 1]} : vector<10x32xf32> to vector<1x32xf32>
    %278 = vector.extract_strided_slice %275 {offsets = [2, 0], sizes = [1, 32], strides = [1, 1]} : vector<10x32xf32> to vector<1x32xf32>
    %279 = vector.extract_strided_slice %275 {offsets = [3, 0], sizes = [1, 16], strides = [1, 1]} : vector<10x32xf32> to vector<1x16xf32>
    %280 = vector.extract_strided_slice %275 {offsets = [4, 0], sizes = [1, 32], strides = [1, 1]} : vector<10x32xf32> to vector<1x32xf32>
    %281 = vector.extract_strided_slice %275 {offsets = [5, 0], sizes = [1, 32], strides = [1, 1]} : vector<10x32xf32> to vector<1x32xf32>
    %282 = vector.extract_strided_slice %275 {offsets = [6, 0], sizes = [1, 32], strides = [1, 1]} : vector<10x32xf32> to vector<1x32xf32>
    %283 = vector.extract_strided_slice %275 {offsets = [7, 0], sizes = [1, 32], strides = [1, 1]} : vector<10x32xf32> to vector<1x32xf32>
    %284 = vector.extract_strided_slice %275 {offsets = [8, 0], sizes = [1, 32], strides = [1, 1]} : vector<10x32xf32> to vector<1x32xf32>
    %285 = vector.extract_strided_slice %275 {offsets = [9, 0], sizes = [1, 32], strides = [1, 1]} : vector<10x32xf32> to vector<1x32xf32>
    %286 = tpu.concatenate %283, %284, %285 in 1 : vector<1x32xf32>, vector<1x32xf32>, vector<1x32xf32> -> vector<1x96xf32>
    %c2_77 = arith.constant 2 : index
    %c0_78 = arith.constant 0 : index
    %c0_79 = arith.constant 0 : index
    %287 = vector.load %arg2[%c2_77, %c0_78, %c0_79] : memref<3x32x96xf32, #tpu.memory_space<vmem>>, vector<1x32x96xf32>
    %288 = vector.shape_cast %287 : vector<1x32x96xf32> to vector<32x96xf32>
    %cst_80 = arith.constant dense<0.000000e+00> : vector<16x96xf32>
    %289 = tpu.matmul %273, %288, %cst_80 {dimension_numbers = #tpu.dot_dimension_numbers<[1], [0], [0], [1], [0, 0, 1, 1], [], []>} : vector<16x32xf32>, vector<32x96xf32>, vector<16x96xf32> -> vector<16x96xf32>
    %290 = vector.broadcast %286 : vector<1x96xf32> to vector<16x96xf32>
    %291 = arith.addf %289, %290 : vector<16x96xf32>
    %292 = vector.extract_strided_slice %291 {offsets = [0, 0], sizes = [16, 8], strides = [1, 1]} : vector<16x96xf32> to vector<16x8xf32>
    %293 = vector.shape_cast %292 : vector<16x8xf32> to vector<2x8x8xf32>
    %294 = vector.extract_strided_slice %291 {offsets = [0, 8], sizes = [16, 8], strides = [1, 1]} : vector<16x96xf32> to vector<16x8xf32>
    %295 = vector.shape_cast %294 : vector<16x8xf32> to vector<2x8x8xf32>
    %296 = vector.extract_strided_slice %291 {offsets = [0, 16], sizes = [16, 8], strides = [1, 1]} : vector<16x96xf32> to vector<16x8xf32>
    %297 = vector.shape_cast %296 : vector<16x8xf32> to vector<2x8x8xf32>
    %298 = vector.extract_strided_slice %291 {offsets = [0, 24], sizes = [16, 8], strides = [1, 1]} : vector<16x96xf32> to vector<16x8xf32>
    %299 = vector.shape_cast %298 : vector<16x8xf32> to vector<2x8x8xf32>
    %300 = tpu.concatenate %293, %295, %297, %299 in 0 : vector<2x8x8xf32>, vector<2x8x8xf32>, vector<2x8x8xf32>, vector<2x8x8xf32> -> vector<8x8x8xf32>
    %301 = vector.extract_strided_slice %291 {offsets = [0, 32], sizes = [16, 8], strides = [1, 1]} : vector<16x96xf32> to vector<16x8xf32>
    %302 = vector.shape_cast %301 : vector<16x8xf32> to vector<2x8x8xf32>
    %303 = vector.extract_strided_slice %291 {offsets = [0, 40], sizes = [16, 8], strides = [1, 1]} : vector<16x96xf32> to vector<16x8xf32>
    %304 = vector.shape_cast %303 : vector<16x8xf32> to vector<2x8x8xf32>
    %305 = vector.extract_strided_slice %291 {offsets = [0, 48], sizes = [16, 8], strides = [1, 1]} : vector<16x96xf32> to vector<16x8xf32>
    %306 = vector.shape_cast %305 : vector<16x8xf32> to vector<2x8x8xf32>
    %307 = vector.extract_strided_slice %291 {offsets = [0, 56], sizes = [16, 8], strides = [1, 1]} : vector<16x96xf32> to vector<16x8xf32>
    %308 = vector.shape_cast %307 : vector<16x8xf32> to vector<2x8x8xf32>
    %309 = tpu.concatenate %302, %304, %306, %308 in 0 : vector<2x8x8xf32>, vector<2x8x8xf32>, vector<2x8x8xf32>, vector<2x8x8xf32> -> vector<8x8x8xf32>
    %310 = vector.extract_strided_slice %291 {offsets = [0, 64], sizes = [16, 8], strides = [1, 1]} : vector<16x96xf32> to vector<16x8xf32>
    %311 = vector.shape_cast %310 : vector<16x8xf32> to vector<2x8x8xf32>
    %312 = vector.extract_strided_slice %291 {offsets = [0, 72], sizes = [16, 8], strides = [1, 1]} : vector<16x96xf32> to vector<16x8xf32>
    %313 = vector.shape_cast %312 : vector<16x8xf32> to vector<2x8x8xf32>
    %314 = vector.extract_strided_slice %291 {offsets = [0, 80], sizes = [16, 8], strides = [1, 1]} : vector<16x96xf32> to vector<16x8xf32>
    %315 = vector.shape_cast %314 : vector<16x8xf32> to vector<2x8x8xf32>
    %316 = vector.extract_strided_slice %291 {offsets = [0, 88], sizes = [16, 8], strides = [1, 1]} : vector<16x96xf32> to vector<16x8xf32>
    %317 = vector.shape_cast %316 : vector<16x8xf32> to vector<2x8x8xf32>
    %318 = tpu.concatenate %311, %313, %315, %317 in 0 : vector<2x8x8xf32>, vector<2x8x8xf32>, vector<2x8x8xf32>, vector<2x8x8xf32> -> vector<8x8x8xf32>
    "tpu.trace_start"() <{level = 10 : i32, message = "nqd,nkd->nqk"}> : () -> ()
    %cst_81 = arith.constant dense<0.000000e+00> : vector<8x8x8xf32>
    %319 = tpu.matmul %300, %309, %cst_81 {dimension_numbers = #tpu.dot_dimension_numbers<[2], [2], [1], [1], [0, 0, 0, 1, 1, 1], [0], [0]>} : vector<8x8x8xf32>, vector<8x8x8xf32>, vector<8x8x8xf32> -> vector<8x8x8xf32>
    "tpu.trace_stop"() : () -> ()
    %cst_82 = arith.constant dense<0xFF800000> : vector<8x8xf32>
    %320 = vector.multi_reduction <maximumf>, %319, %cst_82 [2] : vector<8x8x8xf32> to vector<8x8xf32>
    %321 = vector.shape_cast %320 : vector<8x8xf32> to vector<8x8x1xf32>
    %322 = vector.broadcast %321 : vector<8x8x1xf32> to vector<8x8x8xf32>
    %323 = arith.subf %319, %322 : vector<8x8x8xf32>
    %324 = math.exp %323 : vector<8x8x8xf32>
    %cst_83 = arith.constant dense<0.000000e+00> : vector<8x8xf32>
    %325 = vector.multi_reduction <add>, %324, %cst_83 [2] : vector<8x8x8xf32> to vector<8x8xf32>
    %326 = vector.shape_cast %325 : vector<8x8xf32> to vector<8x8x1xf32>
    %327 = vector.broadcast %326 : vector<8x8x1xf32> to vector<8x8x8xf32>
    %328 = arith.divf %324, %327 : vector<8x8x8xf32>
    "tpu.trace_start"() <{level = 10 : i32, message = "nqk,nkd->nqd"}> : () -> ()
    %cst_84 = arith.constant dense<0.000000e+00> : vector<8x8x8xf32>
    %329 = tpu.matmul %328, %318, %cst_84 {dimension_numbers = #tpu.dot_dimension_numbers<[2], [1], [1], [2], [0, 0, 0, 1, 1, 2], [0], [0]>} : vector<8x8x8xf32>, vector<8x8x8xf32>, vector<8x8x8xf32> -> vector<8x8x8xf32>
    "tpu.trace_stop"() : () -> ()
    %330 = vector.extract_strided_slice %329 {offsets = [0, 0, 0], sizes = [2, 8, 8], strides = [1, 1, 1]} : vector<8x8x8xf32> to vector<2x8x8xf32>
    %331 = vector.shape_cast %330 : vector<2x8x8xf32> to vector<16x8xf32>
    %332 = vector.extract_strided_slice %329 {offsets = [2, 0, 0], sizes = [2, 8, 8], strides = [1, 1, 1]} : vector<8x8x8xf32> to vector<2x8x8xf32>
    %333 = vector.shape_cast %332 : vector<2x8x8xf32> to vector<16x8xf32>
    %334 = vector.extract_strided_slice %329 {offsets = [4, 0, 0], sizes = [2, 8, 8], strides = [1, 1, 1]} : vector<8x8x8xf32> to vector<2x8x8xf32>
    %335 = vector.shape_cast %334 : vector<2x8x8xf32> to vector<16x8xf32>
    %336 = vector.extract_strided_slice %329 {offsets = [6, 0, 0], sizes = [2, 8, 8], strides = [1, 1, 1]} : vector<8x8x8xf32> to vector<2x8x8xf32>
    %337 = vector.shape_cast %336 : vector<2x8x8xf32> to vector<16x8xf32>
    %338 = tpu.concatenate %331, %333, %335, %337 in 1 : vector<16x8xf32>, vector<16x8xf32>, vector<16x8xf32>, vector<16x8xf32> -> vector<16x32xf32>
    %c2_85 = arith.constant 2 : index
    %c0_86 = arith.constant 0 : index
    %c0_87 = arith.constant 0 : index
    %339 = vector.load %arg3[%c2_85, %c0_86, %c0_87] : memref<3x32x32xf32, #tpu.memory_space<vmem>>, vector<1x32x32xf32>
    %340 = vector.shape_cast %339 : vector<1x32x32xf32> to vector<32x32xf32>
    %cst_88 = arith.constant dense<0.000000e+00> : vector<16x32xf32>
    %341 = tpu.matmul %338, %340, %cst_88 {dimension_numbers = #tpu.dot_dimension_numbers<[1], [0], [0], [1], [0, 0, 1, 1], [], []>} : vector<16x32xf32>, vector<32x32xf32>, vector<16x32xf32> -> vector<16x32xf32>
    %342 = vector.broadcast %276 : vector<1x32xf32> to vector<16x32xf32>
    %343 = arith.addf %341, %342 : vector<16x32xf32>
    %344 = arith.addf %273, %343 : vector<16x32xf32>
    %cst_89 = arith.constant dense<0.000000e+00> : vector<16xf32>
    %345 = vector.multi_reduction <add>, %344, %cst_89 [1] : vector<16x32xf32> to vector<16xf32>
    %346 = vector.shape_cast %345 : vector<16xf32> to vector<16x1xf32>
    %cst_90 = arith.constant 3.200000e+01 : f32
    %347 = vector.broadcast %cst_90 : f32 to vector<16x1xf32>
    %348 = arith.divf %346, %347 : vector<16x1xf32>
    %349 = vector.broadcast %348 : vector<16x1xf32> to vector<16x32xf32>
    %350 = arith.subf %344, %349 : vector<16x32xf32>
    %351 = arith.mulf %350, %350 : vector<16x32xf32>
    %cst_91 = arith.constant dense<0.000000e+00> : vector<16xf32>
    %352 = vector.multi_reduction <add>, %351, %cst_91 [1] : vector<16x32xf32> to vector<16xf32>
    %353 = vector.shape_cast %352 : vector<16xf32> to vector<16x1xf32>
    %cst_92 = arith.constant 3.200000e+01 : f32
    %354 = vector.broadcast %cst_92 : f32 to vector<16x1xf32>
    %355 = arith.divf %353, %354 : vector<16x1xf32>
    %356 = vector.broadcast %348 : vector<16x1xf32> to vector<16x32xf32>
    %357 = arith.subf %344, %356 : vector<16x32xf32>
    %cst_93 = arith.constant 9.99999974E-6 : f32
    %358 = vector.broadcast %cst_93 : f32 to vector<16x1xf32>
    %359 = arith.addf %355, %358 : vector<16x1xf32>
    %360 = math.rsqrt %359 : vector<16x1xf32>
    %361 = vector.broadcast %360 : vector<16x1xf32> to vector<16x32xf32>
    %362 = arith.mulf %357, %361 : vector<16x32xf32>
    %363 = vector.broadcast %277 : vector<1x32xf32> to vector<16x32xf32>
    %364 = arith.mulf %362, %363 : vector<16x32xf32>
    %365 = vector.broadcast %278 : vector<1x32xf32> to vector<16x32xf32>
    %366 = arith.addf %364, %365 : vector<16x32xf32>
    %c2_94 = arith.constant 2 : index
    %c0_95 = arith.constant 0 : index
    %c0_96 = arith.constant 0 : index
    %367 = vector.load %arg4[%c2_94, %c0_95, %c0_96] : memref<3x32x16xf32, #tpu.memory_space<vmem>>, vector<1x32x16xf32>
    %368 = vector.shape_cast %367 : vector<1x32x16xf32> to vector<32x16xf32>
    %cst_97 = arith.constant dense<0.000000e+00> : vector<16x16xf32>
    %369 = tpu.matmul %366, %368, %cst_97 {dimension_numbers = #tpu.dot_dimension_numbers<[1], [0], [0], [1], [0, 0, 1, 1], [], []>} : vector<16x32xf32>, vector<32x16xf32>, vector<16x16xf32> -> vector<16x16xf32>
    %370 = vector.broadcast %279 : vector<1x16xf32> to vector<16x16xf32>
    %371 = arith.addf %369, %370 : vector<16x16xf32>
    %cst_98 = arith.constant 0.000000e+00 : f32
    %372 = vector.broadcast %cst_98 : f32 to vector<16x16xf32>
    %373 = arith.maximumf %371, %372 : vector<16x16xf32>
    %c2_99 = arith.constant 2 : index
    %c0_100 = arith.constant 0 : index
    %c0_101 = arith.constant 0 : index
    %374 = vector.load %arg5[%c2_99, %c0_100, %c0_101] : memref<3x16x32xf32, #tpu.memory_space<vmem>>, vector<1x16x32xf32>
    %375 = vector.shape_cast %374 : vector<1x16x32xf32> to vector<16x32xf32>
    %cst_102 = arith.constant dense<0.000000e+00> : vector<16x32xf32>
    %376 = tpu.matmul %373, %375, %cst_102 {dimension_numbers = #tpu.dot_dimension_numbers<[1], [0], [0], [1], [0, 0, 1, 1], [], []>} : vector<16x16xf32>, vector<16x32xf32>, vector<16x32xf32> -> vector<16x32xf32>
    %377 = vector.broadcast %280 : vector<1x32xf32> to vector<16x32xf32>
    %378 = arith.addf %376, %377 : vector<16x32xf32>
    %379 = arith.addf %366, %378 : vector<16x32xf32>
    %cst_103 = arith.constant dense<0.000000e+00> : vector<16xf32>
    %380 = vector.multi_reduction <add>, %379, %cst_103 [1] : vector<16x32xf32> to vector<16xf32>
    %381 = vector.shape_cast %380 : vector<16xf32> to vector<16x1xf32>
    %cst_104 = arith.constant 3.200000e+01 : f32
    %382 = vector.broadcast %cst_104 : f32 to vector<16x1xf32>
    %383 = arith.divf %381, %382 : vector<16x1xf32>
    %384 = vector.broadcast %383 : vector<16x1xf32> to vector<16x32xf32>
    %385 = arith.subf %379, %384 : vector<16x32xf32>
    %386 = arith.mulf %385, %385 : vector<16x32xf32>
    %cst_105 = arith.constant dense<0.000000e+00> : vector<16xf32>
    %387 = vector.multi_reduction <add>, %386, %cst_105 [1] : vector<16x32xf32> to vector<16xf32>
    %388 = vector.shape_cast %387 : vector<16xf32> to vector<16x1xf32>
    %cst_106 = arith.constant 3.200000e+01 : f32
    %389 = vector.broadcast %cst_106 : f32 to vector<16x1xf32>
    %390 = arith.divf %388, %389 : vector<16x1xf32>
    %391 = vector.broadcast %383 : vector<16x1xf32> to vector<16x32xf32>
    %392 = arith.subf %379, %391 : vector<16x32xf32>
    %cst_107 = arith.constant 9.99999974E-6 : f32
    %393 = vector.broadcast %cst_107 : f32 to vector<16x1xf32>
    %394 = arith.addf %390, %393 : vector<16x1xf32>
    %395 = math.rsqrt %394 : vector<16x1xf32>
    %396 = vector.broadcast %395 : vector<16x1xf32> to vector<16x32xf32>
    %397 = arith.mulf %392, %396 : vector<16x32xf32>
    %398 = vector.broadcast %281 : vector<1x32xf32> to vector<16x32xf32>
    %399 = arith.mulf %397, %398 : vector<16x32xf32>
    %400 = vector.broadcast %282 : vector<1x32xf32> to vector<16x32xf32>
    %401 = arith.addf %399, %400 : vector<16x32xf32>
    %402 = vector.shape_cast %401 : vector<16x32xf32> to vector<2x8x32xf32>
    %403 = vector.extract_strided_slice %402 {offsets = [0, 0, 0], sizes = [2, 1, 32], strides = [1, 1, 1]} : vector<2x8x32xf32> to vector<2x1x32xf32>
    %404 = vector.shape_cast %403 : vector<2x1x32xf32> to vector<2x32xf32>
    %405 = vector.extract_strided_slice %402 {offsets = [0, 1, 0], sizes = [2, 1, 32], strides = [1, 1, 1]} : vector<2x8x32xf32> to vector<2x1x32xf32>
    %406 = vector.shape_cast %405 : vector<2x1x32xf32> to vector<2x32xf32>
    %407 = vector.extract_strided_slice %402 {offsets = [0, 2, 0], sizes = [2, 1, 32], strides = [1, 1, 1]} : vector<2x8x32xf32> to vector<2x1x32xf32>
    %408 = vector.shape_cast %407 : vector<2x1x32xf32> to vector<2x32xf32>
    %409 = vector.extract_strided_slice %402 {offsets = [0, 3, 0], sizes = [2, 1, 32], strides = [1, 1, 1]} : vector<2x8x32xf32> to vector<2x1x32xf32>
    %410 = vector.shape_cast %409 : vector<2x1x32xf32> to vector<2x32xf32>
    %411 = vector.extract_strided_slice %402 {offsets = [0, 4, 0], sizes = [2, 1, 32], strides = [1, 1, 1]} : vector<2x8x32xf32> to vector<2x1x32xf32>
    %412 = vector.shape_cast %411 : vector<2x1x32xf32> to vector<2x32xf32>
    %413 = vector.extract_strided_slice %402 {offsets = [0, 5, 0], sizes = [2, 1, 32], strides = [1, 1, 1]} : vector<2x8x32xf32> to vector<2x1x32xf32>
    %414 = vector.shape_cast %413 : vector<2x1x32xf32> to vector<2x32xf32>
    %415 = vector.extract_strided_slice %402 {offsets = [0, 6, 0], sizes = [2, 1, 32], strides = [1, 1, 1]} : vector<2x8x32xf32> to vector<2x1x32xf32>
    %416 = vector.shape_cast %415 : vector<2x1x32xf32> to vector<2x32xf32>
    %417 = vector.extract_strided_slice %402 {offsets = [0, 7, 0], sizes = [2, 1, 32], strides = [1, 1, 1]} : vector<2x8x32xf32> to vector<2x1x32xf32>
    %418 = vector.shape_cast %417 : vector<2x1x32xf32> to vector<2x32xf32>
    %419 = tpu.concatenate %404, %406, %408, %410, %412, %414, %416, %418 in 1 : vector<2x32xf32>, vector<2x32xf32>, vector<2x32xf32>, vector<2x32xf32>, vector<2x32xf32>, vector<2x32xf32>, vector<2x32xf32>, vector<2x32xf32> -> vector<2x256xf32>
    %cst_108 = arith.constant dense<0.000000e+00> : vector<2x32xf32>
    %420 = tpu.matmul %419, %3, %cst_108 {dimension_numbers = #tpu.dot_dimension_numbers<[1], [0], [0], [1], [0, 0, 1, 1], [], []>} : vector<2x256xf32>, vector<256x32xf32>, vector<2x32xf32> -> vector<2x32xf32>
    %421 = vector.broadcast %7 : vector<1x32xf32> to vector<2x32xf32>
    %422 = arith.addf %420, %421 : vector<2x32xf32>
    %cst_109 = arith.constant dense<0.000000e+00> : vector<2x32xf32>
    %423 = tpu.matmul %422, %4, %cst_109 {dimension_numbers = #tpu.dot_dimension_numbers<[1], [0], [0], [1], [0, 0, 1, 1], [], []>} : vector<2x32xf32>, vector<32x32xf32>, vector<2x32xf32> -> vector<2x32xf32>
    %424 = vector.broadcast %8 : vector<1x32xf32> to vector<2x32xf32>
    %425 = arith.addf %423, %424 : vector<2x32xf32>
    %426 = vector.extract_strided_slice %425 {offsets = [0, 0], sizes = [2, 4], strides = [1, 1]} : vector<2x32xf32> to vector<2x4xf32>
    %c0_110 = arith.constant 0 : index
    %c0_111 = arith.constant 0 : index
    %427 = vector.load %arg7[%c0_110, %c0_111] : memref<2x4xf32, #tpu.memory_space<vmem>>, vector<2x4xf32>
    tpu.vector_store %arg7[%c0_110, %c0_111], %426 {strides = array<i32>} : memref<2x4xf32, #tpu.memory_space<vmem>>, vector<2x4xf32>,
    return
  }
}

</mosaic_0001>

<llo_original>
// kernel: tpu_custom_call.1
$region0: #{tpu_custom_call.1}
  #allocation0 [shape = 'u32[]', space=smem, size = 0x4, offset = 0x4, fixed_abs, tag = 'smem constant byte address 0x4 - core index']
  #allocation1 [shape = 'u32[72,128]{1,0:T(1,128)}', space=vmem, size = 0x9000, scoped, tag = 'internal scratch']
  %s0 = inlined_call_operand.vmem [shape: f32[2,8,4], index: 0, kind: input, shape index: {}]
  %s1 = inlined_call_operand.vmem [shape: f32[312,32], index: 1, kind: input, shape index: {}]
  %s2 = inlined_call_operand.vmem [shape: f32[3,32,96], index: 2, kind: input, shape index: {}]
  %s3 = inlined_call_operand.vmem [shape: f32[3,32,32], index: 3, kind: input, shape index: {}]
  %s4 = inlined_call_operand.vmem [shape: f32[3,32,16], index: 4, kind: input, shape index: {}]
  %s5 = inlined_call_operand.vmem [shape: f32[3,16,32], index: 5, kind: input, shape index: {}]
  %s6 = inlined_call_operand.vmem [shape: f32[3,10,32], index: 6, kind: input, shape index: {}]
  %s7 = inlined_call_operand.hbm [shape: f32[2,4], index: 7, kind: output, shape index: {}]
  %s8 = sld [smem:[#allocation0]]
  $region38: #{tpu_custom_call.1} parent=0
    _
  %s10 = ssub.s32 1, %s8
  %s11 = scalar_select 0, %s10, %s8
  $region1: #{tpu_custom_call.1} parent=0
    #allocation2 [shape = 'u8[1024]{0}', space=vmem, size = 0x400, scoped, tag = 'output window, operand 0, single buffered']
    #allocation3 [shape = 's32[1]{0}', space=sflag, size = 0x4, scoped, tag = 'scoped memory for tpu_custom_call.1']
    %12 = vsyncpa [#allocation3], 0
    // Predicated region
    $region2: #{tpu_custom_call.1} parent=1 // pred_check
      _
    $region3: #{tpu_custom_call.1} parent=1 // pred_check_branch
      %14 = sbr.rel (0) target = $region5
    $region4: #{tpu_custom_call.1} parent=1 // pred_region
      _
    $region5: #{tpu_custom_call.1} parent=1 // pred_fallthru
      _
    // Predicated region
    $region6: #{tpu_custom_call.1} parent=1 // pred_check
      _
    $region7: #{tpu_custom_call.1} parent=1 // pred_check_branch
      %16 = sbr.rel (0) target = $region9
    $region8: #{tpu_custom_call.1} parent=1 // pred_region
      _
    $region9: #{tpu_custom_call.1} parent=1 // pred_fallthru
      _
    // Predicated region
    $region10: #{tpu_custom_call.1} parent=1 // pred_check
      _
    $region11: #{tpu_custom_call.1} parent=1 // pred_check_branch
      %18 = sbr.rel (0) target = $region13
    $region12: #{tpu_custom_call.1} parent=1 // pred_region
      _
    $region13: #{tpu_custom_call.1} parent=1 // pred_fallthru
      _
    // Predicated region
    $region14: #{tpu_custom_call.1} parent=1 // pred_check
      _
    $region15: #{tpu_custom_call.1} parent=1 // pred_check_branch
      %20 = sbr.rel (0) target = $region17
    $region16: #{tpu_custom_call.1} parent=1 // pred_region
      _
    $region17: #{tpu_custom_call.1} parent=1 // pred_fallthru
      _
    // Predicated region
    $region18: #{tpu_custom_call.1} parent=1 // pred_check
      _
    $region19: #{tpu_custom_call.1} parent=1 // pred_check_branch
      %22 = sbr.rel (0) target = $region21
    $region20: #{tpu_custom_call.1} parent=1 // pred_region
      _
    $region21: #{tpu_custom_call.1} parent=1 // pred_fallthru
      _
    // Predicated region
    $region22: #{tpu_custom_call.1} parent=1 // pred_check
      _
    $region23: #{tpu_custom_call.1} parent=1 // pred_check_branch
      %24 = sbr.rel (0) target = $region25
    $region24: #{tpu_custom_call.1} parent=1 // pred_region
      _
    $region25: #{tpu_custom_call.1} parent=1 // pred_fallthru
      _
    // Predicated region
    $region26: #{tpu_custom_call.1} parent=1 // pred_check
      _
    $region27: #{tpu_custom_call.1} parent=1 // pred_check_branch
      %26 = sbr.rel (0) target = $region29
    $region28: #{tpu_custom_call.1} parent=1 // pred_region
      _
    $region29: #{tpu_custom_call.1} parent=1 // pred_fallthru
      _
    %v27 = vld [vmem:[%s0] sm:$0xff]
    %v28 = vld [vmem:[%s0 + $0x8] sm:$0xff]
    %v29 = vld [vmem:[%s1] sm:$0xf]
    %v30 = vld [vmem:[%s1 + $0x8] sm:$0xff]
    %v31 = vld [vmem:[%s1 + $0x10] sm:$0xff]
    %v32 = vld [vmem:[%s1 + $0x18] sm:$0xff]
    %v33 = vld [vmem:[%s1 + $0x20] sm:$0xff]
    %v34 = vld [vmem:[%s1 + $0x28] sm:$0xff]
    %v35 = vld [vmem:[%s1 + $0x30] sm:$0xff]
    %v36 = vld [vmem:[%s1 + $0x38] sm:$0xff]
    %v37 = vld [vmem:[%s1 + $0x40] sm:$0xff]
    %v38 = vld [vmem:[%s1 + $0x48] sm:$0xff]
    %v39 = vld [vmem:[%s1 + $0x50] sm:$0xff]
    %v40 = vld [vmem:[%s1 + $0x58] sm:$0xff]
    %v41 = vld [vmem:[%s1 + $0x60] sm:$0xff]
    %v42 = vld [vmem:[%s1 + $0x68] sm:$0xff]
    %v43 = vld [vmem:[%s1 + $0x70] sm:$0xff]
    %v44 = vld [vmem:[%s1 + $0x78] sm:$0xff]
    %v45 = vld [vmem:[%s1 + $0x80] sm:$0xff]
    %v46 = vld [vmem:[%s1 + $0x88] sm:$0xff]
    %v47 = vld [vmem:[%s1 + $0x90] sm:$0xff]
    %v48 = vld [vmem:[%s1 + $0x98] sm:$0xff]
    %v49 = vld [vmem:[%s1 + $0xa0] sm:$0xff]
    %v50 = vld [vmem:[%s1 + $0xa8] sm:$0xff]
    %v51 = vld [vmem:[%s1 + $0xb0] sm:$0xff]
    %v52 = vld [vmem:[%s1 + $0xb8] sm:$0xff]
    %v53 = vld [vmem:[%s1 + $0xc0] sm:$0xff]
    %v54 = vld [vmem:[%s1 + $0xc8] sm:$0xff]
    %v55 = vld [vmem:[%s1 + $0xd0] sm:$0xff]
    %v56 = vld [vmem:[%s1 + $0xd8] sm:$0xff]
    %v57 = vld [vmem:[%s1 + $0xe0] sm:$0xff]
    %v58 = vld [vmem:[%s1 + $0xe8] sm:$0xff]
    %v59 = vld [vmem:[%s1 + $0xf0] sm:$0xff]
    %v60 = vld [vmem:[%s1 + $0xf8] sm:$0xff]
    %v61 = vld [vmem:[%s1 + $0x100] sm:$0xff]
    %v62 = vld [vmem:[%s1 + $0x108] sm:$0xff]
    %v63 = vld [vmem:[%s1 + $0x110] sm:$0xff]
    %v64 = vld [vmem:[%s1 + $0x118] sm:$0xff]
    %v65 = vld [vmem:[%s1 + $0x120] sm:$0xff]
    %v66 = vld [vmem:[%s1 + $0x128] sm:$0xff]
    %v67 = vld [vmem:[%s1 + $0x130] sm:$0xff]
    %v68 = vperm.slane %v67, 0
    %vm69 = vcmask 31744
    %v71 = vsel %vm69, %v27, 0
    %v74 = vsel %vm69, %v28, 0
    %vm76 = vcmask 1043456
    %v78 = vsel %vm76, %v29, 0
    %80 = vmatpush.msra.mxu0 0.0
    %81 = vmatpush.msra.mxu0 0.0
    %82 = vmatpush.msra.mxu0 0.0
    %83 = vmatpush.msra.mxu0 0.0
    %84 = vmatpush.msra.mxu0 0.0
    %85 = vmatpush.msra.mxu0 0.0
    %86 = vmatpush.msra.mxu0 0.0
    %87 = vmatpush.msra.mxu0 0.0
    %88 = vmatpush.msra.mxu0 0.0
    %89 = vmatpush.msra.mxu0 0.0
    %90 = vmatpush.msra.mxu0 0.0
    %91 = vmatpush.msra.mxu0 0.0
    %92 = vmatpush.msra.mxu0 0.0
    %93 = vmatpush.msra.mxu0 0.0
    %94 = vmatpush.msra.mxu0 0.0
    %95 = vmatpush.msra.mxu0 %v78
    %96 = vmatmul.f32.gmra.mxu0 %v71
    %v97 = vpop.f32.mrf.mxu0
    %v98 = vadd.f32 %v68, %v97
    %99 = vmatmul.f32.gmra.mxu0 %v74
    %v100 = vpop.f32.mrf.mxu0
    %v101 = vadd.f32 %v68, %v100
    %102 = vdwg.mxu0
    %v103 = vadd.f32 %v98, %v30
    %v104 = vadd.f32 %v101, %v30
    %v105 = vld [vmem:[%s6] sm:$0xff]
    %v106 = vld [vmem:[%s6 + $0x8] sm:$0x3]
    %v108 = vrot.slane %v106, 1
    %109 = vrot.lane.b32.xlu0 %v108, 32
    %v110 = vpop.permute.xlu0 %109
    %v112 = vrot.slane %v106, 2
    %113 = vrot.lane.b32.xlu0 %v112, 64
    %v114 = vpop.permute.xlu0 %113
    %vm116 = vcmask 261120
    %v117 = vsel %vm116, %v105, %v110
    %vm118 = vcmask 523264
    %v119 = vsel %vm118, %v117, %v114
    %v120 = vld [vmem:[%s2] sm:$0xff]
    %v121 = vld [vmem:[%s2 + $0x8] sm:$0xff]
    %v122 = vld [vmem:[%s2 + $0x10] sm:$0xff]
    %v123 = vld [vmem:[%s2 + $0x18] sm:$0xff]
    %v124 = vperm.slane %v119, 7
    %v126 = vsel %vm116, %v103, 0
    %v129 = vsel %vm116, %v104, 0
    %131 = vmatpush.msra.mxu0 0.0
    %132 = vmatpush.msra.mxu0 0.0
    %133 = vmatpush.msra.mxu0 0.0
    %134 = vmatpush.msra.mxu0 0.0
    %135 = vmatpush.msra.mxu0 0.0
    %136 = vmatpush.msra.mxu0 0.0
    %137 = vmatpush.msra.mxu0 0.0
    %138 = vmatpush.msra.mxu0 0.0
    %139 = vmatpush.msra.mxu0 0.0
    %140 = vmatpush.msra.mxu0 0.0
    %141 = vmatpush.msra.mxu0 0.0
    %142 = vmatpush.msra.mxu0 0.0
    %143 = vmatpush.msra.mxu0 %v123
    %144 = vmatpush.msra.mxu0 %v122
    %145 = vmatpush.msra.mxu0 %v121
    %146 = vmatpush.msra.mxu0 %v120
    %147 = vmatmul.f32.gmra.mxu0 %v126
    %v148 = vpop.f32.mrf.mxu0
    %v149 = vadd.f32 %v124, %v148
    %150 = vmatmul.f32.gmra.mxu0 %v129
    %v151 = vpop.f32.mrf.mxu0
    %v152 = vadd.f32 %v124, %v151
    %153 = vdwg.mxu0
    %156 = vrot.lane.b32.xlu0 %v149, 120
    %v157 = vpop.permute.xlu0 %156
    %158 = vrot.lane.b32.xlu0 %v152, 120
    %v159 = vpop.permute.xlu0 %158
    %160 = vrot.lane.b32.xlu0 %v149, 112
    %v161 = vpop.permute.xlu0 %160
    %162 = vrot.lane.b32.xlu0 %v152, 112
    %v163 = vpop.permute.xlu0 %162
    %164 = vrot.lane.b32.xlu0 %v149, 104
    %v165 = vpop.permute.xlu0 %164
    %166 = vrot.lane.b32.xlu0 %v152, 104
    %v167 = vpop.permute.xlu0 %166
    %168 = vrot.lane.b32.xlu0 %v149, 96
    %v169 = vpop.permute.xlu0 %168
    %vm170 = vcmask 64512
    %v171 = vsel %vm170, %v149, 0
    %v173 = vsel %vm170, %v169, 0
    %175 = vmatpush.xpose.msra.mxu0 0.0
    %176 = vmatpush.xpose.msra.mxu0 0.0
    %177 = vmatpush.xpose.msra.mxu0 0.0
    %178 = vmatpush.xpose.msra.mxu0 0.0
    %179 = vmatpush.xpose.msra.mxu0 0.0
    %180 = vmatpush.xpose.msra.mxu0 0.0
    %181 = vmatpush.xpose.msra.mxu0 0.0
    %182 = vmatpush.xpose.msra.mxu0 0.0
    %183 = vmatpush.xpose.msra.mxu0 0.0
    %184 = vmatpush.xpose.msra.mxu0 0.0
    %185 = vmatpush.xpose.msra.mxu0 0.0
    %186 = vmatpush.xpose.msra.mxu0 0.0
    %187 = vmatpush.xpose.msra.mxu0 0.0
    %188 = vmatpush.xpose.msra.mxu0 0.0
    %189 = vmatpush.xpose.msra.mxu0 0.0
    %190 = vmatpush.xpose.msra.mxu0 %v173
    %191 = vmatmul.f32.gmra.mxu0 %v171
    %v192 = vpop.f32.mrf.mxu0
    %v193 = vadd.f32 0.0, %v192
    %194 = vdwg.mxu0
    %195 = vrot.lane.b32.xlu0 %v152, 96
    %v196 = vpop.permute.xlu0 %195
    %v197 = vsel %vm170, %v152, 0
    %v199 = vsel %vm170, %v196, 0
    %201 = vmatpush.xpose.msra.mxu0 0.0
    %202 = vmatpush.xpose.msra.mxu0 0.0
    %203 = vmatpush.xpose.msra.mxu0 0.0
    %204 = vmatpush.xpose.msra.mxu0 0.0
    %205 = vmatpush.xpose.msra.mxu0 0.0
    %206 = vmatpush.xpose.msra.mxu0 0.0
    %207 = vmatpush.xpose.msra.mxu0 0.0
    %208 = vmatpush.xpose.msra.mxu0 0.0
    %209 = vmatpush.xpose.msra.mxu0 0.0
    %210 = vmatpush.xpose.msra.mxu0 0.0
    %211 = vmatpush.xpose.msra.mxu0 0.0
    %212 = vmatpush.xpose.msra.mxu0 0.0
    %213 = vmatpush.xpose.msra.mxu0 0.0
    %214 = vmatpush.xpose.msra.mxu0 0.0
    %215 = vmatpush.xpose.msra.mxu0 0.0
    %216 = vmatpush.xpose.msra.mxu0 %v199
    %217 = vmatmul.f32.gmra.mxu0 %v197
    %v218 = vpop.f32.mrf.mxu0
    %v219 = vadd.f32 0.0, %v218
    %220 = vdwg.mxu0
    %221 = vrot.lane.b32.xlu0 %v157, 96
    %v222 = vpop.permute.xlu0 %221
    %v223 = vsel %vm170, %v157, 0
    %v225 = vsel %vm170, %v222, 0
    %227 = vmatpush.xpose.msra.mxu0 0.0
    %228 = vmatpush.xpose.msra.mxu0 0.0
    %229 = vmatpush.xpose.msra.mxu0 0.0
    %230 = vmatpush.xpose.msra.mxu0 0.0
    %231 = vmatpush.xpose.msra.mxu0 0.0
    %232 = vmatpush.xpose.msra.mxu0 0.0
    %233 = vmatpush.xpose.msra.mxu0 0.0
    %234 = vmatpush.xpose.msra.mxu0 0.0
    %235 = vmatpush.xpose.msra.mxu0 0.0
    %236 = vmatpush.xpose.msra.mxu0 0.0
    %237 = vmatpush.xpose.msra.mxu0 0.0
    %238 = vmatpush.xpose.msra.mxu0 0.0
    %239 = vmatpush.xpose.msra.mxu0 0.0
    %240 = vmatpush.xpose.msra.mxu0 0.0
    %241 = vmatpush.xpose.msra.mxu0 0.0
    %242 = vmatpush.xpose.msra.mxu0 %v225
    %243 = vmatmul.f32.gmra.mxu0 %v223
    %v244 = vpop.f32.mrf.mxu0
    %v245 = vadd.f32 0.0, %v244
    %246 = vdwg.mxu0
    %247 = vrot.lane.b32.xlu0 %v159, 96
    %v248 = vpop.permute.xlu0 %247
    %v249 = vsel %vm170, %v159, 0
    %v251 = vsel %vm170, %v248, 0
    %253 = vmatpush.xpose.msra.mxu0 0.0
    %254 = vmatpush.xpose.msra.mxu0 0.0
    %255 = vmatpush.xpose.msra.mxu0 0.0
    %256 = vmatpush.xpose.msra.mxu0 0.0
    %257 = vmatpush.xpose.msra.mxu0 0.0
    %258 = vmatpush.xpose.msra.mxu0 0.0
    %259 = vmatpush.xpose.msra.mxu0 0.0
    %260 = vmatpush.xpose.msra.mxu0 0.0
    %261 = vmatpush.xpose.msra.mxu0 0.0
    %262 = vmatpush.xpose.msra.mxu0 0.0
    %263 = vmatpush.xpose.msra.mxu0 0.0
    %264 = vmatpush.xpose.msra.mxu0 0.0
    %265 = vmatpush.xpose.msra.mxu0 0.0
    %266 = vmatpush.xpose.msra.mxu0 0.0
    %267 = vmatpush.xpose.msra.mxu0 0.0
    %268 = vmatpush.xpose.msra.mxu0 %v251
    %269 = vmatmul.f32.gmra.mxu0 %v249
    %v270 = vpop.f32.mrf.mxu0
    %v271 = vadd.f32 0.0, %v270
    %272 = vdwg.mxu0
    %273 = vrot.lane.b32.xlu0 %v161, 96
    %v274 = vpop.permute.xlu0 %273
    %v275 = vsel %vm170, %v161, 0
    %v277 = vsel %vm170, %v274, 0
    %279 = vmatpush.xpose.msra.mxu0 0.0
    %280 = vmatpush.xpose.msra.mxu0 0.0
    %281 = vmatpush.xpose.msra.mxu0 0.0
    %282 = vmatpush.xpose.msra.mxu0 0.0
    %283 = vmatpush.xpose.msra.mxu0 0.0
    %284 = vmatpush.xpose.msra.mxu0 0.0
    %285 = vmatpush.xpose.msra.mxu0 0.0
    %286 = vmatpush.xpose.msra.mxu0 0.0
    %287 = vmatpush.xpose.msra.mxu0 0.0
    %288 = vmatpush.xpose.msra.mxu0 0.0
    %289 = vmatpush.xpose.msra.mxu0 0.0
    %290 = vmatpush.xpose.msra.mxu0 0.0
    %291 = vmatpush.xpose.msra.mxu0 0.0
    %292 = vmatpush.xpose.msra.mxu0 0.0
    %293 = vmatpush.xpose.msra.mxu0 0.0
    %294 = vmatpush.xpose.msra.mxu0 %v277
    %295 = vmatmul.f32.gmra.mxu0 %v275
    %v296 = vpop.f32.mrf.mxu0
    %v297 = vadd.f32 0.0, %v296
    %298 = vdwg.mxu0
    %299 = vrot.lane.b32.xlu0 %v163, 96
    %v300 = vpop.permute.xlu0 %299
    %v301 = vsel %vm170, %v163, 0
    %v303 = vsel %vm170, %v300, 0
    %305 = vmatpush.xpose.msra.mxu0 0.0
    %306 = vmatpush.xpose.msra.mxu0 0.0
    %307 = vmatpush.xpose.msra.mxu0 0.0
    %308 = vmatpush.xpose.msra.mxu0 0.0
    %309 = vmatpush.xpose.msra.mxu0 0.0
    %310 = vmatpush.xpose.msra.mxu0 0.0
    %311 = vmatpush.xpose.msra.mxu0 0.0
    %312 = vmatpush.xpose.msra.mxu0 0.0
    %313 = vmatpush.xpose.msra.mxu0 0.0
    %314 = vmatpush.xpose.msra.mxu0 0.0
    %315 = vmatpush.xpose.msra.mxu0 0.0
    %316 = vmatpush.xpose.msra.mxu0 0.0
    %317 = vmatpush.xpose.msra.mxu0 0.0
    %318 = vmatpush.xpose.msra.mxu0 0.0
    %319 = vmatpush.xpose.msra.mxu0 0.0
    %320 = vmatpush.xpose.msra.mxu0 %v303
    %321 = vmatmul.f32.gmra.mxu0 %v301
    %v322 = vpop.f32.mrf.mxu0
    %v323 = vadd.f32 0.0, %v322
    %324 = vdwg.mxu0
    %325 = vrot.lane.b32.xlu0 %v165, 96
    %v326 = vpop.permute.xlu0 %325
    %v327 = vsel %vm170, %v165, 0
    %v329 = vsel %vm170, %v326, 0
    %331 = vmatpush.xpose.msra.mxu0 0.0
    %332 = vmatpush.xpose.msra.mxu0 0.0
    %333 = vmatpush.xpose.msra.mxu0 0.0
    %334 = vmatpush.xpose.msra.mxu0 0.0
    %335 = vmatpush.xpose.msra.mxu0 0.0
    %336 = vmatpush.xpose.msra.mxu0 0.0
    %337 = vmatpush.xpose.msra.mxu0 0.0
    %338 = vmatpush.xpose.msra.mxu0 0.0
    %339 = vmatpush.xpose.msra.mxu0 0.0
    %340 = vmatpush.xpose.msra.mxu0 0.0
    %341 = vmatpush.xpose.msra.mxu0 0.0
    %342 = vmatpush.xpose.msra.mxu0 0.0
    %343 = vmatpush.xpose.msra.mxu0 0.0
    %344 = vmatpush.xpose.msra.mxu0 0.0
    %345 = vmatpush.xpose.msra.mxu0 0.0
    %346 = vmatpush.xpose.msra.mxu0 %v329
    %347 = vmatmul.f32.gmra.mxu0 %v327
    %v348 = vpop.f32.mrf.mxu0
    %v349 = vadd.f32 0.0, %v348
    %350 = vdwg.mxu0
    %351 = vrot.lane.b32.xlu0 %v167, 96
    %v352 = vpop.permute.xlu0 %351
    %v353 = vsel %vm170, %v167, 0
    %v355 = vsel %vm170, %v352, 0
    %357 = vmatpush.xpose.msra.mxu0 0.0
    %358 = vmatpush.xpose.msra.mxu0 0.0
    %359 = vmatpush.xpose.msra.mxu0 0.0
    %360 = vmatpush.xpose.msra.mxu0 0.0
    %361 = vmatpush.xpose.msra.mxu0 0.0
    %362 = vmatpush.xpose.msra.mxu0 0.0
    %363 = vmatpush.xpose.msra.mxu0 0.0
    %364 = vmatpush.xpose.msra.mxu0 0.0
    %365 = vmatpush.xpose.msra.mxu0 0.0
    %366 = vmatpush.xpose.msra.mxu0 0.0
    %367 = vmatpush.xpose.msra.mxu0 0.0
    %368 = vmatpush.xpose.msra.mxu0 0.0
    %369 = vmatpush.xpose.msra.mxu0 0.0
    %370 = vmatpush.xpose.msra.mxu0 0.0
    %371 = vmatpush.xpose.msra.mxu0 0.0
    %372 = vmatpush.xpose.msra.mxu0 %v355
    %373 = vmatmul.f32.gmra.mxu0 %v353
    %v374 = vpop.f32.mrf.mxu0
    %v375 = vadd.f32 0.0, %v374
    %376 = vdwg.mxu0
    %v377 = vsel %vm170, %v193, -inf
    %378 = vmax.xlane.f32.xlu0 %v377
    %v379 = vpop.xlane.xlu0 %378
    %v380 = vsel %vm170, %v219, -inf
    %381 = vmax.xlane.f32.xlu0 %v380
    %v382 = vpop.xlane.xlu0 %381
    %v383 = vsel %vm170, %v245, -inf
    %384 = vmax.xlane.f32.xlu0 %v383
    %v385 = vpop.xlane.xlu0 %384
    %v386 = vsel %vm170, %v271, -inf
    %387 = vmax.xlane.f32.xlu0 %v386
    %v388 = vpop.xlane.xlu0 %387
    %v389 = vsel %vm170, %v297, -inf
    %390 = vmax.xlane.f32.xlu0 %v389
    %v391 = vpop.xlane.xlu0 %390
    %v392 = vsel %vm170, %v323, -inf
    %393 = vmax.xlane.f32.xlu0 %v392
    %v394 = vpop.xlane.xlu0 %393
    %v395 = vsel %vm170, %v349, -inf
    %396 = vmax.xlane.f32.xlu0 %v395
    %v397 = vpop.xlane.xlu0 %396
    %v398 = vsel %vm170, %v375, -inf
    %399 = vmax.xlane.f32.xlu0 %v398
    %v400 = vpop.xlane.xlu0 %399
    %v401 = vsub.f32 %v193, %v379
    %v402 = vsub.f32 %v219, %v382
    %v403 = vsub.f32 %v245, %v385
    %v404 = vsub.f32 %v271, %v388
    %v405 = vsub.f32 %v297, %v391
    %v406 = vsub.f32 %v323, %v394
    %v407 = vsub.f32 %v349, %v397
    %v408 = vsub.f32 %v375, %v400
    %v409 = vmul.f32 %v401, 1.442695
    %v410 = vpow.pop %v409
    %v411 = vmul.f32 %v402, 1.442695
    %v412 = vpow.pop %v411
    %v413 = vmul.f32 %v403, 1.442695
    %v414 = vpow.pop %v413
    %v415 = vmul.f32 %v404, 1.442695
    %v416 = vpow.pop %v415
    %v417 = vmul.f32 %v405, 1.442695
    %v418 = vpow.pop %v417
    %v419 = vmul.f32 %v406, 1.442695
    %v420 = vpow.pop %v419
    %v421 = vmul.f32 %v407, 1.442695
    %v422 = vpow.pop %v421
    %v423 = vmul.f32 %v408, 1.442695
    %v424 = vpow.pop %v423
    %v425 = vsel %vm170, %v410, 0.0
    %426 = vadd.xlane.f32.xlu0 %v425
    %v427 = vpop.xlane.xlu0 %426
    %v428 = vsel %vm170, %v412, 0.0
    %429 = vadd.xlane.f32.xlu0 %v428
    %v430 = vpop.xlane.xlu0 %429
    %v431 = vsel %vm170, %v414, 0.0
    %432 = vadd.xlane.f32.xlu0 %v431
    %v433 = vpop.xlane.xlu0 %432
    %v434 = vsel %vm170, %v416, 0.0
    %435 = vadd.xlane.f32.xlu0 %v434
    %v436 = vpop.xlane.xlu0 %435
    %v437 = vsel %vm170, %v418, 0.0
    %438 = vadd.xlane.f32.xlu0 %v437
    %v439 = vpop.xlane.xlu0 %438
    %v440 = vsel %vm170, %v420, 0.0
    %441 = vadd.xlane.f32.xlu0 %v440
    %v442 = vpop.xlane.xlu0 %441
    %v443 = vsel %vm170, %v422, 0.0
    %444 = vadd.xlane.f32.xlu0 %v443
    %v445 = vpop.xlane.xlu0 %444
    %v446 = vsel %vm170, %v424, 0.0
    %447 = vadd.xlane.f32.xlu0 %v446
    %v448 = vpop.xlane.xlu0 %447
    %v449 = vrcp.pop %v427
    %v450 = vmul.f32 %v427, %v449
    %v451 = vsub.f32 1.0, %v450
    %v452 = vmul.f32 %v449, %v451
    %v453 = vadd.f32 %v449, %v452
    %vm454 = vweird.f32 %v427
    %vm455 = vweird.f32 %v449
    %vm456 = vmor %vm454, %vm455
    %v457 = vsel %vm456, %v449, %v453
    %v458 = vand.u32 2147483647, %v427
    %vm459 = vcmp.eq.f32.partialorder %v458, 8.507059e+37
    %v460 = vand.u32 %v427, 2147483648
    %v461 = vor.u32 1.1754944e-38, %v460
    %v462 = vsel %vm459, %v461, %v457
    %v463 = vmul.f32 %v410, %v462
    %v464 = vrcp.pop %v430
    %v465 = vmul.f32 %v430, %v464
    %v466 = vsub.f32 1.0, %v465
    %v467 = vmul.f32 %v464, %v466
    %v468 = vadd.f32 %v464, %v467
    %vm469 = vweird.f32 %v430
    %vm470 = vweird.f32 %v464
    %vm471 = vmor %vm469, %vm470
    %v472 = vsel %vm471, %v464, %v468
    %v473 = vand.u32 2147483647, %v430
    %vm474 = vcmp.eq.f32.partialorder %v473, 8.507059e+37
    %v475 = vand.u32 %v430, 2147483648
    %v476 = vor.u32 1.1754944e-38, %v475
    %v477 = vsel %vm474, %v476, %v472
    %v478 = vmul.f32 %v412, %v477
    %v479 = vrcp.pop %v433
    %v480 = vmul.f32 %v433, %v479
    %v481 = vsub.f32 1.0, %v480
    %v482 = vmul.f32 %v479, %v481
    %v483 = vadd.f32 %v479, %v482
    %vm484 = vweird.f32 %v433
    %vm485 = vweird.f32 %v479
    %vm486 = vmor %vm484, %vm485
    %v487 = vsel %vm486, %v479, %v483
    %v488 = vand.u32 2147483647, %v433
    %vm489 = vcmp.eq.f32.partialorder %v488, 8.507059e+37
    %v490 = vand.u32 %v433, 2147483648
    %v491 = vor.u32 1.1754944e-38, %v490
    %v492 = vsel %vm489, %v491, %v487
    %v493 = vmul.f32 %v414, %v492
    %v494 = vrcp.pop %v436
    %v495 = vmul.f32 %v436, %v494
    %v496 = vsub.f32 1.0, %v495
    %v497 = vmul.f32 %v494, %v496
    %v498 = vadd.f32 %v494, %v497
    %vm499 = vweird.f32 %v436
    %vm500 = vweird.f32 %v494
    %vm501 = vmor %vm499, %vm500
    %v502 = vsel %vm501, %v494, %v498
    %v503 = vand.u32 2147483647, %v436
    %vm504 = vcmp.eq.f32.partialorder %v503, 8.507059e+37
    %v505 = vand.u32 %v436, 2147483648
    %v506 = vor.u32 1.1754944e-38, %v505
    %v507 = vsel %vm504, %v506, %v502
    %v508 = vmul.f32 %v416, %v507
    %v509 = vrcp.pop %v439
    %v510 = vmul.f32 %v439, %v509
    %v511 = vsub.f32 1.0, %v510
    %v512 = vmul.f32 %v509, %v511
    %v513 = vadd.f32 %v509, %v512
    %vm514 = vweird.f32 %v439
    %vm515 = vweird.f32 %v509
    %vm516 = vmor %vm514, %vm515
    %v517 = vsel %vm516, %v509, %v513
    %v518 = vand.u32 2147483647, %v439
    %vm519 = vcmp.eq.f32.partialorder %v518, 8.507059e+37
    %v520 = vand.u32 %v439, 2147483648
    %v521 = vor.u32 1.1754944e-38, %v520
    %v522 = vsel %vm519, %v521, %v517
    %v523 = vmul.f32 %v418, %v522
    %v524 = vrcp.pop %v442
    %v525 = vmul.f32 %v442, %v524
    %v526 = vsub.f32 1.0, %v525
    %v527 = vmul.f32 %v524, %v526
    %v528 = vadd.f32 %v524, %v527
    %vm529 = vweird.f32 %v442
    %vm530 = vweird.f32 %v524
    %vm531 = vmor %vm529, %vm530
    %v532 = vsel %vm531, %v524, %v528
    %v533 = vand.u32 2147483647, %v442
    %vm534 = vcmp.eq.f32.partialorder %v533, 8.507059e+37
    %v535 = vand.u32 %v442, 2147483648
    %v536 = vor.u32 1.1754944e-38, %v535
    %v537 = vsel %vm534, %v536, %v532
    %v538 = vmul.f32 %v420, %v537
    %v539 = vrcp.pop %v445
    %v540 = vmul.f32 %v445, %v539
    %v541 = vsub.f32 1.0, %v540
    %v542 = vmul.f32 %v539, %v541
    %v543 = vadd.f32 %v539, %v542
    %vm544 = vweird.f32 %v445
    %vm545 = vweird.f32 %v539
    %vm546 = vmor %vm544, %vm545
    %v547 = vsel %vm546, %v539, %v543
    %v548 = vand.u32 2147483647, %v445
    %vm549 = vcmp.eq.f32.partialorder %v548, 8.507059e+37
    %v550 = vand.u32 %v445, 2147483648
    %v551 = vor.u32 1.1754944e-38, %v550
    %v552 = vsel %vm549, %v551, %v547
    %v553 = vmul.f32 %v422, %v552
    %v554 = vrcp.pop %v448
    %v555 = vmul.f32 %v448, %v554
    %v556 = vsub.f32 1.0, %v555
    %v557 = vmul.f32 %v554, %v556
    %v558 = vadd.f32 %v554, %v557
    %vm559 = vweird.f32 %v448
    %vm560 = vweird.f32 %v554
    %vm561 = vmor %vm559, %vm560
    %v562 = vsel %vm561, %v554, %v558
    %v563 = vand.u32 2147483647, %v448
    %vm564 = vcmp.eq.f32.partialorder %v563, 8.507059e+37
    %v565 = vand.u32 %v448, 2147483648
    %v566 = vor.u32 1.1754944e-38, %v565
    %v567 = vsel %vm564, %v566, %v562
    %v568 = vmul.f32 %v424, %v567
    %569 = vrot.lane.b32.xlu0 %v149, 64
    %v570 = vpop.permute.xlu0 %569
    %v573 = vsel %vm170, %v463, 0
    %575 = vmatpush.msra.mxu0 0.0
    %576 = vmatpush.msra.mxu0 0.0
    %577 = vmatpush.msra.mxu0 0.0
    %578 = vmatpush.msra.mxu0 0.0
    %579 = vmatpush.msra.mxu0 0.0
    %580 = vmatpush.msra.mxu0 0.0
    %581 = vmatpush.msra.mxu0 0.0
    %582 = vmatpush.msra.mxu0 0.0
    %583 = vmatpush.msra.mxu0 0.0
    %584 = vmatpush.msra.mxu0 0.0
    %585 = vmatpush.msra.mxu0 0.0
    %586 = vmatpush.msra.mxu0 0.0
    %587 = vmatpush.msra.mxu0 0.0
    %588 = vmatpush.msra.mxu0 0.0
    %589 = vmatpush.msra.mxu0 0.0
    %590 = vmatpush.msra.mxu0 %v570
    %591 = vmatmul.f32.gmra.mxu0 %v573
    %v592 = vpop.f32.mrf.mxu0
    %v593 = vadd.f32 0.0, %v592
    %594 = vdwg.mxu0
    %595 = vrot.lane.b32.xlu0 %v152, 64
    %v596 = vpop.permute.xlu0 %595
    %v599 = vsel %vm170, %v478, 0
    %601 = vmatpush.msra.mxu0 0.0
    %602 = vmatpush.msra.mxu0 0.0
    %603 = vmatpush.msra.mxu0 0.0
    %604 = vmatpush.msra.mxu0 0.0
    %605 = vmatpush.msra.mxu0 0.0
    %606 = vmatpush.msra.mxu0 0.0
    %607 = vmatpush.msra.mxu0 0.0
    %608 = vmatpush.msra.mxu0 0.0
    %609 = vmatpush.msra.mxu0 0.0
    %610 = vmatpush.msra.mxu0 0.0
    %611 = vmatpush.msra.mxu0 0.0
    %612 = vmatpush.msra.mxu0 0.0
    %613 = vmatpush.msra.mxu0 0.0
    %614 = vmatpush.msra.mxu0 0.0
    %615 = vmatpush.msra.mxu0 0.0
    %616 = vmatpush.msra.mxu0 %v596
    %617 = vmatmul.f32.gmra.mxu0 %v599
    %v618 = vpop.f32.mrf.mxu0
    %v619 = vadd.f32 0.0, %v618
    %620 = vdwg.mxu0
    %621 = vrot.lane.b32.xlu0 %v157, 64
    %v622 = vpop.permute.xlu0 %621
    %v625 = vsel %vm170, %v493, 0
    %627 = vmatpush.msra.mxu0 0.0
    %628 = vmatpush.msra.mxu0 0.0
    %629 = vmatpush.msra.mxu0 0.0
    %630 = vmatpush.msra.mxu0 0.0
    %631 = vmatpush.msra.mxu0 0.0
    %632 = vmatpush.msra.mxu0 0.0
    %633 = vmatpush.msra.mxu0 0.0
    %634 = vmatpush.msra.mxu0 0.0
    %635 = vmatpush.msra.mxu0 0.0
    %636 = vmatpush.msra.mxu0 0.0
    %637 = vmatpush.msra.mxu0 0.0
    %638 = vmatpush.msra.mxu0 0.0
    %639 = vmatpush.msra.mxu0 0.0
    %640 = vmatpush.msra.mxu0 0.0
    %641 = vmatpush.msra.mxu0 0.0
    %642 = vmatpush.msra.mxu0 %v622
    %643 = vmatmul.f32.gmra.mxu0 %v625
    %v644 = vpop.f32.mrf.mxu0
    %v645 = vadd.f32 0.0, %v644
    %646 = vdwg.mxu0
    %647 = vrot.lane.b32.xlu0 %v159, 64
    %v648 = vpop.permute.xlu0 %647
    %v651 = vsel %vm170, %v508, 0
    %653 = vmatpush.msra.mxu0 0.0
    %654 = vmatpush.msra.mxu0 0.0
    %655 = vmatpush.msra.mxu0 0.0
    %656 = vmatpush.msra.mxu0 0.0
    %657 = vmatpush.msra.mxu0 0.0
    %658 = vmatpush.msra.mxu0 0.0
    %659 = vmatpush.msra.mxu0 0.0
    %660 = vmatpush.msra.mxu0 0.0
    %661 = vmatpush.msra.mxu0 0.0
    %662 = vmatpush.msra.mxu0 0.0
    %663 = vmatpush.msra.mxu0 0.0
    %664 = vmatpush.msra.mxu0 0.0
    %665 = vmatpush.msra.mxu0 0.0
    %666 = vmatpush.msra.mxu0 0.0
    %667 = vmatpush.msra.mxu0 0.0
    %668 = vmatpush.msra.mxu0 %v648
    %669 = vmatmul.f32.gmra.mxu0 %v651
    %v670 = vpop.f32.mrf.mxu0
    %v671 = vadd.f32 0.0, %v670
    %672 = vdwg.mxu0
    %673 = vrot.lane.b32.xlu0 %v161, 64
    %v674 = vpop.permute.xlu0 %673
    %v677 = vsel %vm170, %v523, 0
    %679 = vmatpush.msra.mxu0 0.0
    %680 = vmatpush.msra.mxu0 0.0
    %681 = vmatpush.msra.mxu0 0.0
    %682 = vmatpush.msra.mxu0 0.0
    %683 = vmatpush.msra.mxu0 0.0
    %684 = vmatpush.msra.mxu0 0.0
    %685 = vmatpush.msra.mxu0 0.0
    %686 = vmatpush.msra.mxu0 0.0
    %687 = vmatpush.msra.mxu0 0.0
    %688 = vmatpush.msra.mxu0 0.0
    %689 = vmatpush.msra.mxu0 0.0
    %690 = vmatpush.msra.mxu0 0.0
    %691 = vmatpush.msra.mxu0 0.0
    %692 = vmatpush.msra.mxu0 0.0
    %693 = vmatpush.msra.mxu0 0.0
    %694 = vmatpush.msra.mxu0 %v674
    %695 = vmatmul.f32.gmra.mxu0 %v677
    %v696 = vpop.f32.mrf.mxu0
    %v697 = vadd.f32 0.0, %v696
    %698 = vdwg.mxu0
    %699 = vrot.lane.b32.xlu0 %v163, 64
    %v700 = vpop.permute.xlu0 %699
    %v703 = vsel %vm170, %v538, 0
    %705 = vmatpush.msra.mxu0 0.0
    %706 = vmatpush.msra.mxu0 0.0
    %707 = vmatpush.msra.mxu0 0.0
    %708 = vmatpush.msra.mxu0 0.0
    %709 = vmatpush.msra.mxu0 0.0
    %710 = vmatpush.msra.mxu0 0.0
    %711 = vmatpush.msra.mxu0 0.0
    %712 = vmatpush.msra.mxu0 0.0
    %713 = vmatpush.msra.mxu0 0.0
    %714 = vmatpush.msra.mxu0 0.0
    %715 = vmatpush.msra.mxu0 0.0
    %716 = vmatpush.msra.mxu0 0.0
    %717 = vmatpush.msra.mxu0 0.0
    %718 = vmatpush.msra.mxu0 0.0
    %719 = vmatpush.msra.mxu0 0.0
    %720 = vmatpush.msra.mxu0 %v700
    %721 = vmatmul.f32.gmra.mxu0 %v703
    %v722 = vpop.f32.mrf.mxu0
    %v723 = vadd.f32 0.0, %v722
    %724 = vdwg.mxu0
    %725 = vrot.lane.b32.xlu0 %v165, 64
    %v726 = vpop.permute.xlu0 %725
    %v729 = vsel %vm170, %v553, 0
    %731 = vmatpush.msra.mxu0 0.0
    %732 = vmatpush.msra.mxu0 0.0
    %733 = vmatpush.msra.mxu0 0.0
    %734 = vmatpush.msra.mxu0 0.0
    %735 = vmatpush.msra.mxu0 0.0
    %736 = vmatpush.msra.mxu0 0.0
    %737 = vmatpush.msra.mxu0 0.0
    %738 = vmatpush.msra.mxu0 0.0
    %739 = vmatpush.msra.mxu0 0.0
    %740 = vmatpush.msra.mxu0 0.0
    %741 = vmatpush.msra.mxu0 0.0
    %742 = vmatpush.msra.mxu0 0.0
    %743 = vmatpush.msra.mxu0 0.0
    %744 = vmatpush.msra.mxu0 0.0
    %745 = vmatpush.msra.mxu0 0.0
    %746 = vmatpush.msra.mxu0 %v726
    %747 = vmatmul.f32.gmra.mxu0 %v729
    %v748 = vpop.f32.mrf.mxu0
    %v749 = vadd.f32 0.0, %v748
    %750 = vdwg.mxu0
    %751 = vrot.lane.b32.xlu0 %v167, 64
    %v752 = vpop.permute.xlu0 %751
    %v755 = vsel %vm170, %v568, 0
    %757 = vmatpush.msra.mxu0 0.0
    %758 = vmatpush.msra.mxu0 0.0
    %759 = vmatpush.msra.mxu0 0.0
    %760 = vmatpush.msra.mxu0 0.0
    %761 = vmatpush.msra.mxu0 0.0
    %762 = vmatpush.msra.mxu0 0.0
    %763 = vmatpush.msra.mxu0 0.0
    %764 = vmatpush.msra.mxu0 0.0
    %765 = vmatpush.msra.mxu0 0.0
    %766 = vmatpush.msra.mxu0 0.0
    %767 = vmatpush.msra.mxu0 0.0
    %768 = vmatpush.msra.mxu0 0.0
    %769 = vmatpush.msra.mxu0 0.0
    %770 = vmatpush.msra.mxu0 0.0
    %771 = vmatpush.msra.mxu0 0.0
    %772 = vmatpush.msra.mxu0 %v752
    %773 = vmatmul.f32.gmra.mxu0 %v755
    %v774 = vpop.f32.mrf.mxu0
    %v775 = vadd.f32 0.0, %v774
    %776 = vdwg.mxu0
    %779 = vrot.lane.b32.xlu0 %v645, 8
    %v780 = vpop.permute.xlu0 %779
    %781 = vrot.lane.b32.xlu0 %v671, 8
    %v782 = vpop.permute.xlu0 %781
    %787 = vrot.lane.b32.xlu0 %v697, 16
    %v788 = vpop.permute.xlu0 %787
    %789 = vrot.lane.b32.xlu0 %v723, 16
    %v790 = vpop.permute.xlu0 %789
    %795 = vrot.lane.b32.xlu0 %v749, 24
    %v796 = vpop.permute.xlu0 %795
    %797 = vrot.lane.b32.xlu0 %v775, 24
    %v798 = vpop.permute.xlu0 %797
    %v801 = vsel %vm170, %v593, %v780
    %v802 = vsel %vm170, %v619, %v782
    %vm803 = vcmask 130048
    %v804 = vsel %vm803, %v801, %v788
    %v805 = vsel %vm803, %v802, %v790
    %vm806 = vcmask 195584
    %v807 = vsel %vm806, %v804, %v796
    %v808 = vsel %vm806, %v805, %v798
    %v809 = vld [vmem:[%s3] sm:$0xff]
    %v810 = vld [vmem:[%s3 + $0x8] sm:$0xff]
    %v811 = vld [vmem:[%s3 + $0x10] sm:$0xff]
    %v812 = vld [vmem:[%s3 + $0x18] sm:$0xff]
    %v813 = vperm.slane %v105, 0
    %v815 = vsel %vm116, %v807, 0
    %v818 = vsel %vm116, %v808, 0
    %820 = vmatpush.msra.mxu0 0.0
    %821 = vmatpush.msra.mxu0 0.0
    %822 = vmatpush.msra.mxu0 0.0
    %823 = vmatpush.msra.mxu0 0.0
    %824 = vmatpush.msra.mxu0 0.0
    %825 = vmatpush.msra.mxu0 0.0
    %826 = vmatpush.msra.mxu0 0.0
    %827 = vmatpush.msra.mxu0 0.0
    %828 = vmatpush.msra.mxu0 0.0
    %829 = vmatpush.msra.mxu0 0.0
    %830 = vmatpush.msra.mxu0 0.0
    %831 = vmatpush.msra.mxu0 0.0
    %832 = vmatpush.msra.mxu0 %v812
    %833 = vmatpush.msra.mxu0 %v811
    %834 = vmatpush.msra.mxu0 %v810
    %835 = vmatpush.msra.mxu0 %v809
    %836 = vmatmul.f32.gmra.mxu0 %v815
    %v837 = vpop.f32.mrf.mxu0
    %v838 = vadd.f32 %v813, %v837
    %839 = vmatmul.f32.gmra.mxu0 %v818
    %v840 = vpop.f32.mrf.mxu0
    %v841 = vadd.f32 %v813, %v840
    %842 = vdwg.mxu0
    %v843 = vadd.f32 %v103, %v838
    %v844 = vadd.f32 %v104, %v841
    %v845 = vsel %vm116, %v843, 0.0
    %846 = vadd.xlane.f32.xlu0 %v845
    %v847 = vpop.xlane.xlu0 %846
    %v848 = vsel %vm116, %v844, 0.0
    %849 = vadd.xlane.f32.xlu0 %v848
    %v850 = vpop.xlane.xlu0 %849
    %v851 = vrcp.pop 32.0
    %v852 = vmul.f32 32.0, %v851
    %v853 = vsub.f32 1.0, %v852
    %v854 = vmul.f32 %v851, %v853
    %v855 = vadd.f32 %v851, %v854
    %vm856 = vweird.f32 %v851
    %v857 = vsel %vm856, %v851, %v855
    %v858 = vmul.f32 %v847, %v857
    %v859 = vmul.f32 %v850, %v857
    %v860 = vsub.f32 %v843, %v858
    %v861 = vsub.f32 %v844, %v859
    %v862 = vmul.f32 %v860, %v860
    %v863 = vmul.f32 %v861, %v861
    %v864 = vsel %vm116, %v862, 0.0
    %865 = vadd.xlane.f32.xlu0 %v864
    %v866 = vpop.xlane.xlu0 %865
    %v867 = vsel %vm116, %v863, 0.0
    %868 = vadd.xlane.f32.xlu0 %v867
    %v869 = vpop.xlane.xlu0 %868
    %v870 = vmul.f32 %v866, %v857
    %v871 = vmul.f32 %v869, %v857
    %v872 = vadd.f32 %v870, 1e-05
    %v873 = vadd.f32 %v871, 1e-05
    %v874 = vrsqrt.pop %v872
    %v875 = vmul.f32 %v874, %v872
    %v876 = vmul.f32 %v875, %v874
    %v877 = vmul.f32 0.5, %v876
    %v878 = vsub.f32 1.5, %v877
    %v879 = vmul.f32 %v874, %v878
    %vm880 = vweird.f32 %v872
    %vm881 = vweird.f32 %v874
    %vm882 = vmor %vm880, %vm881
    %v883 = vsel %vm882, %v874, %v879
    %v884 = vrsqrt.pop %v873
    %v885 = vmul.f32 %v884, %v873
    %v886 = vmul.f32 %v885, %v884
    %v887 = vmul.f32 0.5, %v886
    %v888 = vsub.f32 1.5, %v887
    %v889 = vmul.f32 %v884, %v888
    %vm890 = vweird.f32 %v873
    %vm891 = vweird.f32 %v884
    %vm892 = vmor %vm890, %vm891
    %v893 = vsel %vm892, %v884, %v889
    %v894 = vmul.f32 %v860, %v883
    %v895 = vmul.f32 %v861, %v893
    %v896 = vperm.slane %v105, 1
    %v897 = vmul.f32 %v894, %v896
    %v898 = vmul.f32 %v895, %v896
    %v899 = vperm.slane %v105, 2
    %v900 = vadd.f32 %v897, %v899
    %v901 = vadd.f32 %v898, %v899
    %v902 = vld [vmem:[%s4] sm:$0xff]
    %v903 = vld [vmem:[%s4 + $0x8] sm:$0xff]
    %v904 = vld [vmem:[%s4 + $0x10] sm:$0xff]
    %v905 = vld [vmem:[%s4 + $0x18] sm:$0xff]
    %v906 = vperm.slane %v105, 3
    %v908 = vsel %vm116, %v900, 0
    %v911 = vsel %vm116, %v901, 0
    %913 = vmatpush.msra.mxu0 0.0
    %914 = vmatpush.msra.mxu0 0.0
    %915 = vmatpush.msra.mxu0 0.0
    %916 = vmatpush.msra.mxu0 0.0
    %917 = vmatpush.msra.mxu0 0.0
    %918 = vmatpush.msra.mxu0 0.0
    %919 = vmatpush.msra.mxu0 0.0
    %920 = vmatpush.msra.mxu0 0.0
    %921 = vmatpush.msra.mxu0 0.0
    %922 = vmatpush.msra.mxu0 0.0
    %923 = vmatpush.msra.mxu0 0.0
    %924 = vmatpush.msra.mxu0 0.0
    %925 = vmatpush.msra.mxu0 %v905
    %926 = vmatpush.msra.mxu0 %v904
    %927 = vmatpush.msra.mxu0 %v903
    %928 = vmatpush.msra.mxu0 %v902
    %929 = vmatmul.f32.gmra.mxu0 %v908
    %v930 = vpop.f32.mrf.mxu0
    %v931 = vadd.f32 %v906, %v930
    %932 = vmatmul.f32.gmra.mxu0 %v911
    %v933 = vpop.f32.mrf.mxu0
    %v934 = vadd.f32 %v906, %v933
    %935 = vdwg.mxu0
    %v936 = vmax.f32 %v931, 0.0
    %v937 = vmax.f32 %v934, 0.0
    %v938 = vld [vmem:[%s5] sm:$0xff]
    %v939 = vld [vmem:[%s5 + $0x8] sm:$0xff]
    %v940 = vperm.slane %v105, 4
    %v942 = vsel %vm803, %v936, 0
    %v945 = vsel %vm803, %v937, 0
    %947 = vmatpush.msra.mxu0 0.0
    %948 = vmatpush.msra.mxu0 0.0
    %949 = vmatpush.msra.mxu0 0.0
    %950 = vmatpush.msra.mxu0 0.0
    %951 = vmatpush.msra.mxu0 0.0
    %952 = vmatpush.msra.mxu0 0.0
    %953 = vmatpush.msra.mxu0 0.0
    %954 = vmatpush.msra.mxu0 0.0
    %955 = vmatpush.msra.mxu0 0.0
    %956 = vmatpush.msra.mxu0 0.0
    %957 = vmatpush.msra.mxu0 0.0
    %958 = vmatpush.msra.mxu0 0.0
    %959 = vmatpush.msra.mxu0 0.0
    %960 = vmatpush.msra.mxu0 0.0
    %961 = vmatpush.msra.mxu0 %v939
    %962 = vmatpush.msra.mxu0 %v938
    %963 = vmatmul.f32.gmra.mxu0 %v942
    %v964 = vpop.f32.mrf.mxu0
    %v965 = vadd.f32 %v940, %v964
    %966 = vmatmul.f32.gmra.mxu0 %v945
    %v967 = vpop.f32.mrf.mxu0
    %v968 = vadd.f32 %v940, %v967
    %969 = vdwg.mxu0
    %v970 = vadd.f32 %v900, %v965
    %v971 = vadd.f32 %v901, %v968
    %v972 = vsel %vm116, %v970, 0.0
    %973 = vadd.xlane.f32.xlu0 %v972
    %v974 = vpop.xlane.xlu0 %973
    %v975 = vsel %vm116, %v971, 0.0
    %976 = vadd.xlane.f32.xlu0 %v975
    %v977 = vpop.xlane.xlu0 %976
    %v978 = vmul.f32 %v974, %v857
    %v979 = vmul.f32 %v977, %v857
    %v980 = vsub.f32 %v970, %v978
    %v981 = vsub.f32 %v971, %v979
    %v982 = vmul.f32 %v980, %v980
    %v983 = vmul.f32 %v981, %v981
    %v984 = vsel %vm116, %v982, 0.0
    %985 = vadd.xlane.f32.xlu0 %v984
    %v986 = vpop.xlane.xlu0 %985
    %v987 = vsel %vm116, %v983, 0.0
    %988 = vadd.xlane.f32.xlu0 %v987
    %v989 = vpop.xlane.xlu0 %988
    %v990 = vmul.f32 %v986, %v857
    %v991 = vmul.f32 %v989, %v857
    %v992 = vadd.f32 %v990, 1e-05
    %v993 = vadd.f32 %v991, 1e-05
    %v994 = vrsqrt.pop %v992
    %v995 = vmul.f32 %v994, %v992
    %v996 = vmul.f32 %v995, %v994
    %v997 = vmul.f32 0.5, %v996
    %v998 = vsub.f32 1.5, %v997
    %v999 = vmul.f32 %v994, %v998
    %vm1000 = vweird.f32 %v992
    %vm1001 = vweird.f32 %v994
    %vm1002 = vmor %vm1000, %vm1001
    %v1003 = vsel %vm1002, %v994, %v999
    %v1004 = vrsqrt.pop %v993
    %v1005 = vmul.f32 %v1004, %v993
    %v1006 = vmul.f32 %v1005, %v1004
    %v1007 = vmul.f32 0.5, %v1006
    %v1008 = vsub.f32 1.5, %v1007
    %v1009 = vmul.f32 %v1004, %v1008
    %vm1010 = vweird.f32 %v993
    %vm1011 = vweird.f32 %v1004
    %vm1012 = vmor %vm1010, %vm1011
    %v1013 = vsel %vm1012, %v1004, %v1009
    %v1014 = vmul.f32 %v980, %v1003
    %v1015 = vmul.f32 %v981, %v1013
    %v1016 = vperm.slane %v105, 5
    %v1017 = vmul.f32 %v1014, %v1016
    %v1018 = vmul.f32 %v1015, %v1016
    %v1019 = vperm.slane %v105, 6
    %v1020 = vadd.f32 %v1017, %v1019
    %v1021 = vadd.f32 %v1018, %v1019
    %s1022 = scalar_lea.vmem %s6, 16
    %v1023 = vld [vmem:[%s1022] sm:$0xff]
    %v1024 = vld [vmem:[%s1022 + $0x8] sm:$0x3]
    %v1026 = vrot.slane %v1024, 1
    %1027 = vrot.lane.b32.xlu0 %v1026, 32
    %v1028 = vpop.permute.xlu0 %1027
    %v1030 = vrot.slane %v1024, 2
    %1031 = vrot.lane.b32.xlu0 %v1030, 64
    %v1032 = vpop.permute.xlu0 %1031
    %v1034 = vsel %vm116, %v1023, %v1028
    %v1035 = vsel %vm118, %v1034, %v1032
    %s1036 = scalar_lea.vmem %s2, 32
    %v1037 = vld [vmem:[%s1036] sm:$0xff]
    %v1038 = vld [vmem:[%s1036 + $0x8] sm:$0xff]
    %v1039 = vld [vmem:[%s1036 + $0x10] sm:$0xff]
    %v1040 = vld [vmem:[%s1036 + $0x18] sm:$0xff]
    %v1041 = vperm.slane %v1035, 7
    %v1043 = vsel %vm116, %v1020, 0
    %v1046 = vsel %vm116, %v1021, 0
    %1048 = vmatpush.msra.mxu0 0.0
    %1049 = vmatpush.msra.mxu0 0.0
    %1050 = vmatpush.msra.mxu0 0.0
    %1051 = vmatpush.msra.mxu0 0.0
    %1052 = vmatpush.msra.mxu0 0.0
    %1053 = vmatpush.msra.mxu0 0.0
    %1054 = vmatpush.msra.mxu0 0.0
    %1055 = vmatpush.msra.mxu0 0.0
    %1056 = vmatpush.msra.mxu0 0.0
    %1057 = vmatpush.msra.mxu0 0.0
    %1058 = vmatpush.msra.mxu0 0.0
    %1059 = vmatpush.msra.mxu0 0.0
    %1060 = vmatpush.msra.mxu0 %v1040
    %1061 = vmatpush.msra.mxu0 %v1039
    %1062 = vmatpush.msra.mxu0 %v1038
    %1063 = vmatpush.msra.mxu0 %v1037
    %1064 = vmatmul.f32.gmra.mxu0 %v1043
    %v1065 = vpop.f32.mrf.mxu0
    %v1066 = vadd.f32 %v1041, %v1065
    %1067 = vmatmul.f32.gmra.mxu0 %v1046
    %v1068 = vpop.f32.mrf.mxu0
    %v1069 = vadd.f32 %v1041, %v1068
    %1070 = vdwg.mxu0
    %1073 = vrot.lane.b32.xlu0 %v1066, 120
    %v1074 = vpop.permute.xlu0 %1073
    %1075 = vrot.lane.b32.xlu0 %v1069, 120
    %v1076 = vpop.permute.xlu0 %1075
    %1077 = vrot.lane.b32.xlu0 %v1066, 112
    %v1078 = vpop.permute.xlu0 %1077
    %1079 = vrot.lane.b32.xlu0 %v1069, 112
    %v1080 = vpop.permute.xlu0 %1079
    %1081 = vrot.lane.b32.xlu0 %v1066, 104
    %v1082 = vpop.permute.xlu0 %1081
    %1083 = vrot.lane.b32.xlu0 %v1069, 104
    %v1084 = vpop.permute.xlu0 %1083
    %1085 = vrot.lane.b32.xlu0 %v1066, 96
    %v1086 = vpop.permute.xlu0 %1085
    %v1087 = vsel %vm170, %v1066, 0
    %v1089 = vsel %vm170, %v1086, 0
    %1091 = vmatpush.xpose.msra.mxu0 0.0
    %1092 = vmatpush.xpose.msra.mxu0 0.0
    %1093 = vmatpush.xpose.msra.mxu0 0.0
    %1094 = vmatpush.xpose.msra.mxu0 0.0
    %1095 = vmatpush.xpose.msra.mxu0 0.0
    %1096 = vmatpush.xpose.msra.mxu0 0.0
    %1097 = vmatpush.xpose.msra.mxu0 0.0
    %1098 = vmatpush.xpose.msra.mxu0 0.0
    %1099 = vmatpush.xpose.msra.mxu0 0.0
    %1100 = vmatpush.xpose.msra.mxu0 0.0
    %1101 = vmatpush.xpose.msra.mxu0 0.0
    %1102 = vmatpush.xpose.msra.mxu0 0.0
    %1103 = vmatpush.xpose.msra.mxu0 0.0
    %1104 = vmatpush.xpose.msra.mxu0 0.0
    %1105 = vmatpush.xpose.msra.mxu0 0.0
    %1106 = vmatpush.xpose.msra.mxu0 %v1089
    %1107 = vmatmul.f32.gmra.mxu0 %v1087
    %v1108 = vpop.f32.mrf.mxu0
    %v1109 = vadd.f32 0.0, %v1108
    %1110 = vdwg.mxu0
    %1111 = vrot.lane.b32.xlu0 %v1069, 96
    %v1112 = vpop.permute.xlu0 %1111
    %v1113 = vsel %vm170, %v1069, 0
    %v1115 = vsel %vm170, %v1112, 0
    %1117 = vmatpush.xpose.msra.mxu0 0.0
    %1118 = vmatpush.xpose.msra.mxu0 0.0
    %1119 = vmatpush.xpose.msra.mxu0 0.0
    %1120 = vmatpush.xpose.msra.mxu0 0.0
    %1121 = vmatpush.xpose.msra.mxu0 0.0
    %1122 = vmatpush.xpose.msra.mxu0 0.0
    %1123 = vmatpush.xpose.msra.mxu0 0.0
    %1124 = vmatpush.xpose.msra.mxu0 0.0
    %1125 = vmatpush.xpose.msra.mxu0 0.0
    %1126 = vmatpush.xpose.msra.mxu0 0.0
    %1127 = vmatpush.xpose.msra.mxu0 0.0
    %1128 = vmatpush.xpose.msra.mxu0 0.0
    %1129 = vmatpush.xpose.msra.mxu0 0.0
    %1130 = vmatpush.xpose.msra.mxu0 0.0
    %1131 = vmatpush.xpose.msra.mxu0 0.0
    %1132 = vmatpush.xpose.msra.mxu0 %v1115
    %1133 = vmatmul.f32.gmra.mxu0 %v1113
    %v1134 = vpop.f32.mrf.mxu0
    %v1135 = vadd.f32 0.0, %v1134
    %1136 = vdwg.mxu0
    %1137 = vrot.lane.b32.xlu0 %v1074, 96
    %v1138 = vpop.permute.xlu0 %1137
    %v1139 = vsel %vm170, %v1074, 0
    %v1141 = vsel %vm170, %v1138, 0
    %1143 = vmatpush.xpose.msra.mxu0 0.0
    %1144 = vmatpush.xpose.msra.mxu0 0.0
    %1145 = vmatpush.xpose.msra.mxu0 0.0
    %1146 = vmatpush.xpose.msra.mxu0 0.0
    %1147 = vmatpush.xpose.msra.mxu0 0.0
    %1148 = vmatpush.xpose.msra.mxu0 0.0
    %1149 = vmatpush.xpose.msra.mxu0 0.0
    %1150 = vmatpush.xpose.msra.mxu0 0.0
    %1151 = vmatpush.xpose.msra.mxu0 0.0
    %1152 = vmatpush.xpose.msra.mxu0 0.0
    %1153 = vmatpush.xpose.msra.mxu0 0.0
    %1154 = vmatpush.xpose.msra.mxu0 0.0
    %1155 = vmatpush.xpose.msra.mxu0 0.0
    %1156 = vmatpush.xpose.msra.mxu0 0.0
    %1157 = vmatpush.xpose.msra.mxu0 0.0
    %1158 = vmatpush.xpose.msra.mxu0 %v1141
    %1159 = vmatmul.f32.gmra.mxu0 %v1139
    %v1160 = vpop.f32.mrf.mxu0
    %v1161 = vadd.f32 0.0, %v1160
    %1162 = vdwg.mxu0
    %1163 = vrot.lane.b32.xlu0 %v1076, 96
    %v1164 = vpop.permute.xlu0 %1163
    %v1165 = vsel %vm170, %v1076, 0
    %v1167 = vsel %vm170, %v1164, 0
    %1169 = vmatpush.xpose.msra.mxu0 0.0
    %1170 = vmatpush.xpose.msra.mxu0 0.0
    %1171 = vmatpush.xpose.msra.mxu0 0.0
    %1172 = vmatpush.xpose.msra.mxu0 0.0
    %1173 = vmatpush.xpose.msra.mxu0 0.0
    %1174 = vmatpush.xpose.msra.mxu0 0.0
    %1175 = vmatpush.xpose.msra.mxu0 0.0
    %1176 = vmatpush.xpose.msra.mxu0 0.0
    %1177 = vmatpush.xpose.msra.mxu0 0.0
    %1178 = vmatpush.xpose.msra.mxu0 0.0
    %1179 = vmatpush.xpose.msra.mxu0 0.0
    %1180 = vmatpush.xpose.msra.mxu0 0.0
    %1181 = vmatpush.xpose.msra.mxu0 0.0
    %1182 = vmatpush.xpose.msra.mxu0 0.0
    %1183 = vmatpush.xpose.msra.mxu0 0.0
    %1184 = vmatpush.xpose.msra.mxu0 %v1167
    %1185 = vmatmul.f32.gmra.mxu0 %v1165
    %v1186 = vpop.f32.mrf.mxu0
    %v1187 = vadd.f32 0.0, %v1186
    %1188 = vdwg.mxu0
    %1189 = vrot.lane.b32.xlu0 %v1078, 96
    %v1190 = vpop.permute.xlu0 %1189
    %v1191 = vsel %vm170, %v1078, 0
    %v1193 = vsel %vm170, %v1190, 0
    %1195 = vmatpush.xpose.msra.mxu0 0.0
    %1196 = vmatpush.xpose.msra.mxu0 0.0
    %1197 = vmatpush.xpose.msra.mxu0 0.0
    %1198 = vmatpush.xpose.msra.mxu0 0.0
    %1199 = vmatpush.xpose.msra.mxu0 0.0
    %1200 = vmatpush.xpose.msra.mxu0 0.0
    %1201 = vmatpush.xpose.msra.mxu0 0.0
    %1202 = vmatpush.xpose.msra.mxu0 0.0
    %1203 = vmatpush.xpose.msra.mxu0 0.0
    %1204 = vmatpush.xpose.msra.mxu0 0.0
    %1205 = vmatpush.xpose.msra.mxu0 0.0
    %1206 = vmatpush.xpose.msra.mxu0 0.0
    %1207 = vmatpush.xpose.msra.mxu0 0.0
    %1208 = vmatpush.xpose.msra.mxu0 0.0
    %1209 = vmatpush.xpose.msra.mxu0 0.0
    %1210 = vmatpush.xpose.msra.mxu0 %v1193
    %1211 = vmatmul.f32.gmra.mxu0 %v1191
    %v1212 = vpop.f32.mrf.mxu0
    %v1213 = vadd.f32 0.0, %v1212
    %1214 = vdwg.mxu0
    %1215 = vrot.lane.b32.xlu0 %v1080, 96
    %v1216 = vpop.permute.xlu0 %1215
    %v1217 = vsel %vm170, %v1080, 0
    %v1219 = vsel %vm170, %v1216, 0
    %1221 = vmatpush.xpose.msra.mxu0 0.0
    %1222 = vmatpush.xpose.msra.mxu0 0.0
    %1223 = vmatpush.xpose.msra.mxu0 0.0
    %1224 = vmatpush.xpose.msra.mxu0 0.0
    %1225 = vmatpush.xpose.msra.mxu0 0.0
    %1226 = vmatpush.xpose.msra.mxu0 0.0
    %1227 = vmatpush.xpose.msra.mxu0 0.0
    %1228 = vmatpush.xpose.msra.mxu0 0.0
    %1229 = vmatpush.xpose.msra.mxu0 0.0
    %1230 = vmatpush.xpose.msra.mxu0 0.0
    %1231 = vmatpush.xpose.msra.mxu0 0.0
    %1232 = vmatpush.xpose.msra.mxu0 0.0
    %1233 = vmatpush.xpose.msra.mxu0 0.0
    %1234 = vmatpush.xpose.msra.mxu0 0.0
    %1235 = vmatpush.xpose.msra.mxu0 0.0
    %1236 = vmatpush.xpose.msra.mxu0 %v1219
    %1237 = vmatmul.f32.gmra.mxu0 %v1217
    %v1238 = vpop.f32.mrf.mxu0
    %v1239 = vadd.f32 0.0, %v1238
    %1240 = vdwg.mxu0
    %1241 = vrot.lane.b32.xlu0 %v1082, 96
    %v1242 = vpop.permute.xlu0 %1241
    %v1243 = vsel %vm170, %v1082, 0
    %v1245 = vsel %vm170, %v1242, 0
    %1247 = vmatpush.xpose.msra.mxu0 0.0
    %1248 = vmatpush.xpose.msra.mxu0 0.0
    %1249 = vmatpush.xpose.msra.mxu0 0.0
    %1250 = vmatpush.xpose.msra.mxu0 0.0
    %1251 = vmatpush.xpose.msra.mxu0 0.0
    %1252 = vmatpush.xpose.msra.mxu0 0.0
    %1253 = vmatpush.xpose.msra.mxu0 0.0
    %1254 = vmatpush.xpose.msra.mxu0 0.0
    %1255 = vmatpush.xpose.msra.mxu0 0.0
    %1256 = vmatpush.xpose.msra.mxu0 0.0
    %1257 = vmatpush.xpose.msra.mxu0 0.0
    %1258 = vmatpush.xpose.msra.mxu0 0.0
    %1259 = vmatpush.xpose.msra.mxu0 0.0
    %1260 = vmatpush.xpose.msra.mxu0 0.0
    %1261 = vmatpush.xpose.msra.mxu0 0.0
    %1262 = vmatpush.xpose.msra.mxu0 %v1245
    %1263 = vmatmul.f32.gmra.mxu0 %v1243
    %v1264 = vpop.f32.mrf.mxu0
    %v1265 = vadd.f32 0.0, %v1264
    %1266 = vdwg.mxu0
    %1267 = vrot.lane.b32.xlu0 %v1084, 96
    %v1268 = vpop.permute.xlu0 %1267
    %v1269 = vsel %vm170, %v1084, 0
    %v1271 = vsel %vm170, %v1268, 0
    %1273 = vmatpush.xpose.msra.mxu0 0.0
    %1274 = vmatpush.xpose.msra.mxu0 0.0
    %1275 = vmatpush.xpose.msra.mxu0 0.0
    %1276 = vmatpush.xpose.msra.mxu0 0.0
    %1277 = vmatpush.xpose.msra.mxu0 0.0
    %1278 = vmatpush.xpose.msra.mxu0 0.0
    %1279 = vmatpush.xpose.msra.mxu0 0.0
    %1280 = vmatpush.xpose.msra.mxu0 0.0
    %1281 = vmatpush.xpose.msra.mxu0 0.0
    %1282 = vmatpush.xpose.msra.mxu0 0.0
    %1283 = vmatpush.xpose.msra.mxu0 0.0
    %1284 = vmatpush.xpose.msra.mxu0 0.0
    %1285 = vmatpush.xpose.msra.mxu0 0.0
    %1286 = vmatpush.xpose.msra.mxu0 0.0
    %1287 = vmatpush.xpose.msra.mxu0 0.0
    %1288 = vmatpush.xpose.msra.mxu0 %v1271
    %1289 = vmatmul.f32.gmra.mxu0 %v1269
    %v1290 = vpop.f32.mrf.mxu0
    %v1291 = vadd.f32 0.0, %v1290
    %1292 = vdwg.mxu0
    %v1293 = vsel %vm170, %v1109, -inf
    %1294 = vmax.xlane.f32.xlu0 %v1293
    %v1295 = vpop.xlane.xlu0 %1294
    %v1296 = vsel %vm170, %v1135, -inf
    %1297 = vmax.xlane.f32.xlu0 %v1296
    %v1298 = vpop.xlane.xlu0 %1297
    %v1299 = vsel %vm170, %v1161, -inf
    %1300 = vmax.xlane.f32.xlu0 %v1299
    %v1301 = vpop.xlane.xlu0 %1300
    %v1302 = vsel %vm170, %v1187, -inf
    %1303 = vmax.xlane.f32.xlu0 %v1302
    %v1304 = vpop.xlane.xlu0 %1303
    %v1305 = vsel %vm170, %v1213, -inf
    %1306 = vmax.xlane.f32.xlu0 %v1305
    %v1307 = vpop.xlane.xlu0 %1306
    %v1308 = vsel %vm170, %v1239, -inf
    %1309 = vmax.xlane.f32.xlu0 %v1308
    %v1310 = vpop.xlane.xlu0 %1309
    %v1311 = vsel %vm170, %v1265, -inf
    %1312 = vmax.xlane.f32.xlu0 %v1311
    %v1313 = vpop.xlane.xlu0 %1312
    %v1314 = vsel %vm170, %v1291, -inf
    %1315 = vmax.xlane.f32.xlu0 %v1314
    %v1316 = vpop.xlane.xlu0 %1315
    %v1317 = vsub.f32 %v1109, %v1295
    %v1318 = vsub.f32 %v1135, %v1298
    %v1319 = vsub.f32 %v1161, %v1301
    %v1320 = vsub.f32 %v1187, %v1304
    %v1321 = vsub.f32 %v1213, %v1307
    %v1322 = vsub.f32 %v1239, %v1310
    %v1323 = vsub.f32 %v1265, %v1313
    %v1324 = vsub.f32 %v1291, %v1316
    %v1325 = vmul.f32 %v1317, 1.442695
    %v1326 = vpow.pop %v1325
    %v1327 = vmul.f32 %v1318, 1.442695
    %v1328 = vpow.pop %v1327
    %v1329 = vmul.f32 %v1319, 1.442695
    %v1330 = vpow.pop %v1329
    %v1331 = vmul.f32 %v1320, 1.442695
    %v1332 = vpow.pop %v1331
    %v1333 = vmul.f32 %v1321, 1.442695
    %v1334 = vpow.pop %v1333
    %v1335 = vmul.f32 %v1322, 1.442695
    %v1336 = vpow.pop %v1335
    %v1337 = vmul.f32 %v1323, 1.442695
    %v1338 = vpow.pop %v1337
    %v1339 = vmul.f32 %v1324, 1.442695
    %v1340 = vpow.pop %v1339
    %v1341 = vsel %vm170, %v1326, 0.0
    %1342 = vadd.xlane.f32.xlu0 %v1341
    %v1343 = vpop.xlane.xlu0 %1342
    %v1344 = vsel %vm170, %v1328, 0.0
    %1345 = vadd.xlane.f32.xlu0 %v1344
    %v1346 = vpop.xlane.xlu0 %1345
    %v1347 = vsel %vm170, %v1330, 0.0
    %1348 = vadd.xlane.f32.xlu0 %v1347
    %v1349 = vpop.xlane.xlu0 %1348
    %v1350 = vsel %vm170, %v1332, 0.0
    %1351 = vadd.xlane.f32.xlu0 %v1350
    %v1352 = vpop.xlane.xlu0 %1351
    %v1353 = vsel %vm170, %v1334, 0.0
    %1354 = vadd.xlane.f32.xlu0 %v1353
    %v1355 = vpop.xlane.xlu0 %1354
    %v1356 = vsel %vm170, %v1336, 0.0
    %1357 = vadd.xlane.f32.xlu0 %v1356
    %v1358 = vpop.xlane.xlu0 %1357
    %v1359 = vsel %vm170, %v1338, 0.0
    %1360 = vadd.xlane.f32.xlu0 %v1359
    %v1361 = vpop.xlane.xlu0 %1360
    %v1362 = vsel %vm170, %v1340, 0.0
    %1363 = vadd.xlane.f32.xlu0 %v1362
    %v1364 = vpop.xlane.xlu0 %1363
    %v1365 = vrcp.pop %v1343
    %v1366 = vmul.f32 %v1343, %v1365
    %v1367 = vsub.f32 1.0, %v1366
    %v1368 = vmul.f32 %v1365, %v1367
    %v1369 = vadd.f32 %v1365, %v1368
    %vm1370 = vweird.f32 %v1343
    %vm1371 = vweird.f32 %v1365
    %vm1372 = vmor %vm1370, %vm1371
    %v1373 = vsel %vm1372, %v1365, %v1369
    %v1374 = vand.u32 2147483647, %v1343
    %vm1375 = vcmp.eq.f32.partialorder %v1374, 8.507059e+37
    %v1376 = vand.u32 %v1343, 2147483648
    %v1377 = vor.u32 1.1754944e-38, %v1376
    %v1378 = vsel %vm1375, %v1377, %v1373
    %v1379 = vmul.f32 %v1326, %v1378
    %v1380 = vrcp.pop %v1346
    %v1381 = vmul.f32 %v1346, %v1380
    %v1382 = vsub.f32 1.0, %v1381
    %v1383 = vmul.f32 %v1380, %v1382
    %v1384 = vadd.f32 %v1380, %v1383
    %vm1385 = vweird.f32 %v1346
    %vm1386 = vweird.f32 %v1380
    %vm1387 = vmor %vm1385, %vm1386
    %v1388 = vsel %vm1387, %v1380, %v1384
    %v1389 = vand.u32 2147483647, %v1346
    %vm1390 = vcmp.eq.f32.partialorder %v1389, 8.507059e+37
    %v1391 = vand.u32 %v1346, 2147483648
    %v1392 = vor.u32 1.1754944e-38, %v1391
    %v1393 = vsel %vm1390, %v1392, %v1388
    %v1394 = vmul.f32 %v1328, %v1393
    %v1395 = vrcp.pop %v1349
    %v1396 = vmul.f32 %v1349, %v1395
    %v1397 = vsub.f32 1.0, %v1396
    %v1398 = vmul.f32 %v1395, %v1397
    %v1399 = vadd.f32 %v1395, %v1398
    %vm1400 = vweird.f32 %v1349
    %vm1401 = vweird.f32 %v1395
    %vm1402 = vmor %vm1400, %vm1401
    %v1403 = vsel %vm1402, %v1395, %v1399
    %v1404 = vand.u32 2147483647, %v1349
    %vm1405 = vcmp.eq.f32.partialorder %v1404, 8.507059e+37
    %v1406 = vand.u32 %v1349, 2147483648
    %v1407 = vor.u32 1.1754944e-38, %v1406
    %v1408 = vsel %vm1405, %v1407, %v1403
    %v1409 = vmul.f32 %v1330, %v1408
    %v1410 = vrcp.pop %v1352
    %v1411 = vmul.f32 %v1352, %v1410
    %v1412 = vsub.f32 1.0, %v1411
    %v1413 = vmul.f32 %v1410, %v1412
    %v1414 = vadd.f32 %v1410, %v1413
    %vm1415 = vweird.f32 %v1352
    %vm1416 = vweird.f32 %v1410
    %vm1417 = vmor %vm1415, %vm1416
    %v1418 = vsel %vm1417, %v1410, %v1414
    %v1419 = vand.u32 2147483647, %v1352
    %vm1420 = vcmp.eq.f32.partialorder %v1419, 8.507059e+37
    %v1421 = vand.u32 %v1352, 2147483648
    %v1422 = vor.u32 1.1754944e-38, %v1421
    %v1423 = vsel %vm1420, %v1422, %v1418
    %v1424 = vmul.f32 %v1332, %v1423
    %v1425 = vrcp.pop %v1355
    %v1426 = vmul.f32 %v1355, %v1425
    %v1427 = vsub.f32 1.0, %v1426
    %v1428 = vmul.f32 %v1425, %v1427
    %v1429 = vadd.f32 %v1425, %v1428
    %vm1430 = vweird.f32 %v1355
    %vm1431 = vweird.f32 %v1425
    %vm1432 = vmor %vm1430, %vm1431
    %v1433 = vsel %vm1432, %v1425, %v1429
    %v1434 = vand.u32 2147483647, %v1355
    %vm1435 = vcmp.eq.f32.partialorder %v1434, 8.507059e+37
    %v1436 = vand.u32 %v1355, 2147483648
    %v1437 = vor.u32 1.1754944e-38, %v1436
    %v1438 = vsel %vm1435, %v1437, %v1433
    %v1439 = vmul.f32 %v1334, %v1438
    %v1440 = vrcp.pop %v1358
    %v1441 = vmul.f32 %v1358, %v1440
    %v1442 = vsub.f32 1.0, %v1441
    %v1443 = vmul.f32 %v1440, %v1442
    %v1444 = vadd.f32 %v1440, %v1443
    %vm1445 = vweird.f32 %v1358
    %vm1446 = vweird.f32 %v1440
    %vm1447 = vmor %vm1445, %vm1446
    %v1448 = vsel %vm1447, %v1440, %v1444
    %v1449 = vand.u32 2147483647, %v1358
    %vm1450 = vcmp.eq.f32.partialorder %v1449, 8.507059e+37
    %v1451 = vand.u32 %v1358, 2147483648
    %v1452 = vor.u32 1.1754944e-38, %v1451
    %v1453 = vsel %vm1450, %v1452, %v1448
    %v1454 = vmul.f32 %v1336, %v1453
    %v1455 = vrcp.pop %v1361
    %v1456 = vmul.f32 %v1361, %v1455
    %v1457 = vsub.f32 1.0, %v1456
    %v1458 = vmul.f32 %v1455, %v1457
    %v1459 = vadd.f32 %v1455, %v1458
    %vm1460 = vweird.f32 %v1361
    %vm1461 = vweird.f32 %v1455
    %vm1462 = vmor %vm1460, %vm1461
    %v1463 = vsel %vm1462, %v1455, %v1459
    %v1464 = vand.u32 2147483647, %v1361
    %vm1465 = vcmp.eq.f32.partialorder %v1464, 8.507059e+37
    %v1466 = vand.u32 %v1361, 2147483648
    %v1467 = vor.u32 1.1754944e-38, %v1466
    %v1468 = vsel %vm1465, %v1467, %v1463
    %v1469 = vmul.f32 %v1338, %v1468
    %v1470 = vrcp.pop %v1364
    %v1471 = vmul.f32 %v1364, %v1470
    %v1472 = vsub.f32 1.0, %v1471
    %v1473 = vmul.f32 %v1470, %v1472
    %v1474 = vadd.f32 %v1470, %v1473
    %vm1475 = vweird.f32 %v1364
    %vm1476 = vweird.f32 %v1470
    %vm1477 = vmor %vm1475, %vm1476
    %v1478 = vsel %vm1477, %v1470, %v1474
    %v1479 = vand.u32 2147483647, %v1364
    %vm1480 = vcmp.eq.f32.partialorder %v1479, 8.507059e+37
    %v1481 = vand.u32 %v1364, 2147483648
    %v1482 = vor.u32 1.1754944e-38, %v1481
    %v1483 = vsel %vm1480, %v1482, %v1478
    %v1484 = vmul.f32 %v1340, %v1483
    %1485 = vrot.lane.b32.xlu0 %v1066, 64
    %v1486 = vpop.permute.xlu0 %1485
    %v1489 = vsel %vm170, %v1379, 0
    %1491 = vmatpush.msra.mxu0 0.0
    %1492 = vmatpush.msra.mxu0 0.0
    %1493 = vmatpush.msra.mxu0 0.0
    %1494 = vmatpush.msra.mxu0 0.0
    %1495 = vmatpush.msra.mxu0 0.0
    %1496 = vmatpush.msra.mxu0 0.0
    %1497 = vmatpush.msra.mxu0 0.0
    %1498 = vmatpush.msra.mxu0 0.0
    %1499 = vmatpush.msra.mxu0 0.0
    %1500 = vmatpush.msra.mxu0 0.0
    %1501 = vmatpush.msra.mxu0 0.0
    %1502 = vmatpush.msra.mxu0 0.0
    %1503 = vmatpush.msra.mxu0 0.0
    %1504 = vmatpush.msra.mxu0 0.0
    %1505 = vmatpush.msra.mxu0 0.0
    %1506 = vmatpush.msra.mxu0 %v1486
    %1507 = vmatmul.f32.gmra.mxu0 %v1489
    %v1508 = vpop.f32.mrf.mxu0
    %v1509 = vadd.f32 0.0, %v1508
    %1510 = vdwg.mxu0
    %1511 = vrot.lane.b32.xlu0 %v1069, 64
    %v1512 = vpop.permute.xlu0 %1511
    %v1515 = vsel %vm170, %v1394, 0
    %1517 = vmatpush.msra.mxu0 0.0
    %1518 = vmatpush.msra.mxu0 0.0
    %1519 = vmatpush.msra.mxu0 0.0
    %1520 = vmatpush.msra.mxu0 0.0
    %1521 = vmatpush.msra.mxu0 0.0
    %1522 = vmatpush.msra.mxu0 0.0
    %1523 = vmatpush.msra.mxu0 0.0
    %1524 = vmatpush.msra.mxu0 0.0
    %1525 = vmatpush.msra.mxu0 0.0
    %1526 = vmatpush.msra.mxu0 0.0
    %1527 = vmatpush.msra.mxu0 0.0
    %1528 = vmatpush.msra.mxu0 0.0
    %1529 = vmatpush.msra.mxu0 0.0
    %1530 = vmatpush.msra.mxu0 0.0
    %1531 = vmatpush.msra.mxu0 0.0
    %1532 = vmatpush.msra.mxu0 %v1512
    %1533 = vmatmul.f32.gmra.mxu0 %v1515
    %v1534 = vpop.f32.mrf.mxu0
    %v1535 = vadd.f32 0.0, %v1534
    %1536 = vdwg.mxu0
    %1537 = vrot.lane.b32.xlu0 %v1074, 64
    %v1538 = vpop.permute.xlu0 %1537
    %v1541 = vsel %vm170, %v1409, 0
    %1543 = vmatpush.msra.mxu0 0.0
    %1544 = vmatpush.msra.mxu0 0.0
    %1545 = vmatpush.msra.mxu0 0.0
    %1546 = vmatpush.msra.mxu0 0.0
    %1547 = vmatpush.msra.mxu0 0.0
    %1548 = vmatpush.msra.mxu0 0.0
    %1549 = vmatpush.msra.mxu0 0.0
    %1550 = vmatpush.msra.mxu0 0.0
    %1551 = vmatpush.msra.mxu0 0.0
    %1552 = vmatpush.msra.mxu0 0.0
    %1553 = vmatpush.msra.mxu0 0.0
    %1554 = vmatpush.msra.mxu0 0.0
    %1555 = vmatpush.msra.mxu0 0.0
    %1556 = vmatpush.msra.mxu0 0.0
    %1557 = vmatpush.msra.mxu0 0.0
    %1558 = vmatpush.msra.mxu0 %v1538
    %1559 = vmatmul.f32.gmra.mxu0 %v1541
    %v1560 = vpop.f32.mrf.mxu0
    %v1561 = vadd.f32 0.0, %v1560
    %1562 = vdwg.mxu0
    %1563 = vrot.lane.b32.xlu0 %v1076, 64
    %v1564 = vpop.permute.xlu0 %1563
    %v1567 = vsel %vm170, %v1424, 0
    %1569 = vmatpush.msra.mxu0 0.0
    %1570 = vmatpush.msra.mxu0 0.0
    %1571 = vmatpush.msra.mxu0 0.0
    %1572 = vmatpush.msra.mxu0 0.0
    %1573 = vmatpush.msra.mxu0 0.0
    %1574 = vmatpush.msra.mxu0 0.0
    %1575 = vmatpush.msra.mxu0 0.0
    %1576 = vmatpush.msra.mxu0 0.0
    %1577 = vmatpush.msra.mxu0 0.0
    %1578 = vmatpush.msra.mxu0 0.0
    %1579 = vmatpush.msra.mxu0 0.0
    %1580 = vmatpush.msra.mxu0 0.0
    %1581 = vmatpush.msra.mxu0 0.0
    %1582 = vmatpush.msra.mxu0 0.0
    %1583 = vmatpush.msra.mxu0 0.0
    %1584 = vmatpush.msra.mxu0 %v1564
    %1585 = vmatmul.f32.gmra.mxu0 %v1567
    %v1586 = vpop.f32.mrf.mxu0
    %v1587 = vadd.f32 0.0, %v1586
    %1588 = vdwg.mxu0
    %1589 = vrot.lane.b32.xlu0 %v1078, 64
    %v1590 = vpop.permute.xlu0 %1589
    %v1593 = vsel %vm170, %v1439, 0
    %1595 = vmatpush.msra.mxu0 0.0
    %1596 = vmatpush.msra.mxu0 0.0
    %1597 = vmatpush.msra.mxu0 0.0
    %1598 = vmatpush.msra.mxu0 0.0
    %1599 = vmatpush.msra.mxu0 0.0
    %1600 = vmatpush.msra.mxu0 0.0
    %1601 = vmatpush.msra.mxu0 0.0
    %1602 = vmatpush.msra.mxu0 0.0
    %1603 = vmatpush.msra.mxu0 0.0
    %1604 = vmatpush.msra.mxu0 0.0
    %1605 = vmatpush.msra.mxu0 0.0
    %1606 = vmatpush.msra.mxu0 0.0
    %1607 = vmatpush.msra.mxu0 0.0
    %1608 = vmatpush.msra.mxu0 0.0
    %1609 = vmatpush.msra.mxu0 0.0
    %1610 = vmatpush.msra.mxu0 %v1590
    %1611 = vmatmul.f32.gmra.mxu0 %v1593
    %v1612 = vpop.f32.mrf.mxu0
    %v1613 = vadd.f32 0.0, %v1612
    %1614 = vdwg.mxu0
    %1615 = vrot.lane.b32.xlu0 %v1080, 64
    %v1616 = vpop.permute.xlu0 %1615
    %v1619 = vsel %vm170, %v1454, 0
    %1621 = vmatpush.msra.mxu0 0.0
    %1622 = vmatpush.msra.mxu0 0.0
    %1623 = vmatpush.msra.mxu0 0.0
    %1624 = vmatpush.msra.mxu0 0.0
    %1625 = vmatpush.msra.mxu0 0.0
    %1626 = vmatpush.msra.mxu0 0.0
    %1627 = vmatpush.msra.mxu0 0.0
    %1628 = vmatpush.msra.mxu0 0.0
    %1629 = vmatpush.msra.mxu0 0.0
    %1630 = vmatpush.msra.mxu0 0.0
    %1631 = vmatpush.msra.mxu0 0.0
    %1632 = vmatpush.msra.mxu0 0.0
    %1633 = vmatpush.msra.mxu0 0.0
    %1634 = vmatpush.msra.mxu0 0.0
    %1635 = vmatpush.msra.mxu0 0.0
    %1636 = vmatpush.msra.mxu0 %v1616
    %1637 = vmatmul.f32.gmra.mxu0 %v1619
    %v1638 = vpop.f32.mrf.mxu0
    %v1639 = vadd.f32 0.0, %v1638
    %1640 = vdwg.mxu0
    %1641 = vrot.lane.b32.xlu0 %v1082, 64
    %v1642 = vpop.permute.xlu0 %1641
    %v1645 = vsel %vm170, %v1469, 0
    %1647 = vmatpush.msra.mxu0 0.0
    %1648 = vmatpush.msra.mxu0 0.0
    %1649 = vmatpush.msra.mxu0 0.0
    %1650 = vmatpush.msra.mxu0 0.0
    %1651 = vmatpush.msra.mxu0 0.0
    %1652 = vmatpush.msra.mxu0 0.0
    %1653 = vmatpush.msra.mxu0 0.0
    %1654 = vmatpush.msra.mxu0 0.0
    %1655 = vmatpush.msra.mxu0 0.0
    %1656 = vmatpush.msra.mxu0 0.0
    %1657 = vmatpush.msra.mxu0 0.0
    %1658 = vmatpush.msra.mxu0 0.0
    %1659 = vmatpush.msra.mxu0 0.0
    %1660 = vmatpush.msra.mxu0 0.0
    %1661 = vmatpush.msra.mxu0 0.0
    %1662 = vmatpush.msra.mxu0 %v1642
    %1663 = vmatmul.f32.gmra.mxu0 %v1645
    %v1664 = vpop.f32.mrf.mxu0
    %v1665 = vadd.f32 0.0, %v1664
    %1666 = vdwg.mxu0
    %1667 = vrot.lane.b32.xlu0 %v1084, 64
    %v1668 = vpop.permute.xlu0 %1667
    %v1671 = vsel %vm170, %v1484, 0
    %1673 = vmatpush.msra.mxu0 0.0
    %1674 = vmatpush.msra.mxu0 0.0
    %1675 = vmatpush.msra.mxu0 0.0
    %1676 = vmatpush.msra.mxu0 0.0
    %1677 = vmatpush.msra.mxu0 0.0
    %1678 = vmatpush.msra.mxu0 0.0
    %1679 = vmatpush.msra.mxu0 0.0
    %1680 = vmatpush.msra.mxu0 0.0
    %1681 = vmatpush.msra.mxu0 0.0
    %1682 = vmatpush.msra.mxu0 0.0
    %1683 = vmatpush.msra.mxu0 0.0
    %1684 = vmatpush.msra.mxu0 0.0
    %1685 = vmatpush.msra.mxu0 0.0
    %1686 = vmatpush.msra.mxu0 0.0
    %1687 = vmatpush.msra.mxu0 0.0
    %1688 = vmatpush.msra.mxu0 %v1668
    %1689 = vmatmul.f32.gmra.mxu0 %v1671
    %v1690 = vpop.f32.mrf.mxu0
    %v1691 = vadd.f32 0.0, %v1690
    %1692 = vdwg.mxu0
    %1695 = vrot.lane.b32.xlu0 %v1561, 8
    %v1696 = vpop.permute.xlu0 %1695
    %1697 = vrot.lane.b32.xlu0 %v1587, 8
    %v1698 = vpop.permute.xlu0 %1697
    %1703 = vrot.lane.b32.xlu0 %v1613, 16
    %v1704 = vpop.permute.xlu0 %1703
    %1705 = vrot.lane.b32.xlu0 %v1639, 16
    %v1706 = vpop.permute.xlu0 %1705
    %1711 = vrot.lane.b32.xlu0 %v1665, 24
    %v1712 = vpop.permute.xlu0 %1711
    %1713 = vrot.lane.b32.xlu0 %v1691, 24
    %v1714 = vpop.permute.xlu0 %1713
    %v1717 = vsel %vm170, %v1509, %v1696
    %v1718 = vsel %vm170, %v1535, %v1698
    %v1719 = vsel %vm803, %v1717, %v1704
    %v1720 = vsel %vm803, %v1718, %v1706
    %v1721 = vsel %vm806, %v1719, %v1712
    %v1722 = vsel %vm806, %v1720, %v1714
    %s1723 = scalar_lea.vmem %s3, 32
    %v1724 = vld [vmem:[%s1723] sm:$0xff]
    %v1725 = vld [vmem:[%s1723 + $0x8] sm:$0xff]
    %v1726 = vld [vmem:[%s1723 + $0x10] sm:$0xff]
    %v1727 = vld [vmem:[%s1723 + $0x18] sm:$0xff]
    %v1728 = vperm.slane %v1023, 0
    %v1730 = vsel %vm116, %v1721, 0
    %v1733 = vsel %vm116, %v1722, 0
    %1735 = vmatpush.msra.mxu0 0.0
    %1736 = vmatpush.msra.mxu0 0.0
    %1737 = vmatpush.msra.mxu0 0.0
    %1738 = vmatpush.msra.mxu0 0.0
    %1739 = vmatpush.msra.mxu0 0.0
    %1740 = vmatpush.msra.mxu0 0.0
    %1741 = vmatpush.msra.mxu0 0.0
    %1742 = vmatpush.msra.mxu0 0.0
    %1743 = vmatpush.msra.mxu0 0.0
    %1744 = vmatpush.msra.mxu0 0.0
    %1745 = vmatpush.msra.mxu0 0.0
    %1746 = vmatpush.msra.mxu0 0.0
    %1747 = vmatpush.msra.mxu0 %v1727
    %1748 = vmatpush.msra.mxu0 %v1726
    %1749 = vmatpush.msra.mxu0 %v1725
    %1750 = vmatpush.msra.mxu0 %v1724
    %1751 = vmatmul.f32.gmra.mxu0 %v1730
    %v1752 = vpop.f32.mrf.mxu0
    %v1753 = vadd.f32 %v1728, %v1752
    %1754 = vmatmul.f32.gmra.mxu0 %v1733
    %v1755 = vpop.f32.mrf.mxu0
    %v1756 = vadd.f32 %v1728, %v1755
    %1757 = vdwg.mxu0
    %v1758 = vadd.f32 %v1020, %v1753
    %v1759 = vadd.f32 %v1021, %v1756
    %v1760 = vsel %vm116, %v1758, 0.0
    %1761 = vadd.xlane.f32.xlu0 %v1760
    %v1762 = vpop.xlane.xlu0 %1761
    %v1763 = vsel %vm116, %v1759, 0.0
    %1764 = vadd.xlane.f32.xlu0 %v1763
    %v1765 = vpop.xlane.xlu0 %1764
    %v1766 = vmul.f32 %v1762, %v857
    %v1767 = vmul.f32 %v1765, %v857
    %v1768 = vsub.f32 %v1758, %v1766
    %v1769 = vsub.f32 %v1759, %v1767
    %v1770 = vmul.f32 %v1768, %v1768
    %v1771 = vmul.f32 %v1769, %v1769
    %v1772 = vsel %vm116, %v1770, 0.0
    %1773 = vadd.xlane.f32.xlu0 %v1772
    %v1774 = vpop.xlane.xlu0 %1773
    %v1775 = vsel %vm116, %v1771, 0.0
    %1776 = vadd.xlane.f32.xlu0 %v1775
    %v1777 = vpop.xlane.xlu0 %1776
    %v1778 = vmul.f32 %v1774, %v857
    %v1779 = vmul.f32 %v1777, %v857
    %v1780 = vadd.f32 %v1778, 1e-05
    %v1781 = vadd.f32 %v1779, 1e-05
    %v1782 = vrsqrt.pop %v1780
    %v1783 = vmul.f32 %v1782, %v1780
    %v1784 = vmul.f32 %v1783, %v1782
    %v1785 = vmul.f32 0.5, %v1784
    %v1786 = vsub.f32 1.5, %v1785
    %v1787 = vmul.f32 %v1782, %v1786
    %vm1788 = vweird.f32 %v1780
    %vm1789 = vweird.f32 %v1782
    %vm1790 = vmor %vm1788, %vm1789
    %v1791 = vsel %vm1790, %v1782, %v1787
    %v1792 = vrsqrt.pop %v1781
    %v1793 = vmul.f32 %v1792, %v1781
    %v1794 = vmul.f32 %v1793, %v1792
    %v1795 = vmul.f32 0.5, %v1794
    %v1796 = vsub.f32 1.5, %v1795
    %v1797 = vmul.f32 %v1792, %v1796
    %vm1798 = vweird.f32 %v1781
    %vm1799 = vweird.f32 %v1792
    %vm1800 = vmor %vm1798, %vm1799
    %v1801 = vsel %vm1800, %v1792, %v1797
    %v1802 = vmul.f32 %v1768, %v1791
    %v1803 = vmul.f32 %v1769, %v1801
    %v1804 = vperm.slane %v1023, 1
    %v1805 = vmul.f32 %v1802, %v1804
    %v1806 = vmul.f32 %v1803, %v1804
    %v1807 = vperm.slane %v1023, 2
    %v1808 = vadd.f32 %v1805, %v1807
    %v1809 = vadd.f32 %v1806, %v1807
    %s1810 = scalar_lea.vmem %s4, 32
    %v1811 = vld [vmem:[%s1810] sm:$0xff]
    %v1812 = vld [vmem:[%s1810 + $0x8] sm:$0xff]
    %v1813 = vld [vmem:[%s1810 + $0x10] sm:$0xff]
    %v1814 = vld [vmem:[%s1810 + $0x18] sm:$0xff]
    %v1815 = vperm.slane %v1023, 3
    %v1817 = vsel %vm116, %v1808, 0
    %v1820 = vsel %vm116, %v1809, 0
    %1822 = vmatpush.msra.mxu0 0.0
    %1823 = vmatpush.msra.mxu0 0.0
    %1824 = vmatpush.msra.mxu0 0.0
    %1825 = vmatpush.msra.mxu0 0.0
    %1826 = vmatpush.msra.mxu0 0.0
    %1827 = vmatpush.msra.mxu0 0.0
    %1828 = vmatpush.msra.mxu0 0.0
    %1829 = vmatpush.msra.mxu0 0.0
    %1830 = vmatpush.msra.mxu0 0.0
    %1831 = vmatpush.msra.mxu0 0.0
    %1832 = vmatpush.msra.mxu0 0.0
    %1833 = vmatpush.msra.mxu0 0.0
    %1834 = vmatpush.msra.mxu0 %v1814
    %1835 = vmatpush.msra.mxu0 %v1813
    %1836 = vmatpush.msra.mxu0 %v1812
    %1837 = vmatpush.msra.mxu0 %v1811
    %1838 = vmatmul.f32.gmra.mxu0 %v1817
    %v1839 = vpop.f32.mrf.mxu0
    %v1840 = vadd.f32 %v1815, %v1839
    %1841 = vmatmul.f32.gmra.mxu0 %v1820
    %v1842 = vpop.f32.mrf.mxu0
    %v1843 = vadd.f32 %v1815, %v1842
    %1844 = vdwg.mxu0
    %v1845 = vmax.f32 %v1840, 0.0
    %v1846 = vmax.f32 %v1843, 0.0
    %s1847 = scalar_lea.vmem %s5, 16
    %v1848 = vld [vmem:[%s1847] sm:$0xff]
    %v1849 = vld [vmem:[%s1847 + $0x8] sm:$0xff]
    %v1850 = vperm.slane %v1023, 4
    %v1852 = vsel %vm803, %v1845, 0
    %v1855 = vsel %vm803, %v1846, 0
    %1857 = vmatpush.msra.mxu0 0.0
    %1858 = vmatpush.msra.mxu0 0.0
    %1859 = vmatpush.msra.mxu0 0.0
    %1860 = vmatpush.msra.mxu0 0.0
    %1861 = vmatpush.msra.mxu0 0.0
    %1862 = vmatpush.msra.mxu0 0.0
    %1863 = vmatpush.msra.mxu0 0.0
    %1864 = vmatpush.msra.mxu0 0.0
    %1865 = vmatpush.msra.mxu0 0.0
    %1866 = vmatpush.msra.mxu0 0.0
    %1867 = vmatpush.msra.mxu0 0.0
    %1868 = vmatpush.msra.mxu0 0.0
    %1869 = vmatpush.msra.mxu0 0.0
    %1870 = vmatpush.msra.mxu0 0.0
    %1871 = vmatpush.msra.mxu0 %v1849
    %1872 = vmatpush.msra.mxu0 %v1848
    %1873 = vmatmul.f32.gmra.mxu0 %v1852
    %v1874 = vpop.f32.mrf.mxu0
    %v1875 = vadd.f32 %v1850, %v1874
    %1876 = vmatmul.f32.gmra.mxu0 %v1855
    %v1877 = vpop.f32.mrf.mxu0
    %v1878 = vadd.f32 %v1850, %v1877
    %1879 = vdwg.mxu0
    %v1880 = vadd.f32 %v1808, %v1875
    %v1881 = vadd.f32 %v1809, %v1878
    %v1882 = vsel %vm116, %v1880, 0.0
    %1883 = vadd.xlane.f32.xlu0 %v1882
    %v1884 = vpop.xlane.xlu0 %1883
    %v1885 = vsel %vm116, %v1881, 0.0
    %1886 = vadd.xlane.f32.xlu0 %v1885
    %v1887 = vpop.xlane.xlu0 %1886
    %v1888 = vmul.f32 %v1884, %v857
    %v1889 = vmul.f32 %v1887, %v857
    %v1890 = vsub.f32 %v1880, %v1888
    %v1891 = vsub.f32 %v1881, %v1889
    %v1892 = vmul.f32 %v1890, %v1890
    %v1893 = vmul.f32 %v1891, %v1891
    %v1894 = vsel %vm116, %v1892, 0.0
    %1895 = vadd.xlane.f32.xlu0 %v1894
    %v1896 = vpop.xlane.xlu0 %1895
    %v1897 = vsel %vm116, %v1893, 0.0
    %1898 = vadd.xlane.f32.xlu0 %v1897
    %v1899 = vpop.xlane.xlu0 %1898
    %v1900 = vmul.f32 %v1896, %v857
    %v1901 = vmul.f32 %v1899, %v857
    %v1902 = vadd.f32 %v1900, 1e-05
    %v1903 = vadd.f32 %v1901, 1e-05
    %v1904 = vrsqrt.pop %v1902
    %v1905 = vmul.f32 %v1904, %v1902
    %v1906 = vmul.f32 %v1905, %v1904
    %v1907 = vmul.f32 0.5, %v1906
    %v1908 = vsub.f32 1.5, %v1907
    %v1909 = vmul.f32 %v1904, %v1908
    %vm1910 = vweird.f32 %v1902
    %vm1911 = vweird.f32 %v1904
    %vm1912 = vmor %vm1910, %vm1911
    %v1913 = vsel %vm1912, %v1904, %v1909
    %v1914 = vrsqrt.pop %v1903
    %v1915 = vmul.f32 %v1914, %v1903
    %v1916 = vmul.f32 %v1915, %v1914
    %v1917 = vmul.f32 0.5, %v1916
    %v1918 = vsub.f32 1.5, %v1917
    %v1919 = vmul.f32 %v1914, %v1918
    %vm1920 = vweird.f32 %v1903
    %vm1921 = vweird.f32 %v1914
    %vm1922 = vmor %vm1920, %vm1921
    %v1923 = vsel %vm1922, %v1914, %v1919
    %v1924 = vmul.f32 %v1890, %v1913
    %v1925 = vmul.f32 %v1891, %v1923
    %v1926 = vperm.slane %v1023, 5
    %v1927 = vmul.f32 %v1924, %v1926
    %v1928 = vmul.f32 %v1925, %v1926
    %v1929 = vperm.slane %v1023, 6
    %v1930 = vadd.f32 %v1927, %v1929
    %v1931 = vadd.f32 %v1928, %v1929
    %s1932 = scalar_lea.vmem %s6, 32
    %v1933 = vld [vmem:[%s1932] sm:$0xff]
    %v1934 = vld [vmem:[%s1932 + $0x8] sm:$0x3]
    %v1936 = vrot.slane %v1934, 1
    %1937 = vrot.lane.b32.xlu0 %v1936, 32
    %v1938 = vpop.permute.xlu0 %1937
    %v1940 = vrot.slane %v1934, 2
    %1941 = vrot.lane.b32.xlu0 %v1940, 64
    %v1942 = vpop.permute.xlu0 %1941
    %v1944 = vsel %vm116, %v1933, %v1938
    %v1945 = vsel %vm118, %v1944, %v1942
    %s1946 = scalar_lea.vmem %s2, 64
    %v1947 = vld [vmem:[%s1946] sm:$0xff]
    %v1948 = vld [vmem:[%s1946 + $0x8] sm:$0xff]
    %v1949 = vld [vmem:[%s1946 + $0x10] sm:$0xff]
    %v1950 = vld [vmem:[%s1946 + $0x18] sm:$0xff]
    %v1951 = vperm.slane %v1945, 7
    %v1953 = vsel %vm116, %v1930, 0
    %v1956 = vsel %vm116, %v1931, 0
    %1958 = vmatpush.msra.mxu0 0.0
    %1959 = vmatpush.msra.mxu0 0.0
    %1960 = vmatpush.msra.mxu0 0.0
    %1961 = vmatpush.msra.mxu0 0.0
    %1962 = vmatpush.msra.mxu0 0.0
    %1963 = vmatpush.msra.mxu0 0.0
    %1964 = vmatpush.msra.mxu0 0.0
    %1965 = vmatpush.msra.mxu0 0.0
    %1966 = vmatpush.msra.mxu0 0.0
    %1967 = vmatpush.msra.mxu0 0.0
    %1968 = vmatpush.msra.mxu0 0.0
    %1969 = vmatpush.msra.mxu0 0.0
    %1970 = vmatpush.msra.mxu0 %v1950
    %1971 = vmatpush.msra.mxu0 %v1949
    %1972 = vmatpush.msra.mxu0 %v1948
    %1973 = vmatpush.msra.mxu0 %v1947
    %1974 = vmatmul.f32.gmra.mxu0 %v1953
    %v1975 = vpop.f32.mrf.mxu0
    %v1976 = vadd.f32 %v1951, %v1975
    %1977 = vmatmul.f32.gmra.mxu0 %v1956
    %v1978 = vpop.f32.mrf.mxu0
    %v1979 = vadd.f32 %v1951, %v1978
    %1980 = vdwg.mxu0
    %1983 = vrot.lane.b32.xlu0 %v1976, 120
    %v1984 = vpop.permute.xlu0 %1983
    %1985 = vrot.lane.b32.xlu0 %v1979, 120
    %v1986 = vpop.permute.xlu0 %1985
    %1987 = vrot.lane.b32.xlu0 %v1976, 112
    %v1988 = vpop.permute.xlu0 %1987
    %1989 = vrot.lane.b32.xlu0 %v1979, 112
    %v1990 = vpop.permute.xlu0 %1989
    %1991 = vrot.lane.b32.xlu0 %v1976, 104
    %v1992 = vpop.permute.xlu0 %1991
    %1993 = vrot.lane.b32.xlu0 %v1979, 104
    %v1994 = vpop.permute.xlu0 %1993
    %1995 = vrot.lane.b32.xlu0 %v1976, 96
    %v1996 = vpop.permute.xlu0 %1995
    %v1997 = vsel %vm170, %v1976, 0
    %v1999 = vsel %vm170, %v1996, 0
    %2001 = vmatpush.xpose.msra.mxu0 0.0
    %2002 = vmatpush.xpose.msra.mxu0 0.0
    %2003 = vmatpush.xpose.msra.mxu0 0.0
    %2004 = vmatpush.xpose.msra.mxu0 0.0
    %2005 = vmatpush.xpose.msra.mxu0 0.0
    %2006 = vmatpush.xpose.msra.mxu0 0.0
    %2007 = vmatpush.xpose.msra.mxu0 0.0
    %2008 = vmatpush.xpose.msra.mxu0 0.0
    %2009 = vmatpush.xpose.msra.mxu0 0.0
    %2010 = vmatpush.xpose.msra.mxu0 0.0
    %2011 = vmatpush.xpose.msra.mxu0 0.0
    %2012 = vmatpush.xpose.msra.mxu0 0.0
    %2013 = vmatpush.xpose.msra.mxu0 0.0
    %2014 = vmatpush.xpose.msra.mxu0 0.0
    %2015 = vmatpush.xpose.msra.mxu0 0.0
    %2016 = vmatpush.xpose.msra.mxu0 %v1999
    %2017 = vmatmul.f32.gmra.mxu0 %v1997
    %v2018 = vpop.f32.mrf.mxu0
    %v2019 = vadd.f32 0.0, %v2018
    %2020 = vdwg.mxu0
    %2021 = vrot.lane.b32.xlu0 %v1979, 96
    %v2022 = vpop.permute.xlu0 %2021
    %v2023 = vsel %vm170, %v1979, 0
    %v2025 = vsel %vm170, %v2022, 0
    %2027 = vmatpush.xpose.msra.mxu0 0.0
    %2028 = vmatpush.xpose.msra.mxu0 0.0
    %2029 = vmatpush.xpose.msra.mxu0 0.0
    %2030 = vmatpush.xpose.msra.mxu0 0.0
    %2031 = vmatpush.xpose.msra.mxu0 0.0
    %2032 = vmatpush.xpose.msra.mxu0 0.0
    %2033 = vmatpush.xpose.msra.mxu0 0.0
    %2034 = vmatpush.xpose.msra.mxu0 0.0
    %2035 = vmatpush.xpose.msra.mxu0 0.0
    %2036 = vmatpush.xpose.msra.mxu0 0.0
    %2037 = vmatpush.xpose.msra.mxu0 0.0
    %2038 = vmatpush.xpose.msra.mxu0 0.0
    %2039 = vmatpush.xpose.msra.mxu0 0.0
    %2040 = vmatpush.xpose.msra.mxu0 0.0
    %2041 = vmatpush.xpose.msra.mxu0 0.0
    %2042 = vmatpush.xpose.msra.mxu0 %v2025
    %2043 = vmatmul.f32.gmra.mxu0 %v2023
    %v2044 = vpop.f32.mrf.mxu0
    %v2045 = vadd.f32 0.0, %v2044
    %2046 = vdwg.mxu0
    %2047 = vrot.lane.b32.xlu0 %v1984, 96
    %v2048 = vpop.permute.xlu0 %2047
    %v2049 = vsel %vm170, %v1984, 0
    %v2051 = vsel %vm170, %v2048, 0
    %2053 = vmatpush.xpose.msra.mxu0 0.0
    %2054 = vmatpush.xpose.msra.mxu0 0.0
    %2055 = vmatpush.xpose.msra.mxu0 0.0
    %2056 = vmatpush.xpose.msra.mxu0 0.0
    %2057 = vmatpush.xpose.msra.mxu0 0.0
    %2058 = vmatpush.xpose.msra.mxu0 0.0
    %2059 = vmatpush.xpose.msra.mxu0 0.0
    %2060 = vmatpush.xpose.msra.mxu0 0.0
    %2061 = vmatpush.xpose.msra.mxu0 0.0
    %2062 = vmatpush.xpose.msra.mxu0 0.0
    %2063 = vmatpush.xpose.msra.mxu0 0.0
    %2064 = vmatpush.xpose.msra.mxu0 0.0
    %2065 = vmatpush.xpose.msra.mxu0 0.0
    %2066 = vmatpush.xpose.msra.mxu0 0.0
    %2067 = vmatpush.xpose.msra.mxu0 0.0
    %2068 = vmatpush.xpose.msra.mxu0 %v2051
    %2069 = vmatmul.f32.gmra.mxu0 %v2049
    %v2070 = vpop.f32.mrf.mxu0
    %v2071 = vadd.f32 0.0, %v2070
    %2072 = vdwg.mxu0
    %2073 = vrot.lane.b32.xlu0 %v1986, 96
    %v2074 = vpop.permute.xlu0 %2073
    %v2075 = vsel %vm170, %v1986, 0
    %v2077 = vsel %vm170, %v2074, 0
    %2079 = vmatpush.xpose.msra.mxu0 0.0
    %2080 = vmatpush.xpose.msra.mxu0 0.0
    %2081 = vmatpush.xpose.msra.mxu0 0.0
    %2082 = vmatpush.xpose.msra.mxu0 0.0
    %2083 = vmatpush.xpose.msra.mxu0 0.0
    %2084 = vmatpush.xpose.msra.mxu0 0.0
    %2085 = vmatpush.xpose.msra.mxu0 0.0
    %2086 = vmatpush.xpose.msra.mxu0 0.0
    %2087 = vmatpush.xpose.msra.mxu0 0.0
    %2088 = vmatpush.xpose.msra.mxu0 0.0
    %2089 = vmatpush.xpose.msra.mxu0 0.0
    %2090 = vmatpush.xpose.msra.mxu0 0.0
    %2091 = vmatpush.xpose.msra.mxu0 0.0
    %2092 = vmatpush.xpose.msra.mxu0 0.0
    %2093 = vmatpush.xpose.msra.mxu0 0.0
    %2094 = vmatpush.xpose.msra.mxu0 %v2077
    %2095 = vmatmul.f32.gmra.mxu0 %v2075
    %v2096 = vpop.f32.mrf.mxu0
    %v2097 = vadd.f32 0.0, %v2096
    %2098 = vdwg.mxu0
    %2099 = vrot.lane.b32.xlu0 %v1988, 96
    %v2100 = vpop.permute.xlu0 %2099
    %v2101 = vsel %vm170, %v1988, 0
    %v2103 = vsel %vm170, %v2100, 0
    %2105 = vmatpush.xpose.msra.mxu0 0.0
    %2106 = vmatpush.xpose.msra.mxu0 0.0
    %2107 = vmatpush.xpose.msra.mxu0 0.0
    %2108 = vmatpush.xpose.msra.mxu0 0.0
    %2109 = vmatpush.xpose.msra.mxu0 0.0
    %2110 = vmatpush.xpose.msra.mxu0 0.0
    %2111 = vmatpush.xpose.msra.mxu0 0.0
    %2112 = vmatpush.xpose.msra.mxu0 0.0
    %2113 = vmatpush.xpose.msra.mxu0 0.0
    %2114 = vmatpush.xpose.msra.mxu0 0.0
    %2115 = vmatpush.xpose.msra.mxu0 0.0
    %2116 = vmatpush.xpose.msra.mxu0 0.0
    %2117 = vmatpush.xpose.msra.mxu0 0.0
    %2118 = vmatpush.xpose.msra.mxu0 0.0
    %2119 = vmatpush.xpose.msra.mxu0 0.0
    %2120 = vmatpush.xpose.msra.mxu0 %v2103
    %2121 = vmatmul.f32.gmra.mxu0 %v2101
    %v2122 = vpop.f32.mrf.mxu0
    %v2123 = vadd.f32 0.0, %v2122
    %2124 = vdwg.mxu0
    %2125 = vrot.lane.b32.xlu0 %v1990, 96
    %v2126 = vpop.permute.xlu0 %2125
    %v2127 = vsel %vm170, %v1990, 0
    %v2129 = vsel %vm170, %v2126, 0
    %2131 = vmatpush.xpose.msra.mxu0 0.0
    %2132 = vmatpush.xpose.msra.mxu0 0.0
    %2133 = vmatpush.xpose.msra.mxu0 0.0
    %2134 = vmatpush.xpose.msra.mxu0 0.0
    %2135 = vmatpush.xpose.msra.mxu0 0.0
    %2136 = vmatpush.xpose.msra.mxu0 0.0
    %2137 = vmatpush.xpose.msra.mxu0 0.0
    %2138 = vmatpush.xpose.msra.mxu0 0.0
    %2139 = vmatpush.xpose.msra.mxu0 0.0
    %2140 = vmatpush.xpose.msra.mxu0 0.0
    %2141 = vmatpush.xpose.msra.mxu0 0.0
    %2142 = vmatpush.xpose.msra.mxu0 0.0
    %2143 = vmatpush.xpose.msra.mxu0 0.0
    %2144 = vmatpush.xpose.msra.mxu0 0.0
    %2145 = vmatpush.xpose.msra.mxu0 0.0
    %2146 = vmatpush.xpose.msra.mxu0 %v2129
    %2147 = vmatmul.f32.gmra.mxu0 %v2127
    %v2148 = vpop.f32.mrf.mxu0
    %v2149 = vadd.f32 0.0, %v2148
    %2150 = vdwg.mxu0
    %2151 = vrot.lane.b32.xlu0 %v1992, 96
    %v2152 = vpop.permute.xlu0 %2151
    %v2153 = vsel %vm170, %v1992, 0
    %v2155 = vsel %vm170, %v2152, 0
    %2157 = vmatpush.xpose.msra.mxu0 0.0
    %2158 = vmatpush.xpose.msra.mxu0 0.0
    %2159 = vmatpush.xpose.msra.mxu0 0.0
    %2160 = vmatpush.xpose.msra.mxu0 0.0
    %2161 = vmatpush.xpose.msra.mxu0 0.0
    %2162 = vmatpush.xpose.msra.mxu0 0.0
    %2163 = vmatpush.xpose.msra.mxu0 0.0
    %2164 = vmatpush.xpose.msra.mxu0 0.0
    %2165 = vmatpush.xpose.msra.mxu0 0.0
    %2166 = vmatpush.xpose.msra.mxu0 0.0
    %2167 = vmatpush.xpose.msra.mxu0 0.0
    %2168 = vmatpush.xpose.msra.mxu0 0.0
    %2169 = vmatpush.xpose.msra.mxu0 0.0
    %2170 = vmatpush.xpose.msra.mxu0 0.0
    %2171 = vmatpush.xpose.msra.mxu0 0.0
    %2172 = vmatpush.xpose.msra.mxu0 %v2155
    %2173 = vmatmul.f32.gmra.mxu0 %v2153
    %v2174 = vpop.f32.mrf.mxu0
    %v2175 = vadd.f32 0.0, %v2174
    %2176 = vdwg.mxu0
    %2177 = vrot.lane.b32.xlu0 %v1994, 96
    %v2178 = vpop.permute.xlu0 %2177
    %v2179 = vsel %vm170, %v1994, 0
    %v2181 = vsel %vm170, %v2178, 0
    %2183 = vmatpush.xpose.msra.mxu0 0.0
    %2184 = vmatpush.xpose.msra.mxu0 0.0
    %2185 = vmatpush.xpose.msra.mxu0 0.0
    %2186 = vmatpush.xpose.msra.mxu0 0.0
    %2187 = vmatpush.xpose.msra.mxu0 0.0
    %2188 = vmatpush.xpose.msra.mxu0 0.0
    %2189 = vmatpush.xpose.msra.mxu0 0.0
    %2190 = vmatpush.xpose.msra.mxu0 0.0
    %2191 = vmatpush.xpose.msra.mxu0 0.0
    %2192 = vmatpush.xpose.msra.mxu0 0.0
    %2193 = vmatpush.xpose.msra.mxu0 0.0
    %2194 = vmatpush.xpose.msra.mxu0 0.0
    %2195 = vmatpush.xpose.msra.mxu0 0.0
    %2196 = vmatpush.xpose.msra.mxu0 0.0
    %2197 = vmatpush.xpose.msra.mxu0 0.0
    %2198 = vmatpush.xpose.msra.mxu0 %v2181
    %2199 = vmatmul.f32.gmra.mxu0 %v2179
    %v2200 = vpop.f32.mrf.mxu0
    %v2201 = vadd.f32 0.0, %v2200
    %2202 = vdwg.mxu0
    %v2203 = vsel %vm170, %v2019, -inf
    %2204 = vmax.xlane.f32.xlu0 %v2203
    %v2205 = vpop.xlane.xlu0 %2204
    %v2206 = vsel %vm170, %v2045, -inf
    %2207 = vmax.xlane.f32.xlu0 %v2206
    %v2208 = vpop.xlane.xlu0 %2207
    %v2209 = vsel %vm170, %v2071, -inf
    %2210 = vmax.xlane.f32.xlu0 %v2209
    %v2211 = vpop.xlane.xlu0 %2210
    %v2212 = vsel %vm170, %v2097, -inf
    %2213 = vmax.xlane.f32.xlu0 %v2212
    %v2214 = vpop.xlane.xlu0 %2213
    %v2215 = vsel %vm170, %v2123, -inf
    %2216 = vmax.xlane.f32.xlu0 %v2215
    %v2217 = vpop.xlane.xlu0 %2216
    %v2218 = vsel %vm170, %v2149, -inf
    %2219 = vmax.xlane.f32.xlu0 %v2218
    %v2220 = vpop.xlane.xlu0 %2219
    %v2221 = vsel %vm170, %v2175, -inf
    %2222 = vmax.xlane.f32.xlu0 %v2221
    %v2223 = vpop.xlane.xlu0 %2222
    %v2224 = vsel %vm170, %v2201, -inf
    %2225 = vmax.xlane.f32.xlu0 %v2224
    %v2226 = vpop.xlane.xlu0 %2225
    %v2227 = vsub.f32 %v2019, %v2205
    %v2228 = vsub.f32 %v2045, %v2208
    %v2229 = vsub.f32 %v2071, %v2211
    %v2230 = vsub.f32 %v2097, %v2214
    %v2231 = vsub.f32 %v2123, %v2217
    %v2232 = vsub.f32 %v2149, %v2220
    %v2233 = vsub.f32 %v2175, %v2223
    %v2234 = vsub.f32 %v2201, %v2226
    %v2235 = vmul.f32 %v2227, 1.442695
    %v2236 = vpow.pop %v2235
    %v2237 = vmul.f32 %v2228, 1.442695
    %v2238 = vpow.pop %v2237
    %v2239 = vmul.f32 %v2229, 1.442695
    %v2240 = vpow.pop %v2239
    %v2241 = vmul.f32 %v2230, 1.442695
    %v2242 = vpow.pop %v2241
    %v2243 = vmul.f32 %v2231, 1.442695
    %v2244 = vpow.pop %v2243
    %v2245 = vmul.f32 %v2232, 1.442695
    %v2246 = vpow.pop %v2245
    %v2247 = vmul.f32 %v2233, 1.442695
    %v2248 = vpow.pop %v2247
    %v2249 = vmul.f32 %v2234, 1.442695
    %v2250 = vpow.pop %v2249
    %v2251 = vsel %vm170, %v2236, 0.0
    %2252 = vadd.xlane.f32.xlu0 %v2251
    %v2253 = vpop.xlane.xlu0 %2252
    %v2254 = vsel %vm170, %v2238, 0.0
    %2255 = vadd.xlane.f32.xlu0 %v2254
    %v2256 = vpop.xlane.xlu0 %2255
    %v2257 = vsel %vm170, %v2240, 0.0
    %2258 = vadd.xlane.f32.xlu0 %v2257
    %v2259 = vpop.xlane.xlu0 %2258
    %v2260 = vsel %vm170, %v2242, 0.0
    %2261 = vadd.xlane.f32.xlu0 %v2260
    %v2262 = vpop.xlane.xlu0 %2261
    %v2263 = vsel %vm170, %v2244, 0.0
    %2264 = vadd.xlane.f32.xlu0 %v2263
    %v2265 = vpop.xlane.xlu0 %2264
    %v2266 = vsel %vm170, %v2246, 0.0
    %2267 = vadd.xlane.f32.xlu0 %v2266
    %v2268 = vpop.xlane.xlu0 %2267
    %v2269 = vsel %vm170, %v2248, 0.0
    %2270 = vadd.xlane.f32.xlu0 %v2269
    %v2271 = vpop.xlane.xlu0 %2270
    %v2272 = vsel %vm170, %v2250, 0.0
    %2273 = vadd.xlane.f32.xlu0 %v2272
    %v2274 = vpop.xlane.xlu0 %2273
    %v2275 = vrcp.pop %v2253
    %v2276 = vmul.f32 %v2253, %v2275
    %v2277 = vsub.f32 1.0, %v2276
    %v2278 = vmul.f32 %v2275, %v2277
    %v2279 = vadd.f32 %v2275, %v2278
    %vm2280 = vweird.f32 %v2253
    %vm2281 = vweird.f32 %v2275
    %vm2282 = vmor %vm2280, %vm2281
    %v2283 = vsel %vm2282, %v2275, %v2279
    %v2284 = vand.u32 2147483647, %v2253
    %vm2285 = vcmp.eq.f32.partialorder %v2284, 8.507059e+37
    %v2286 = vand.u32 %v2253, 2147483648
    %v2287 = vor.u32 1.1754944e-38, %v2286
    %v2288 = vsel %vm2285, %v2287, %v2283
    %v2289 = vmul.f32 %v2236, %v2288
    %v2290 = vrcp.pop %v2256
    %v2291 = vmul.f32 %v2256, %v2290
    %v2292 = vsub.f32 1.0, %v2291
    %v2293 = vmul.f32 %v2290, %v2292
    %v2294 = vadd.f32 %v2290, %v2293
    %vm2295 = vweird.f32 %v2256
    %vm2296 = vweird.f32 %v2290
    %vm2297 = vmor %vm2295, %vm2296
    %v2298 = vsel %vm2297, %v2290, %v2294
    %v2299 = vand.u32 2147483647, %v2256
    %vm2300 = vcmp.eq.f32.partialorder %v2299, 8.507059e+37
    %v2301 = vand.u32 %v2256, 2147483648
    %v2302 = vor.u32 1.1754944e-38, %v2301
    %v2303 = vsel %vm2300, %v2302, %v2298
    %v2304 = vmul.f32 %v2238, %v2303
    %v2305 = vrcp.pop %v2259
    %v2306 = vmul.f32 %v2259, %v2305
    %v2307 = vsub.f32 1.0, %v2306
    %v2308 = vmul.f32 %v2305, %v2307
    %v2309 = vadd.f32 %v2305, %v2308
    %vm2310 = vweird.f32 %v2259
    %vm2311 = vweird.f32 %v2305
    %vm2312 = vmor %vm2310, %vm2311
    %v2313 = vsel %vm2312, %v2305, %v2309
    %v2314 = vand.u32 2147483647, %v2259
    %vm2315 = vcmp.eq.f32.partialorder %v2314, 8.507059e+37
    %v2316 = vand.u32 %v2259, 2147483648
    %v2317 = vor.u32 1.1754944e-38, %v2316
    %v2318 = vsel %vm2315, %v2317, %v2313
    %v2319 = vmul.f32 %v2240, %v2318
    %v2320 = vrcp.pop %v2262
    %v2321 = vmul.f32 %v2262, %v2320
    %v2322 = vsub.f32 1.0, %v2321
    %v2323 = vmul.f32 %v2320, %v2322
    %v2324 = vadd.f32 %v2320, %v2323
    %vm2325 = vweird.f32 %v2262
    %vm2326 = vweird.f32 %v2320
    %vm2327 = vmor %vm2325, %vm2326
    %v2328 = vsel %vm2327, %v2320, %v2324
    %v2329 = vand.u32 2147483647, %v2262
    %vm2330 = vcmp.eq.f32.partialorder %v2329, 8.507059e+37
    %v2331 = vand.u32 %v2262, 2147483648
    %v2332 = vor.u32 1.1754944e-38, %v2331
    %v2333 = vsel %vm2330, %v2332, %v2328
    %v2334 = vmul.f32 %v2242, %v2333
    %v2335 = vrcp.pop %v2265
    %v2336 = vmul.f32 %v2265, %v2335
    %v2337 = vsub.f32 1.0, %v2336
    %v2338 = vmul.f32 %v2335, %v2337
    %v2339 = vadd.f32 %v2335, %v2338
    %vm2340 = vweird.f32 %v2265
    %vm2341 = vweird.f32 %v2335
    %vm2342 = vmor %vm2340, %vm2341
    %v2343 = vsel %vm2342, %v2335, %v2339
    %v2344 = vand.u32 2147483647, %v2265
    %vm2345 = vcmp.eq.f32.partialorder %v2344, 8.507059e+37
    %v2346 = vand.u32 %v2265, 2147483648
    %v2347 = vor.u32 1.1754944e-38, %v2346
    %v2348 = vsel %vm2345, %v2347, %v2343
    %v2349 = vmul.f32 %v2244, %v2348
    %v2350 = vrcp.pop %v2268
    %v2351 = vmul.f32 %v2268, %v2350
    %v2352 = vsub.f32 1.0, %v2351
    %v2353 = vmul.f32 %v2350, %v2352
    %v2354 = vadd.f32 %v2350, %v2353
    %vm2355 = vweird.f32 %v2268
    %vm2356 = vweird.f32 %v2350
    %vm2357 = vmor %vm2355, %vm2356
    %v2358 = vsel %vm2357, %v2350, %v2354
    %v2359 = vand.u32 2147483647, %v2268
    %vm2360 = vcmp.eq.f32.partialorder %v2359, 8.507059e+37
    %v2361 = vand.u32 %v2268, 2147483648
    %v2362 = vor.u32 1.1754944e-38, %v2361
    %v2363 = vsel %vm2360, %v2362, %v2358
    %v2364 = vmul.f32 %v2246, %v2363
    %v2365 = vrcp.pop %v2271
    %v2366 = vmul.f32 %v2271, %v2365
    %v2367 = vsub.f32 1.0, %v2366
    %v2368 = vmul.f32 %v2365, %v2367
    %v2369 = vadd.f32 %v2365, %v2368
    %vm2370 = vweird.f32 %v2271
    %vm2371 = vweird.f32 %v2365
    %vm2372 = vmor %vm2370, %vm2371
    %v2373 = vsel %vm2372, %v2365, %v2369
    %v2374 = vand.u32 2147483647, %v2271
    %vm2375 = vcmp.eq.f32.partialorder %v2374, 8.507059e+37
    %v2376 = vand.u32 %v2271, 2147483648
    %v2377 = vor.u32 1.1754944e-38, %v2376
    %v2378 = vsel %vm2375, %v2377, %v2373
    %v2379 = vmul.f32 %v2248, %v2378
    %v2380 = vrcp.pop %v2274
    %v2381 = vmul.f32 %v2274, %v2380
    %v2382 = vsub.f32 1.0, %v2381
    %v2383 = vmul.f32 %v2380, %v2382
    %v2384 = vadd.f32 %v2380, %v2383
    %vm2385 = vweird.f32 %v2274
    %vm2386 = vweird.f32 %v2380
    %vm2387 = vmor %vm2385, %vm2386
    %v2388 = vsel %vm2387, %v2380, %v2384
    %v2389 = vand.u32 2147483647, %v2274
    %vm2390 = vcmp.eq.f32.partialorder %v2389, 8.507059e+37
    %v2391 = vand.u32 %v2274, 2147483648
    %v2392 = vor.u32 1.1754944e-38, %v2391
    %v2393 = vsel %vm2390, %v2392, %v2388
    %v2394 = vmul.f32 %v2250, %v2393
    %2395 = vrot.lane.b32.xlu0 %v1976, 64
    %v2396 = vpop.permute.xlu0 %2395
    %v2399 = vsel %vm170, %v2289, 0
    %2401 = vmatpush.msra.mxu0 0.0
    %2402 = vmatpush.msra.mxu0 0.0
    %2403 = vmatpush.msra.mxu0 0.0
    %2404 = vmatpush.msra.mxu0 0.0
    %2405 = vmatpush.msra.mxu0 0.0
    %2406 = vmatpush.msra.mxu0 0.0
    %2407 = vmatpush.msra.mxu0 0.0
    %2408 = vmatpush.msra.mxu0 0.0
    %2409 = vmatpush.msra.mxu0 0.0
    %2410 = vmatpush.msra.mxu0 0.0
    %2411 = vmatpush.msra.mxu0 0.0
    %2412 = vmatpush.msra.mxu0 0.0
    %2413 = vmatpush.msra.mxu0 0.0
    %2414 = vmatpush.msra.mxu0 0.0
    %2415 = vmatpush.msra.mxu0 0.0
    %2416 = vmatpush.msra.mxu0 %v2396
    %2417 = vmatmul.f32.gmra.mxu0 %v2399
    %v2418 = vpop.f32.mrf.mxu0
    %v2419 = vadd.f32 0.0, %v2418
    %2420 = vdwg.mxu0
    %2421 = vrot.lane.b32.xlu0 %v1979, 64
    %v2422 = vpop.permute.xlu0 %2421
    %v2425 = vsel %vm170, %v2304, 0
    %2427 = vmatpush.msra.mxu0 0.0
    %2428 = vmatpush.msra.mxu0 0.0
    %2429 = vmatpush.msra.mxu0 0.0
    %2430 = vmatpush.msra.mxu0 0.0
    %2431 = vmatpush.msra.mxu0 0.0
    %2432 = vmatpush.msra.mxu0 0.0
    %2433 = vmatpush.msra.mxu0 0.0
    %2434 = vmatpush.msra.mxu0 0.0
    %2435 = vmatpush.msra.mxu0 0.0
    %2436 = vmatpush.msra.mxu0 0.0
    %2437 = vmatpush.msra.mxu0 0.0
    %2438 = vmatpush.msra.mxu0 0.0
    %2439 = vmatpush.msra.mxu0 0.0
    %2440 = vmatpush.msra.mxu0 0.0
    %2441 = vmatpush.msra.mxu0 0.0
    %2442 = vmatpush.msra.mxu0 %v2422
    %2443 = vmatmul.f32.gmra.mxu0 %v2425
    %v2444 = vpop.f32.mrf.mxu0
    %v2445 = vadd.f32 0.0, %v2444
    %2446 = vdwg.mxu0
    %2447 = vrot.lane.b32.xlu0 %v1984, 64
    %v2448 = vpop.permute.xlu0 %2447
    %v2451 = vsel %vm170, %v2319, 0
    %2453 = vmatpush.msra.mxu0 0.0
    %2454 = vmatpush.msra.mxu0 0.0
    %2455 = vmatpush.msra.mxu0 0.0
    %2456 = vmatpush.msra.mxu0 0.0
    %2457 = vmatpush.msra.mxu0 0.0
    %2458 = vmatpush.msra.mxu0 0.0
    %2459 = vmatpush.msra.mxu0 0.0
    %2460 = vmatpush.msra.mxu0 0.0
    %2461 = vmatpush.msra.mxu0 0.0
    %2462 = vmatpush.msra.mxu0 0.0
    %2463 = vmatpush.msra.mxu0 0.0
    %2464 = vmatpush.msra.mxu0 0.0
    %2465 = vmatpush.msra.mxu0 0.0
    %2466 = vmatpush.msra.mxu0 0.0
    %2467 = vmatpush.msra.mxu0 0.0
    %2468 = vmatpush.msra.mxu0 %v2448
    %2469 = vmatmul.f32.gmra.mxu0 %v2451
    %v2470 = vpop.f32.mrf.mxu0
    %v2471 = vadd.f32 0.0, %v2470
    %2472 = vdwg.mxu0
    %2473 = vrot.lane.b32.xlu0 %v1986, 64
    %v2474 = vpop.permute.xlu0 %2473
    %v2477 = vsel %vm170, %v2334, 0
    %2479 = vmatpush.msra.mxu0 0.0
    %2480 = vmatpush.msra.mxu0 0.0
    %2481 = vmatpush.msra.mxu0 0.0
    %2482 = vmatpush.msra.mxu0 0.0
    %2483 = vmatpush.msra.mxu0 0.0
    %2484 = vmatpush.msra.mxu0 0.0
    %2485 = vmatpush.msra.mxu0 0.0
    %2486 = vmatpush.msra.mxu0 0.0
    %2487 = vmatpush.msra.mxu0 0.0
    %2488 = vmatpush.msra.mxu0 0.0
    %2489 = vmatpush.msra.mxu0 0.0
    %2490 = vmatpush.msra.mxu0 0.0
    %2491 = vmatpush.msra.mxu0 0.0
    %2492 = vmatpush.msra.mxu0 0.0
    %2493 = vmatpush.msra.mxu0 0.0
    %2494 = vmatpush.msra.mxu0 %v2474
    %2495 = vmatmul.f32.gmra.mxu0 %v2477
    %v2496 = vpop.f32.mrf.mxu0
    %v2497 = vadd.f32 0.0, %v2496
    %2498 = vdwg.mxu0
    %2499 = vrot.lane.b32.xlu0 %v1988, 64
    %v2500 = vpop.permute.xlu0 %2499
    %v2503 = vsel %vm170, %v2349, 0
    %2505 = vmatpush.msra.mxu0 0.0
    %2506 = vmatpush.msra.mxu0 0.0
    %2507 = vmatpush.msra.mxu0 0.0
    %2508 = vmatpush.msra.mxu0 0.0
    %2509 = vmatpush.msra.mxu0 0.0
    %2510 = vmatpush.msra.mxu0 0.0
    %2511 = vmatpush.msra.mxu0 0.0
    %2512 = vmatpush.msra.mxu0 0.0
    %2513 = vmatpush.msra.mxu0 0.0
    %2514 = vmatpush.msra.mxu0 0.0
    %2515 = vmatpush.msra.mxu0 0.0
    %2516 = vmatpush.msra.mxu0 0.0
    %2517 = vmatpush.msra.mxu0 0.0
    %2518 = vmatpush.msra.mxu0 0.0
    %2519 = vmatpush.msra.mxu0 0.0
    %2520 = vmatpush.msra.mxu0 %v2500
    %2521 = vmatmul.f32.gmra.mxu0 %v2503
    %v2522 = vpop.f32.mrf.mxu0
    %v2523 = vadd.f32 0.0, %v2522
    %2524 = vdwg.mxu0
    %2525 = vrot.lane.b32.xlu0 %v1990, 64
    %v2526 = vpop.permute.xlu0 %2525
    %v2529 = vsel %vm170, %v2364, 0
    %2531 = vmatpush.msra.mxu0 0.0
    %2532 = vmatpush.msra.mxu0 0.0
    %2533 = vmatpush.msra.mxu0 0.0
    %2534 = vmatpush.msra.mxu0 0.0
    %2535 = vmatpush.msra.mxu0 0.0
    %2536 = vmatpush.msra.mxu0 0.0
    %2537 = vmatpush.msra.mxu0 0.0
    %2538 = vmatpush.msra.mxu0 0.0
    %2539 = vmatpush.msra.mxu0 0.0
    %2540 = vmatpush.msra.mxu0 0.0
    %2541 = vmatpush.msra.mxu0 0.0
    %2542 = vmatpush.msra.mxu0 0.0
    %2543 = vmatpush.msra.mxu0 0.0
    %2544 = vmatpush.msra.mxu0 0.0
    %2545 = vmatpush.msra.mxu0 0.0
    %2546 = vmatpush.msra.mxu0 %v2526
    %2547 = vmatmul.f32.gmra.mxu0 %v2529
    %v2548 = vpop.f32.mrf.mxu0
    %v2549 = vadd.f32 0.0, %v2548
    %2550 = vdwg.mxu0
    %2551 = vrot.lane.b32.xlu0 %v1992, 64
    %v2552 = vpop.permute.xlu0 %2551
    %v2555 = vsel %vm170, %v2379, 0
    %2557 = vmatpush.msra.mxu0 0.0
    %2558 = vmatpush.msra.mxu0 0.0
    %2559 = vmatpush.msra.mxu0 0.0
    %2560 = vmatpush.msra.mxu0 0.0
    %2561 = vmatpush.msra.mxu0 0.0
    %2562 = vmatpush.msra.mxu0 0.0
    %2563 = vmatpush.msra.mxu0 0.0
    %2564 = vmatpush.msra.mxu0 0.0
    %2565 = vmatpush.msra.mxu0 0.0
    %2566 = vmatpush.msra.mxu0 0.0
    %2567 = vmatpush.msra.mxu0 0.0
    %2568 = vmatpush.msra.mxu0 0.0
    %2569 = vmatpush.msra.mxu0 0.0
    %2570 = vmatpush.msra.mxu0 0.0
    %2571 = vmatpush.msra.mxu0 0.0
    %2572 = vmatpush.msra.mxu0 %v2552
    %2573 = vmatmul.f32.gmra.mxu0 %v2555
    %v2574 = vpop.f32.mrf.mxu0
    %v2575 = vadd.f32 0.0, %v2574
    %2576 = vdwg.mxu0
    %2577 = vrot.lane.b32.xlu0 %v1994, 64
    %v2578 = vpop.permute.xlu0 %2577
    %v2581 = vsel %vm170, %v2394, 0
    %2583 = vmatpush.msra.mxu0 0.0
    %2584 = vmatpush.msra.mxu0 0.0
    %2585 = vmatpush.msra.mxu0 0.0
    %2586 = vmatpush.msra.mxu0 0.0
    %2587 = vmatpush.msra.mxu0 0.0
    %2588 = vmatpush.msra.mxu0 0.0
    %2589 = vmatpush.msra.mxu0 0.0
    %2590 = vmatpush.msra.mxu0 0.0
    %2591 = vmatpush.msra.mxu0 0.0
    %2592 = vmatpush.msra.mxu0 0.0
    %2593 = vmatpush.msra.mxu0 0.0
    %2594 = vmatpush.msra.mxu0 0.0
    %2595 = vmatpush.msra.mxu0 0.0
    %2596 = vmatpush.msra.mxu0 0.0
    %2597 = vmatpush.msra.mxu0 0.0
    %2598 = vmatpush.msra.mxu0 %v2578
    %2599 = vmatmul.f32.gmra.mxu0 %v2581
    %v2600 = vpop.f32.mrf.mxu0
    %v2601 = vadd.f32 0.0, %v2600
    %2602 = vdwg.mxu0
    %2605 = vrot.lane.b32.xlu0 %v2471, 8
    %v2606 = vpop.permute.xlu0 %2605
    %2607 = vrot.lane.b32.xlu0 %v2497, 8
    %v2608 = vpop.permute.xlu0 %2607
    %2613 = vrot.lane.b32.xlu0 %v2523, 16
    %v2614 = vpop.permute.xlu0 %2613
    %2615 = vrot.lane.b32.xlu0 %v2549, 16
    %v2616 = vpop.permute.xlu0 %2615
    %2621 = vrot.lane.b32.xlu0 %v2575, 24
    %v2622 = vpop.permute.xlu0 %2621
    %2623 = vrot.lane.b32.xlu0 %v2601, 24
    %v2624 = vpop.permute.xlu0 %2623
    %v2627 = vsel %vm170, %v2419, %v2606
    %v2628 = vsel %vm170, %v2445, %v2608
    %v2629 = vsel %vm803, %v2627, %v2614
    %v2630 = vsel %vm803, %v2628, %v2616
    %v2631 = vsel %vm806, %v2629, %v2622
    %v2632 = vsel %vm806, %v2630, %v2624
    %s2633 = scalar_lea.vmem %s3, 64
    %v2634 = vld [vmem:[%s2633] sm:$0xff]
    %v2635 = vld [vmem:[%s2633 + $0x8] sm:$0xff]
    %v2636 = vld [vmem:[%s2633 + $0x10] sm:$0xff]
    %v2637 = vld [vmem:[%s2633 + $0x18] sm:$0xff]
    %v2638 = vperm.slane %v1933, 0
    %v2640 = vsel %vm116, %v2631, 0
    %v2643 = vsel %vm116, %v2632, 0
    %2645 = vmatpush.msra.mxu0 0.0
    %2646 = vmatpush.msra.mxu0 0.0
    %2647 = vmatpush.msra.mxu0 0.0
    %2648 = vmatpush.msra.mxu0 0.0
    %2649 = vmatpush.msra.mxu0 0.0
    %2650 = vmatpush.msra.mxu0 0.0
    %2651 = vmatpush.msra.mxu0 0.0
    %2652 = vmatpush.msra.mxu0 0.0
    %2653 = vmatpush.msra.mxu0 0.0
    %2654 = vmatpush.msra.mxu0 0.0
    %2655 = vmatpush.msra.mxu0 0.0
    %2656 = vmatpush.msra.mxu0 0.0
    %2657 = vmatpush.msra.mxu0 %v2637
    %2658 = vmatpush.msra.mxu0 %v2636
    %2659 = vmatpush.msra.mxu0 %v2635
    %2660 = vmatpush.msra.mxu0 %v2634
    %2661 = vmatmul.f32.gmra.mxu0 %v2640
    %v2662 = vpop.f32.mrf.mxu0
    %v2663 = vadd.f32 %v2638, %v2662
    %2664 = vmatmul.f32.gmra.mxu0 %v2643
    %v2665 = vpop.f32.mrf.mxu0
    %v2666 = vadd.f32 %v2638, %v2665
    %2667 = vdwg.mxu0
    %v2668 = vadd.f32 %v1930, %v2663
    %v2669 = vadd.f32 %v1931, %v2666
    %v2670 = vsel %vm116, %v2668, 0.0
    %2671 = vadd.xlane.f32.xlu0 %v2670
    %v2672 = vpop.xlane.xlu0 %2671
    %v2673 = vsel %vm116, %v2669, 0.0
    %2674 = vadd.xlane.f32.xlu0 %v2673
    %v2675 = vpop.xlane.xlu0 %2674
    %v2676 = vmul.f32 %v2672, %v857
    %v2677 = vmul.f32 %v2675, %v857
    %v2678 = vsub.f32 %v2668, %v2676
    %v2679 = vsub.f32 %v2669, %v2677
    %v2680 = vmul.f32 %v2678, %v2678
    %v2681 = vmul.f32 %v2679, %v2679
    %v2682 = vsel %vm116, %v2680, 0.0
    %2683 = vadd.xlane.f32.xlu0 %v2682
    %v2684 = vpop.xlane.xlu0 %2683
    %v2685 = vsel %vm116, %v2681, 0.0
    %2686 = vadd.xlane.f32.xlu0 %v2685
    %v2687 = vpop.xlane.xlu0 %2686
    %v2688 = vmul.f32 %v2684, %v857
    %v2689 = vmul.f32 %v2687, %v857
    %v2690 = vadd.f32 %v2688, 1e-05
    %v2691 = vadd.f32 %v2689, 1e-05
    %v2692 = vrsqrt.pop %v2690
    %v2693 = vmul.f32 %v2692, %v2690
    %v2694 = vmul.f32 %v2693, %v2692
    %v2695 = vmul.f32 0.5, %v2694
    %v2696 = vsub.f32 1.5, %v2695
    %v2697 = vmul.f32 %v2692, %v2696
    %vm2698 = vweird.f32 %v2690
    %vm2699 = vweird.f32 %v2692
    %vm2700 = vmor %vm2698, %vm2699
    %v2701 = vsel %vm2700, %v2692, %v2697
    %v2702 = vrsqrt.pop %v2691
    %v2703 = vmul.f32 %v2702, %v2691
    %v2704 = vmul.f32 %v2703, %v2702
    %v2705 = vmul.f32 0.5, %v2704
    %v2706 = vsub.f32 1.5, %v2705
    %v2707 = vmul.f32 %v2702, %v2706
    %vm2708 = vweird.f32 %v2691
    %vm2709 = vweird.f32 %v2702
    %vm2710 = vmor %vm2708, %vm2709
    %v2711 = vsel %vm2710, %v2702, %v2707
    %v2712 = vmul.f32 %v2678, %v2701
    %v2713 = vmul.f32 %v2679, %v2711
    %v2714 = vperm.slane %v1933, 1
    %v2715 = vmul.f32 %v2712, %v2714
    %v2716 = vmul.f32 %v2713, %v2714
    %v2717 = vperm.slane %v1933, 2
    %v2718 = vadd.f32 %v2715, %v2717
    %v2719 = vadd.f32 %v2716, %v2717
    %s2720 = scalar_lea.vmem %s4, 64
    %v2721 = vld [vmem:[%s2720] sm:$0xff]
    %v2722 = vld [vmem:[%s2720 + $0x8] sm:$0xff]
    %v2723 = vld [vmem:[%s2720 + $0x10] sm:$0xff]
    %v2724 = vld [vmem:[%s2720 + $0x18] sm:$0xff]
    %v2725 = vperm.slane %v1933, 3
    %v2727 = vsel %vm116, %v2718, 0
    %v2730 = vsel %vm116, %v2719, 0
    %2732 = vmatpush.msra.mxu0 0.0
    %2733 = vmatpush.msra.mxu0 0.0
    %2734 = vmatpush.msra.mxu0 0.0
    %2735 = vmatpush.msra.mxu0 0.0
    %2736 = vmatpush.msra.mxu0 0.0
    %2737 = vmatpush.msra.mxu0 0.0
    %2738 = vmatpush.msra.mxu0 0.0
    %2739 = vmatpush.msra.mxu0 0.0
    %2740 = vmatpush.msra.mxu0 0.0
    %2741 = vmatpush.msra.mxu0 0.0
    %2742 = vmatpush.msra.mxu0 0.0
    %2743 = vmatpush.msra.mxu0 0.0
    %2744 = vmatpush.msra.mxu0 %v2724
    %2745 = vmatpush.msra.mxu0 %v2723
    %2746 = vmatpush.msra.mxu0 %v2722
    %2747 = vmatpush.msra.mxu0 %v2721
    %2748 = vmatmul.f32.gmra.mxu0 %v2727
    %v2749 = vpop.f32.mrf.mxu0
    %v2750 = vadd.f32 %v2725, %v2749
    %2751 = vmatmul.f32.gmra.mxu0 %v2730
    %v2752 = vpop.f32.mrf.mxu0
    %v2753 = vadd.f32 %v2725, %v2752
    %2754 = vdwg.mxu0
    %v2755 = vmax.f32 %v2750, 0.0
    %v2756 = vmax.f32 %v2753, 0.0
    %s2757 = scalar_lea.vmem %s5, 32
    %v2758 = vld [vmem:[%s2757] sm:$0xff]
    %v2759 = vld [vmem:[%s2757 + $0x8] sm:$0xff]
    %v2760 = vperm.slane %v1933, 4
    %v2762 = vsel %vm803, %v2755, 0
    %v2765 = vsel %vm803, %v2756, 0
    %2767 = vmatpush.msra.mxu0 0.0
    %2768 = vmatpush.msra.mxu0 0.0
    %2769 = vmatpush.msra.mxu0 0.0
    %2770 = vmatpush.msra.mxu0 0.0
    %2771 = vmatpush.msra.mxu0 0.0
    %2772 = vmatpush.msra.mxu0 0.0
    %2773 = vmatpush.msra.mxu0 0.0
    %2774 = vmatpush.msra.mxu0 0.0
    %2775 = vmatpush.msra.mxu0 0.0
    %2776 = vmatpush.msra.mxu0 0.0
    %2777 = vmatpush.msra.mxu0 0.0
    %2778 = vmatpush.msra.mxu0 0.0
    %2779 = vmatpush.msra.mxu0 0.0
    %2780 = vmatpush.msra.mxu0 0.0
    %2781 = vmatpush.msra.mxu0 %v2759
    %2782 = vmatpush.msra.mxu0 %v2758
    %2783 = vmatmul.f32.gmra.mxu0 %v2762
    %v2784 = vpop.f32.mrf.mxu0
    %v2785 = vadd.f32 %v2760, %v2784
    %2786 = vmatmul.f32.gmra.mxu0 %v2765
    %v2787 = vpop.f32.mrf.mxu0
    %v2788 = vadd.f32 %v2760, %v2787
    %2789 = vdwg.mxu0
    %v2790 = vadd.f32 %v2718, %v2785
    %v2791 = vadd.f32 %v2719, %v2788
    %v2792 = vsel %vm116, %v2790, 0.0
    %2793 = vadd.xlane.f32.xlu0 %v2792
    %v2794 = vpop.xlane.xlu0 %2793
    %v2795 = vsel %vm116, %v2791, 0.0
    %2796 = vadd.xlane.f32.xlu0 %v2795
    %v2797 = vpop.xlane.xlu0 %2796
    %v2798 = vmul.f32 %v2794, %v857
    %v2799 = vmul.f32 %v2797, %v857
    %v2800 = vsub.f32 %v2790, %v2798
    %v2801 = vsub.f32 %v2791, %v2799
    %v2802 = vmul.f32 %v2800, %v2800
    %v2803 = vmul.f32 %v2801, %v2801
    %v2804 = vsel %vm116, %v2802, 0.0
    %2805 = vadd.xlane.f32.xlu0 %v2804
    %v2806 = vpop.xlane.xlu0 %2805
    %v2807 = vsel %vm116, %v2803, 0.0
    %2808 = vadd.xlane.f32.xlu0 %v2807
    %v2809 = vpop.xlane.xlu0 %2808
    %v2810 = vmul.f32 %v2806, %v857
    %v2811 = vmul.f32 %v2809, %v857
    %v2812 = vadd.f32 %v2810, 1e-05
    %v2813 = vadd.f32 %v2811, 1e-05
    %v2814 = vrsqrt.pop %v2812
    %v2815 = vmul.f32 %v2814, %v2812
    %v2816 = vmul.f32 %v2815, %v2814
    %v2817 = vmul.f32 0.5, %v2816
    %v2818 = vsub.f32 1.5, %v2817
    %v2819 = vmul.f32 %v2814, %v2818
    %vm2820 = vweird.f32 %v2812
    %vm2821 = vweird.f32 %v2814
    %vm2822 = vmor %vm2820, %vm2821
    %v2823 = vsel %vm2822, %v2814, %v2819
    %v2824 = vrsqrt.pop %v2813
    %v2825 = vmul.f32 %v2824, %v2813
    %v2826 = vmul.f32 %v2825, %v2824
    %v2827 = vmul.f32 0.5, %v2826
    %v2828 = vsub.f32 1.5, %v2827
    %v2829 = vmul.f32 %v2824, %v2828
    %vm2830 = vweird.f32 %v2813
    %vm2831 = vweird.f32 %v2824
    %vm2832 = vmor %vm2830, %vm2831
    %v2833 = vsel %vm2832, %v2824, %v2829
    %v2834 = vmul.f32 %v2800, %v2823
    %v2835 = vmul.f32 %v2801, %v2833
    %v2836 = vperm.slane %v1933, 5
    %v2837 = vmul.f32 %v2834, %v2836
    %v2838 = vmul.f32 %v2835, %v2836
    %v2839 = vperm.slane %v1933, 6
    %v2840 = vadd.f32 %v2837, %v2839
    %v2841 = vadd.f32 %v2838, %v2839
    %v2844 = vrot.slane %v2841, 7
    %vm2845 = vcmask 1041409
    %v2846 = vsel %vm2845, %v2844, %v2840
    %v2848 = vrot.slane %v2840, 1
    %v2849 = vsel %vm2845, %v2841, %v2848
    %2850 = vrot.lane.b32.xlu0 %v2849, 32
    %v2851 = vpop.permute.xlu0 %2850
    %v2853 = vrot.slane %v2840, 2
    %v2854 = vrot.slane %v2841, 1
    %v2855 = vsel %vm2845, %v2854, %v2853
    %2856 = vrot.lane.b32.xlu0 %v2855, 64
    %v2857 = vpop.permute.xlu0 %2856
    %v2859 = vrot.slane %v2840, 3
    %v2860 = vrot.slane %v2841, 2
    %v2861 = vsel %vm2845, %v2860, %v2859
    %2862 = vrot.lane.b32.xlu0 %v2861, 96
    %v2863 = vpop.permute.xlu0 %2862
    %v2865 = vrot.slane %v2840, 4
    %v2866 = vrot.slane %v2841, 3
    %v2867 = vsel %vm2845, %v2866, %v2865
    %v2869 = vrot.slane %v2840, 5
    %v2870 = vrot.slane %v2841, 4
    %v2871 = vsel %vm2845, %v2870, %v2869
    %2872 = vrot.lane.b32.xlu0 %v2871, 32
    %v2873 = vpop.permute.xlu0 %2872
    %v2875 = vrot.slane %v2840, 6
    %v2876 = vrot.slane %v2841, 5
    %v2877 = vsel %vm2845, %v2876, %v2875
    %2878 = vrot.lane.b32.xlu0 %v2877, 64
    %v2879 = vpop.permute.xlu0 %2878
    %v2881 = vrot.slane %v2840, 7
    %v2882 = vrot.slane %v2841, 6
    %v2883 = vsel %vm2845, %v2882, %v2881
    %2884 = vrot.lane.b32.xlu0 %v2883, 96
    %v2885 = vpop.permute.xlu0 %2884
    %v2887 = vsel %vm116, %v2846, %v2851
    %v2888 = vsel %vm118, %v2887, %v2857
    %vm2889 = vcmask 785408
    %v2890 = vsel %vm2889, %v2888, %v2863
    %v2891 = vsel %vm116, %v2867, %v2873
    %v2892 = vsel %vm118, %v2891, %v2879
    %v2893 = vsel %vm2889, %v2892, %v2885
    %v2894 = vperm.slane %v67, 1
    %2895 = vmatpush.msra.mxu0 %v46
    %2896 = vmatpush.msra.mxu0 %v45
    %2897 = vmatpush.msra.mxu0 %v44
    %2898 = vmatpush.msra.mxu0 %v43
    %2899 = vmatpush.msra.mxu0 %v42
    %2900 = vmatpush.msra.mxu0 %v41
    %2901 = vmatpush.msra.mxu0 %v40
    %2902 = vmatpush.msra.mxu0 %v39
    %2903 = vmatpush.msra.mxu0 %v38
    %2904 = vmatpush.msra.mxu0 %v37
    %2905 = vmatpush.msra.mxu0 %v36
    %2906 = vmatpush.msra.mxu0 %v35
    %2907 = vmatpush.msra.mxu0 %v34
    %2908 = vmatpush.msra.mxu0 %v33
    %2909 = vmatpush.msra.mxu0 %v32
    %2910 = vmatpush.msra.mxu0 %v31
    %2911 = vmatmul.f32.gmra.mxu0 %v2890
    %v2912 = vpop.f32.mrf.mxu0
    %v2913 = vadd.f32 %v2894, %v2912
    %2914 = vdwg.mxu0
    %2915 = vmatpush.msra.mxu0 %v62
    %2916 = vmatpush.msra.mxu0 %v61
    %2917 = vmatpush.msra.mxu0 %v60
    %2918 = vmatpush.msra.mxu0 %v59
    %2919 = vmatpush.msra.mxu0 %v58
    %2920 = vmatpush.msra.mxu0 %v57
    %2921 = vmatpush.msra.mxu0 %v56
    %2922 = vmatpush.msra.mxu0 %v55
    %2923 = vmatpush.msra.mxu0 %v54
    %2924 = vmatpush.msra.mxu0 %v53
    %2925 = vmatpush.msra.mxu0 %v52
    %2926 = vmatpush.msra.mxu0 %v51
    %2927 = vmatpush.msra.mxu0 %v50
    %2928 = vmatpush.msra.mxu0 %v49
    %2929 = vmatpush.msra.mxu0 %v48
    %2930 = vmatpush.msra.mxu0 %v47
    %2931 = vmatmul.f32.gmra.mxu0 %v2893
    %v2932 = vpop.f32.mrf.mxu0
    %v2933 = vadd.f32 %v2913, %v2932
    %2934 = vdwg.mxu0
    %v2935 = vperm.slane %v67, 2
    %v2937 = vsel %vm116, %v2933, 0
    %2939 = vmatpush.msra.mxu0 0.0
    %2940 = vmatpush.msra.mxu0 0.0
    %2941 = vmatpush.msra.mxu0 0.0
    %2942 = vmatpush.msra.mxu0 0.0
    %2943 = vmatpush.msra.mxu0 0.0
    %2944 = vmatpush.msra.mxu0 0.0
    %2945 = vmatpush.msra.mxu0 0.0
    %2946 = vmatpush.msra.mxu0 0.0
    %2947 = vmatpush.msra.mxu0 0.0
    %2948 = vmatpush.msra.mxu0 0.0
    %2949 = vmatpush.msra.mxu0 0.0
    %2950 = vmatpush.msra.mxu0 0.0
    %2951 = vmatpush.msra.mxu0 %v66
    %2952 = vmatpush.msra.mxu0 %v65
    %2953 = vmatpush.msra.mxu0 %v64
    %2954 = vmatpush.msra.mxu0 %v63
    %2955 = vmatmul.f32.gmra.mxu0 %v2937
    %v2956 = vpop.f32.mrf.mxu0
    %v2957 = vadd.f32 %v2935, %v2956
    %2958 = vdwg.mxu0
    %vm2959 = vcmask 25600
    %2960 = vst.msk [vmem:[#allocation2] sm:$0x3] %vm2959, %v2957
    // Predicated region
    $region30: #{tpu_custom_call.1} parent=1 // pred_check
      _
    $region31: #{tpu_custom_call.1} parent=1 // pred_check_branch
      %2962 = sbr.rel (0) target = $region33
    $region32: #{tpu_custom_call.1} parent=1 // pred_region
      %2964 = vsyncadd [#allocation3], 0
      %s2966 = sshll.u32 [#allocation2], 4
      %s2967 = int_to_ptr.vmem [resolvable:$true] %s2966
      %s2968 = sshll.u32 %s7, 4
      %s2969 = int_to_ptr.hbm [resolvable:$true] %s2968
      %2971 = dma.vmem_to_hbm [thread:$0]  %s2967, 32, %s2969, [#allocation3]
    $region33: #{tpu_custom_call.1} parent=1 // pred_fallthru
      _
    // Predicated region
    $region34: #{tpu_custom_call.1} parent=1 // pred_check
      _
    $region35: #{tpu_custom_call.1} parent=1 // pred_check_branch
      %2973 = sbr.rel (0) target = $region37
    $region36: #{tpu_custom_call.1} parent=1 // pred_region
      %2975 = dma.done [#allocation3], 32
    $region37: #{tpu_custom_call.1} parent=1 // pred_fallthru
      _
    %2976 = vsyncpa [#allocation3], 1

</llo_original>
